<compile_context>
chip_gen: v6e
topology: v6e:2x2x1
jax: 0.10.0
libtpu: 0.0.40
codegen_flags: <defaults>
</compile_context>

<pallas_src>
import numpy as np
import jax
import jax.numpy as jnp
from jax import lax
from jax.experimental import pallas as pl
from jax.experimental.pallas import tpu as pltpu


def _round_up(v, m):
    return ((v + m - 1) // m) * m


def _pick_d_tile(t):
    """Largest depth tile <= t//2 that divides t (grid length >= 2 per core)."""
    for td in range(max(t // 2, 1), 0, -1):
        if t % td == 0:
            return td
    return t


# ------------------------------- Pallas kernel --------------------------------


def _inception_kernel(xprev_ref, xcur_ref, xnext_ref, wA_ref, bA_ref,
                      w0_ref, w12_ref, w3_ref, b_ref, o_ref,
                      xp_s, hp_s, acc_s):
    """Fully fused InceptionModule forward for one (batch, depth-tile) block.

    xprev/xcur/xnext : (1, td, H, W, Cin) unpadded x depth-tiles (prev/this/next)
    wA_ref : (Cin, C1+C3)        fused b1a|b2a 1x1x1 weights (BN folded)
    bA_ref : (1, C1+C3)          fused b1a|b2a biases
    w0_ref : (Cin, c0)           branch-0 1x1x1 weights
    w12_ref: (3, 9, C1+C3, C2+C4) block-diagonal 3x3x3 weights (b1b|b2b), [kd][kh*3+kw]
    w3_ref : (Cin, CP-c0-C2-C4)  branch-3 1x1x1 weights, zero-padded out channels
    b_ref  : (1, CP)             folded biases, channel-concatenated + zero pad
    o_ref  : (td*H*W, CP)        lane-dense 2D output tile
    xp_s   : (td+2, H+2, W+2, Cin)    zero-halo x slab (VMEM scratch)
    hp_s   : (td+2, H+2, W+2, C1+C3)  zero-halo hcat slab (VMEM scratch)
    acc_s  : (td*H*W, C2+C4)          conv accumulator (VMEM scratch)
    """
    d = pl.program_id(1)
    nd = pl.num_programs(1)
    _, td, H, W, cin = xcur_ref.shape
    c13 = hp_s.shape[-1]
    rows = td * H * W

    # Memset the halo slabs: whatever is not overwritten below IS the zero
    # padding (F.pad semantics for both the 3x3x3 convs and the max-pool).
    xp_s[...] = jnp.zeros_like(xp_s)
    hp_s[...] = jnp.zeros_like(hp_s)
    acc_s[...] = jnp.zeros_like(acc_s)

    def hcat(x2d):  # fused Stage A: b1a & b2a 1x1x1 convs + folded BN + ReLU
        y = jnp.dot(x2d, wA_ref[...], preferred_element_type=jnp.float32)
        return jnp.maximum(y + bA_ref[...], 0.0)

    # Core depth-tile: copy x into the slab interior and compute hcat in VMEM.
    xc = xcur_ref[0].reshape(rows, cin)
    xp_s[1:1 + td, 1:1 + H, 1:1 + W, :] = xcur_ref[0]
    hp_s[1:1 + td, 1:1 + H, 1:1 + W, :] = hcat(xc).reshape(td, H, W, c13)

    # Depth-halo rows: real neighbour rows except at the volume edges
    # (there they stay zero = padding).
    @pl.when(d > 0)
    def _():
        xr = xprev_ref[0, td - 1]
        xp_s[0, 1:1 + H, 1:1 + W, :] = xr
        hp_s[0, 1:1 + H, 1:1 + W, :] = hcat(
            xr.reshape(H * W, cin)).reshape(H, W, c13)

    @pl.when(d < nd - 1)
    def _():
        xr = xnext_ref[0, 0]
        xp_s[1 + td, 1:1 + H, 1:1 + W, :] = xr
        hp_s[1 + td, 1:1 + H, 1:1 + W, :] = hcat(
            xr.reshape(H * W, cin)).reshape(H, W, c13)

    # Branch 0: 1x1x1 conv on the already-resident tile.
    b0 = jnp.dot(xc, w0_ref[...], preferred_element_type=jnp.float32)

    # Branches 1 & 2: 3x3x3 'same' convs as 27 shifted matmuls sharing one dot
    # per shift via the block-diagonal weight; pl.loop over kd bounds live
    # ranges, accumulation lives in the VMEM scratch accumulator.
    @pl.loop(0, 3)
    def _(kd):
        wk = w12_ref[kd]                                  # (9, C13, C24)
        for kh in range(3):
            for kw in range(3):
                s = hp_s[pl.ds(kd, td), kh:kh + H, kw:kw + W, :].reshape(rows, c13)
                acc_s[...] += jnp.dot(s, wk[kh * 3 + kw],
                                      preferred_element_type=jnp.float32)

    # Branch 3: separable 3x3x3 max-pool (zero padding participates, F.pad
    # style), single reshape, then the 1x1x1 conv.
    xpad = xp_s[...]
    mw = jnp.maximum(jnp.maximum(xpad[:, :, 0:W, :], xpad[:, :, 1:1 + W, :]),
                     xpad[:, :, 2:2 + W, :])
    mh = jnp.maximum(jnp.maximum(mw[:, 0:H, :, :], mw[:, 1:1 + H, :, :]),
                     mw[:, 2:2 + H, :, :])
    md = jnp.maximum(jnp.maximum(mh[0:td], mh[1:1 + td]), mh[2:2 + td])
    b3 = jnp.dot(md.reshape(rows, cin), w3_ref[...],
                 preferred_element_type=jnp.float32)

    # Channel-concatenated output, bias, ReLU — one lane-dense (rows, CP) store.
    out = jnp.concatenate([b0, acc_s[...], b3], axis=-1) + b_ref[...]
    o_ref[...] = jnp.maximum(out, 0.0)


# --------------------------------- wrapper -------------------------------------


def inception_forward(x_ncdhw, params, c_total):
    x = jnp.transpose(x_ncdhw, (0, 2, 3, 4, 1))           # NCDHW -> NDHWC
    n, t, h, w, cin = x.shape
    td = _pick_d_tile(t)
    dt = t // td
    wA, bA = params["wA"], params["bA"]
    w0, w12, w3, bias = params["w0"], params["w12"], params["w3"], params["bias_out"]
    c13 = wA.shape[1]
    c24 = w12.shape[-1]
    cp = bias.shape[-1]                                    # padded channel width
    rows_blk = td * h * w

    x_prev = pl.BlockSpec((1, td, h, w, cin),
                          lambda i, j: (i, jnp.maximum(j - 1, 0), 0, 0, 0))
    x_cur = pl.BlockSpec((1, td, h, w, cin), lambda i, j: (i, j, 0, 0, 0))
    x_next = pl.BlockSpec((1, td, h, w, cin),
                          lambda i, j: (i, jnp.minimum(j + 1, dt - 1), 0, 0, 0))

    out2d = pl.pallas_call(
        _inception_kernel,
        out_shape=jax.ShapeDtypeStruct((n * t * h * w, cp), jnp.float32),
        grid_spec=pltpu.PrefetchScalarGridSpec(
            num_scalar_prefetch=0,
            grid=(n, dt),
            in_specs=[
                x_prev, x_cur, x_next,
                pl.BlockSpec(wA.shape, lambda i, j: (0, 0)),
                pl.BlockSpec(bA.shape, lambda i, j: (0, 0)),
                pl.BlockSpec(w0.shape, lambda i, j: (0, 0)),
                pl.BlockSpec(w12.shape, lambda i, j: (0, 0, 0, 0)),
                pl.BlockSpec(w3.shape, lambda i, j: (0, 0)),
                pl.BlockSpec(bias.shape, lambda i, j: (0, 0)),
            ],
            out_specs=pl.BlockSpec((rows_blk, cp), lambda i, j: (i * dt + j, 0)),
            scratch_shapes=[
                pltpu.VMEM((td + 2, h + 2, w + 2, cin), jnp.float32),
                pltpu.VMEM((td + 2, h + 2, w + 2, c13), jnp.float32),
                pltpu.VMEM((rows_blk, c24), jnp.float32),
            ],
        ),
        compiler_params=pltpu.CompilerParams(
            dimension_semantics=("parallel", "parallel")),
    )(x, x, x, wA, bA, w0, w12, w3, bias)

    out = out2d[:, :c_total].reshape(n, t, h, w, c_total)  # drop channel pad
    return jnp.transpose(out, (0, 4, 1, 2, 3))             # NDHWC -> NCDHW


# ---------------- deterministic parameter construction ------------------------


def make_unit_params(key, cin, cout, k):
    kw_, kg, kb, km, kv = jax.random.split(key, 5)
    w = jax.random.normal(kw_, (k, k, k, cin, cout), jnp.float32) * 0.1   # DHWIO
    gamma = jax.random.uniform(kg, (cout,), jnp.float32, 0.5, 1.5)
    beta = jax.random.normal(kb, (cout,), jnp.float32) * 0.1
    mean = jax.random.normal(km, (cout,), jnp.float32) * 0.1
    var = jax.random.uniform(kv, (cout,), jnp.float32, 0.5, 1.5)
    scale = gamma / jnp.sqrt(var + 1e-3)      # BN eval mode, eps = 0.001
    bias = beta - mean * scale
    w_folded = w * scale                      # fold BN scale into the conv weight
    return (w_folded, bias), (w, scale, bias)


# ---------------- pure-JAX reference (for validation) -------------------------


def unit3d_ref(x_ndhwc, w_dhwio, scale, bias, same_pad):
    pad = [(1, 1)] * 3 if same_pad else [(0, 0)] * 3
    y = lax.conv_general_dilated(x_ndhwc, w_dhwio, (1, 1, 1), pad,
                                 dimension_numbers=("NDHWC", "DHWIO", "NDHWC"))
    return jnp.maximum(y * scale + bias, 0.0)


def inception_ref(x_ncdhw, ref_params):
    x = jnp.transpose(x_ncdhw, (0, 2, 3, 4, 1))
    b0 = unit3d_ref(x, *ref_params["b0"], same_pad=False)
    b1 = unit3d_ref(unit3d_ref(x, *ref_params["b1a"], same_pad=False),
                    *ref_params["b1b"], same_pad=True)
    b2 = unit3d_ref(unit3d_ref(x, *ref_params["b2a"], same_pad=False),
                    *ref_params["b2b"], same_pad=True)
    xp = jnp.pad(x, ((0, 0), (1, 1), (1, 1), (1, 1), (0, 0)))   # zero pad (F.pad)
    mp = lax.reduce_window(xp, -jnp.inf, lax.max,
                           (1, 3, 3, 3, 1), (1, 1, 1, 1, 1), "VALID")
    b3 = unit3d_ref(mp, *ref_params["b3b"], same_pad=False)
    out = jnp.concatenate([b0, b1, b2, b3], axis=-1)
    return jnp.transpose(out, (0, 4, 1, 2, 3))


# ------------------------------------ main ------------------------------------

if __name__ == "__main__":
    key = jax.random.PRNGKey(0)
    N, Cin, T, H, W = 2, 4, 4, 8, 8
    out_channels = [8, 6, 8, 4, 8, 4]        # [b0, b1a, b1b, b2a, b2b, b3b]
    c0, c1, c2, c3, c4, c5 = out_channels
    c_total = c0 + c2 + c4 + c5

    kx, *pkeys = jax.random.split(key, 7)
    x = jax.random.normal(kx, (N, Cin, T, H, W), jnp.float32)    # NCDHW like PyTorch

    specs = {
        "b0":  (Cin, c0, 1),
        "b1a": (Cin, c1, 1),
        "b1b": (c1,  c2, 3),
        "b2a": (Cin, c3, 1),
        "b2b": (c3,  c4, 3),
        "b3b": (Cin, c5, 1),
    }
    folded, ref_params = {}, {}
    for (name, (ci, co, kk_sz)), kk in zip(specs.items(), pkeys):
        folded[name], ref_params[name] = make_unit_params(kk, ci, co, kk_sz)

    # Pack kernel-side parameters (BN scale already folded into the weights).
    C13, C24 = c1 + c3, c2 + c4
    CP = _round_up(c_total, 128)             # lane-dense padded output channels
    wA = jnp.concatenate([folded["b1a"][0].reshape(Cin, c1),
                          folded["b2a"][0].reshape(Cin, c3)], axis=1)
    bA = jnp.concatenate([folded["b1a"][1], folded["b2a"][1]]).reshape(1, C13)
    w0 = folded["b0"][0].reshape(Cin, c0)
    w1 = folded["b1b"][0].reshape(27, c1, c2)    # k = kd*9 + kh*3 + kw ordering
    w2 = folded["b2b"][0].reshape(27, c3, c4)
    w12 = jnp.zeros((27, C13, C24), jnp.float32)
    w12 = w12.at[:, :c1, :c2].set(w1).at[:, c1:, c2:].set(w2)   # block-diagonal
    w12 = w12.reshape(3, 9, C13, C24)            # indexed [kd][kh*3 + kw] in-kernel
    c5_pad = CP - (c0 + C24)                     # zero-pad b3b out channels -> CP
    w3 = jnp.zeros((Cin, c5_pad), jnp.float32).at[:, :c5].set(
        folded["b3b"][0].reshape(Cin, c5))
    bias_out = jnp.zeros((1, CP), jnp.float32)
    bias_out = (bias_out.at[0, :c0].set(folded["b0"][1])
                        .at[0, c0:c0 + c2].set(folded["b1b"][1])
                        .at[0, c0 + c2:c0 + C24].set(folded["b2b"][1])
                        .at[0, c0 + C24:c0 + C24 + c5].set(folded["b3b"][1]))
    params = dict(wA=wA, bA=bA, w0=w0, w12=w12, w3=w3, bias_out=bias_out)

    fwd = jax.jit(inception_forward, static_argnames=("c_total",))
    out = jax.block_until_ready(fwd(x, params, c_total=c_total))
    ref = inception_ref(x, ref_params)

    assert out.shape == (N, c_total, T, H, W), out.shape
    np.testing.assert_allclose(np.asarray(out), np.asarray(ref),
                               atol=1e-4, rtol=1e-4)
    print("KERNEL_OK")
</pallas_src>

<mosaic_0001>
module attributes {stable_mosaic.version = 11 : i64} {
  func.func @_inception_kernel(%arg0: i32, %arg1: i32, %arg2: memref<1x2x8x8x4xf32, #tpu.memory_space<vmem>>, %arg3: memref<1x2x8x8x4xf32, #tpu.memory_space<vmem>>, %arg4: memref<1x2x8x8x4xf32, #tpu.memory_space<vmem>>, %arg5: memref<4x10xf32, #tpu.memory_space<vmem>>, %arg6: memref<1x10xf32, #tpu.memory_space<vmem>>, %arg7: memref<4x8xf32, #tpu.memory_space<vmem>>, %arg8: memref<3x9x10x16xf32, #tpu.memory_space<vmem>>, %arg9: memref<4x104xf32, #tpu.memory_space<vmem>>, %arg10: memref<1x128xf32, #tpu.memory_space<vmem>>, %arg11: memref<128x128xf32, #tpu.memory_space<vmem>>, %arg12: memref<4x10x10x4xf32, #tpu.memory_space<vmem>>, %arg13: memref<4x10x10x10xf32, #tpu.memory_space<vmem>>, %arg14: memref<128x16xf32, #tpu.memory_space<vmem>>) attributes {dimension_semantics = [#tpu.dimension_semantics<parallel>, #tpu.dimension_semantics<parallel>], iteration_bounds = array<i64: 2, 2>, scalar_prefetch = 0 : i64, scratch_operands = 3 : i64, tpu.core_type = #tpu.core_type<tc>, window_params = [{transform_indices = @transform_0, window_bounds = array<i64: 1, 2, 8, 8, 4>}, {transform_indices = @transform_1, window_bounds = array<i64: 1, 2, 8, 8, 4>}, {transform_indices = @transform_2, window_bounds = array<i64: 1, 2, 8, 8, 4>}, {pipeline_mode = #tpu.pipeline_mode<synchronous>, transform_indices = @transform_3, window_bounds = array<i64: 4, 10>}, {pipeline_mode = #tpu.pipeline_mode<synchronous>, transform_indices = @transform_4, window_bounds = array<i64: 1, 10>}, {pipeline_mode = #tpu.pipeline_mode<synchronous>, transform_indices = @transform_5, window_bounds = array<i64: 4, 8>}, {pipeline_mode = #tpu.pipeline_mode<synchronous>, transform_indices = @transform_6, window_bounds = array<i64: 3, 9, 10, 16>}, {pipeline_mode = #tpu.pipeline_mode<synchronous>, transform_indices = @transform_7, window_bounds = array<i64: 4, 104>}, {pipeline_mode = #tpu.pipeline_mode<synchronous>, transform_indices = @transform_8, window_bounds = array<i64: 1, 128>}, {transform_indices = @transform_9, window_bounds = array<i64: 128, 128>}]} {
    %cst = arith.constant 0.000000e+00 : f32
    %0 = vector.broadcast %cst : f32 to vector<4x10x10x4xf32>
    %c0 = arith.constant 0 : index
    %c0_0 = arith.constant 0 : index
    %c0_1 = arith.constant 0 : index
    %c0_2 = arith.constant 0 : index
    %1 = vector.load %arg12[%c0, %c0_0, %c0_1, %c0_2] : memref<4x10x10x4xf32, #tpu.memory_space<vmem>>, vector<4x10x10x4xf32>
    tpu.vector_store %arg12[%c0, %c0_0, %c0_1, %c0_2], %0 {strides = array<i32>} : memref<4x10x10x4xf32, #tpu.memory_space<vmem>>, vector<4x10x10x4xf32>,
    %cst_3 = arith.constant 0.000000e+00 : f32
    %2 = vector.broadcast %cst_3 : f32 to vector<4x10x10x10xf32>
    %c0_4 = arith.constant 0 : index
    %c0_5 = arith.constant 0 : index
    %c0_6 = arith.constant 0 : index
    %c0_7 = arith.constant 0 : index
    %3 = vector.load %arg13[%c0_4, %c0_5, %c0_6, %c0_7] : memref<4x10x10x10xf32, #tpu.memory_space<vmem>>, vector<4x10x10x10xf32>
    tpu.vector_store %arg13[%c0_4, %c0_5, %c0_6, %c0_7], %2 {strides = array<i32>} : memref<4x10x10x10xf32, #tpu.memory_space<vmem>>, vector<4x10x10x10xf32>,
    %cst_8 = arith.constant 0.000000e+00 : f32
    %4 = vector.broadcast %cst_8 : f32 to vector<128x16xf32>
    %c0_9 = arith.constant 0 : index
    %c0_10 = arith.constant 0 : index
    %5 = vector.load %arg14[%c0_9, %c0_10] : memref<128x16xf32, #tpu.memory_space<vmem>>, vector<128x16xf32>
    tpu.vector_store %arg14[%c0_9, %c0_10], %4 {strides = array<i32>} : memref<128x16xf32, #tpu.memory_space<vmem>>, vector<128x16xf32>,
    %c0_11 = arith.constant 0 : index
    %c0_12 = arith.constant 0 : index
    %c0_13 = arith.constant 0 : index
    %c0_14 = arith.constant 0 : index
    %c0_15 = arith.constant 0 : index
    %6 = vector.load %arg3[%c0_11, %c0_12, %c0_13, %c0_14, %c0_15] : memref<1x2x8x8x4xf32, #tpu.memory_space<vmem>>, vector<1x2x8x8x4xf32>
    %7 = vector.shape_cast %6 : vector<1x2x8x8x4xf32> to vector<2x8x8x4xf32>
    %8 = vector.shape_cast %7 : vector<2x8x8x4xf32> to vector<128x4xf32>
    %c0_16 = arith.constant 0 : index
    %c0_17 = arith.constant 0 : index
    %c0_18 = arith.constant 0 : index
    %c0_19 = arith.constant 0 : index
    %c0_20 = arith.constant 0 : index
    %9 = vector.load %arg3[%c0_16, %c0_17, %c0_18, %c0_19, %c0_20] : memref<1x2x8x8x4xf32, #tpu.memory_space<vmem>>, vector<1x2x8x8x4xf32>
    %10 = vector.shape_cast %9 : vector<1x2x8x8x4xf32> to vector<2x8x8x4xf32>
    %c1 = arith.constant 1 : index
    %c1_21 = arith.constant 1 : index
    %c1_22 = arith.constant 1 : index
    %c0_23 = arith.constant 0 : index
    %11 = vector.load %arg12[%c1, %c1_21, %c1_22, %c0_23] : memref<4x10x10x4xf32, #tpu.memory_space<vmem>>, vector<2x8x8x4xf32>
    tpu.vector_store %arg12[%c1, %c1_21, %c1_22, %c0_23], %10 {strides = array<i32>} : memref<4x10x10x4xf32, #tpu.memory_space<vmem>>, vector<2x8x8x4xf32>,
    %c0_24 = arith.constant 0 : index
    %c0_25 = arith.constant 0 : index
    %12 = vector.load %arg5[%c0_24, %c0_25] : memref<4x10xf32, #tpu.memory_space<vmem>>, vector<4x10xf32>
    %cst_26 = arith.constant dense<0.000000e+00> : vector<128x10xf32>
    %13 = tpu.matmul %8, %12, %cst_26 {dimension_numbers = #tpu.dot_dimension_numbers<[1], [0], [0], [1], [0, 0, 1, 1], [], []>} : vector<128x4xf32>, vector<4x10xf32>, vector<128x10xf32> -> vector<128x10xf32>
    %c0_27 = arith.constant 0 : index
    %c0_28 = arith.constant 0 : index
    %14 = vector.load %arg6[%c0_27, %c0_28] : memref<1x10xf32, #tpu.memory_space<vmem>>, vector<1x10xf32>
    %15 = vector.broadcast %14 : vector<1x10xf32> to vector<128x10xf32>
    %16 = arith.addf %13, %15 : vector<128x10xf32>
    %cst_29 = arith.constant 0.000000e+00 : f32
    %17 = vector.broadcast %cst_29 : f32 to vector<128x10xf32>
    %18 = arith.maximumf %16, %17 : vector<128x10xf32>
    %19 = vector.shape_cast %18 : vector<128x10xf32> to vector<2x8x8x10xf32>
    %c1_30 = arith.constant 1 : index
    %c1_31 = arith.constant 1 : index
    %c1_32 = arith.constant 1 : index
    %c0_33 = arith.constant 0 : index
    %20 = vector.load %arg13[%c1_30, %c1_31, %c1_32, %c0_33] : memref<4x10x10x10xf32, #tpu.memory_space<vmem>>, vector<2x8x8x10xf32>
    tpu.vector_store %arg13[%c1_30, %c1_31, %c1_32, %c0_33], %19 {strides = array<i32>} : memref<4x10x10x10xf32, #tpu.memory_space<vmem>>, vector<2x8x8x10xf32>,
    %c0_i32 = arith.constant 0 : i32
    %21 = arith.cmpi sgt, %arg1, %c0_i32 : i32
    %22 = arith.extui %21 : i1 to i32
    %c0_i32_34 = arith.constant 0 : i32
    %23 = arith.cmpi ne, %22, %c0_i32_34 : i32
    scf.if %23 {
      %c0_56 = arith.constant 0 : index
      %c1_57 = arith.constant 1 : index
      %c0_58 = arith.constant 0 : index
      %c0_59 = arith.constant 0 : index
      %c0_60 = arith.constant 0 : index
      %57 = vector.load %arg2[%c0_56, %c1_57, %c0_58, %c0_59, %c0_60] : memref<1x2x8x8x4xf32, #tpu.memory_space<vmem>>, vector<1x1x8x8x4xf32>
      %58 = vector.shape_cast %57 : vector<1x1x8x8x4xf32> to vector<8x8x4xf32>
      %c0_61 = arith.constant 0 : index
      %c1_62 = arith.constant 1 : index
      %c1_63 = arith.constant 1 : index
      %c0_64 = arith.constant 0 : index
      %59 = vector.load %arg12[%c0_61, %c1_62, %c1_63, %c0_64] : memref<4x10x10x4xf32, #tpu.memory_space<vmem>>, vector<1x8x8x4xf32>
      %60 = vector.shape_cast %59 : vector<1x8x8x4xf32> to vector<8x8x4xf32>
      %61 = vector.shape_cast %58 : vector<8x8x4xf32> to vector<1x8x8x4xf32>
      tpu.vector_store %arg12[%c0_61, %c1_62, %c1_63, %c0_64], %61 {strides = array<i32>} : memref<4x10x10x4xf32, #tpu.memory_space<vmem>>, vector<1x8x8x4xf32>,
      %62 = vector.shape_cast %58 : vector<8x8x4xf32> to vector<64x4xf32>
      %c0_65 = arith.constant 0 : index
      %c0_66 = arith.constant 0 : index
      %63 = vector.load %arg5[%c0_65, %c0_66] : memref<4x10xf32, #tpu.memory_space<vmem>>, vector<4x10xf32>
      %cst_67 = arith.constant dense<0.000000e+00> : vector<64x10xf32>
      %64 = tpu.matmul %62, %63, %cst_67 {dimension_numbers = #tpu.dot_dimension_numbers<[1], [0], [0], [1], [0, 0, 1, 1], [], []>} : vector<64x4xf32>, vector<4x10xf32>, vector<64x10xf32> -> vector<64x10xf32>
      %c0_68 = arith.constant 0 : index
      %c0_69 = arith.constant 0 : index
      %65 = vector.load %arg6[%c0_68, %c0_69] : memref<1x10xf32, #tpu.memory_space<vmem>>, vector<1x10xf32>
      %66 = vector.broadcast %65 : vector<1x10xf32> to vector<64x10xf32>
      %67 = arith.addf %64, %66 : vector<64x10xf32>
      %cst_70 = arith.constant 0.000000e+00 : f32
      %68 = vector.broadcast %cst_70 : f32 to vector<64x10xf32>
      %69 = arith.maximumf %67, %68 : vector<64x10xf32>
      %70 = vector.shape_cast %69 : vector<64x10xf32> to vector<8x8x10xf32>
      %c0_71 = arith.constant 0 : index
      %c1_72 = arith.constant 1 : index
      %c1_73 = arith.constant 1 : index
      %c0_74 = arith.constant 0 : index
      %71 = vector.load %arg13[%c0_71, %c1_72, %c1_73, %c0_74] : memref<4x10x10x10xf32, #tpu.memory_space<vmem>>, vector<1x8x8x10xf32>
      %72 = vector.shape_cast %71 : vector<1x8x8x10xf32> to vector<8x8x10xf32>
      %73 = vector.shape_cast %70 : vector<8x8x10xf32> to vector<1x8x8x10xf32>
      tpu.vector_store %arg13[%c0_71, %c1_72, %c1_73, %c0_74], %73 {strides = array<i32>} : memref<4x10x10x10xf32, #tpu.memory_space<vmem>>, vector<1x8x8x10xf32>,
    } else {
    }
    %c1_i32 = arith.constant 1 : i32
    %24 = arith.cmpi slt, %arg1, %c1_i32 : i32
    %25 = arith.extui %24 : i1 to i32
    %c0_i32_35 = arith.constant 0 : i32
    %26 = arith.cmpi ne, %25, %c0_i32_35 : i32
    scf.if %26 {
      %c0_56 = arith.constant 0 : index
      %c0_57 = arith.constant 0 : index
      %c0_58 = arith.constant 0 : index
      %c0_59 = arith.constant 0 : index
      %c0_60 = arith.constant 0 : index
      %57 = vector.load %arg4[%c0_56, %c0_57, %c0_58, %c0_59, %c0_60] : memref<1x2x8x8x4xf32, #tpu.memory_space<vmem>>, vector<1x1x8x8x4xf32>
      %58 = vector.shape_cast %57 : vector<1x1x8x8x4xf32> to vector<8x8x4xf32>
      %c3 = arith.constant 3 : index
      %c1_61 = arith.constant 1 : index
      %c1_62 = arith.constant 1 : index
      %c0_63 = arith.constant 0 : index
      %59 = vector.load %arg12[%c3, %c1_61, %c1_62, %c0_63] : memref<4x10x10x4xf32, #tpu.memory_space<vmem>>, vector<1x8x8x4xf32>
      %60 = vector.shape_cast %59 : vector<1x8x8x4xf32> to vector<8x8x4xf32>
      %61 = vector.shape_cast %58 : vector<8x8x4xf32> to vector<1x8x8x4xf32>
      tpu.vector_store %arg12[%c3, %c1_61, %c1_62, %c0_63], %61 {strides = array<i32>} : memref<4x10x10x4xf32, #tpu.memory_space<vmem>>, vector<1x8x8x4xf32>,
      %62 = vector.shape_cast %58 : vector<8x8x4xf32> to vector<64x4xf32>
      %c0_64 = arith.constant 0 : index
      %c0_65 = arith.constant 0 : index
      %63 = vector.load %arg5[%c0_64, %c0_65] : memref<4x10xf32, #tpu.memory_space<vmem>>, vector<4x10xf32>
      %cst_66 = arith.constant dense<0.000000e+00> : vector<64x10xf32>
      %64 = tpu.matmul %62, %63, %cst_66 {dimension_numbers = #tpu.dot_dimension_numbers<[1], [0], [0], [1], [0, 0, 1, 1], [], []>} : vector<64x4xf32>, vector<4x10xf32>, vector<64x10xf32> -> vector<64x10xf32>
      %c0_67 = arith.constant 0 : index
      %c0_68 = arith.constant 0 : index
      %65 = vector.load %arg6[%c0_67, %c0_68] : memref<1x10xf32, #tpu.memory_space<vmem>>, vector<1x10xf32>
      %66 = vector.broadcast %65 : vector<1x10xf32> to vector<64x10xf32>
      %67 = arith.addf %64, %66 : vector<64x10xf32>
      %cst_69 = arith.constant 0.000000e+00 : f32
      %68 = vector.broadcast %cst_69 : f32 to vector<64x10xf32>
      %69 = arith.maximumf %67, %68 : vector<64x10xf32>
      %70 = vector.shape_cast %69 : vector<64x10xf32> to vector<8x8x10xf32>
      %c3_70 = arith.constant 3 : index
      %c1_71 = arith.constant 1 : index
      %c1_72 = arith.constant 1 : index
      %c0_73 = arith.constant 0 : index
      %71 = vector.load %arg13[%c3_70, %c1_71, %c1_72, %c0_73] : memref<4x10x10x10xf32, #tpu.memory_space<vmem>>, vector<1x8x8x10xf32>
      %72 = vector.shape_cast %71 : vector<1x8x8x10xf32> to vector<8x8x10xf32>
      %73 = vector.shape_cast %70 : vector<8x8x10xf32> to vector<1x8x8x10xf32>
      tpu.vector_store %arg13[%c3_70, %c1_71, %c1_72, %c0_73], %73 {strides = array<i32>} : memref<4x10x10x10xf32, #tpu.memory_space<vmem>>, vector<1x8x8x10xf32>,
    } else {
    }
    %c0_36 = arith.constant 0 : index
    %c0_37 = arith.constant 0 : index
    %27 = vector.load %arg7[%c0_36, %c0_37] : memref<4x8xf32, #tpu.memory_space<vmem>>, vector<4x8xf32>
    %cst_38 = arith.constant dense<0.000000e+00> : vector<128x8xf32>
    %28 = tpu.matmul %8, %27, %cst_38 {dimension_numbers = #tpu.dot_dimension_numbers<[1], [0], [0], [1], [0, 0, 1, 1], [], []>} : vector<128x4xf32>, vector<4x8xf32>, vector<128x8xf32> -> vector<128x8xf32>
    %c0_i32_39 = arith.constant 0 : i32
    %c3_i32 = arith.constant 3 : i32
    %29 = arith.addi %c0_i32_39, %c3_i32 : i32
    %c1_i32_40 = arith.constant 1 : i32
    scf.for %arg15 = %c0_i32_39 to %29 step %c1_i32_40  : i32 {
      %c1_i32_56 = arith.constant 1 : i32
      %57 = arith.muli %arg15, %c1_i32_56 : i32
      %c0_i32_57 = arith.constant 0 : i32
      %58 = arith.addi %c0_i32_57, %57 : i32
      %59 = arith.index_cast %58 : i32 to index
      %c0_58 = arith.constant 0 : index
      %c0_59 = arith.constant 0 : index
      %c0_60 = arith.constant 0 : index
      %60 = vector.load %arg8[%59, %c0_58, %c0_59, %c0_60] : memref<3x9x10x16xf32, #tpu.memory_space<vmem>>, vector<1x9x10x16xf32>
      %61 = vector.shape_cast %60 : vector<1x9x10x16xf32> to vector<9x10x16xf32>
      %62 = arith.index_cast %58 : i32 to index
      %c0_61 = arith.constant 0 : index
      %c0_62 = arith.constant 0 : index
      %c0_63 = arith.constant 0 : index
      %63 = vector.load %arg13[%62, %c0_61, %c0_62, %c0_63] : memref<4x10x10x10xf32, #tpu.memory_space<vmem>>, vector<2x8x8x10xf32>
      %64 = vector.shape_cast %63 : vector<2x8x8x10xf32> to vector<128x10xf32>
      %c0_64 = arith.constant 0 : index
      %c0_65 = arith.constant 0 : index
      %65 = vector.load %arg14[%c0_64, %c0_65] : memref<128x16xf32, #tpu.memory_space<vmem>>, vector<128x16xf32>
      %66 = vector.extract_strided_slice %61 {offsets = [0, 0, 0], sizes = [1, 10, 16], strides = [1, 1, 1]} : vector<9x10x16xf32> to vector<1x10x16xf32>
      %67 = vector.shape_cast %66 : vector<1x10x16xf32> to vector<10x16xf32>
      %cst_66 = arith.constant dense<0.000000e+00> : vector<128x16xf32>
      %68 = tpu.matmul %64, %67, %cst_66 {dimension_numbers = #tpu.dot_dimension_numbers<[1], [0], [0], [1], [0, 0, 1, 1], [], []>} : vector<128x10xf32>, vector<10x16xf32>, vector<128x16xf32> -> vector<128x16xf32>
      %69 = arith.addf %65, %68 : vector<128x16xf32>
      %c0_67 = arith.constant 0 : index
      %c0_68 = arith.constant 0 : index
      %70 = vector.load %arg14[%c0_67, %c0_68] : memref<128x16xf32, #tpu.memory_space<vmem>>, vector<128x16xf32>
      tpu.vector_store %arg14[%c0_67, %c0_68], %69 {strides = array<i32>} : memref<128x16xf32, #tpu.memory_space<vmem>>, vector<128x16xf32>,
      %71 = arith.index_cast %58 : i32 to index
      %c0_69 = arith.constant 0 : index
      %c1_70 = arith.constant 1 : index
      %c0_71 = arith.constant 0 : index
      %72 = vector.load %arg13[%71, %c0_69, %c1_70, %c0_71] : memref<4x10x10x10xf32, #tpu.memory_space<vmem>>, vector<2x8x8x10xf32>
      %73 = vector.shape_cast %72 : vector<2x8x8x10xf32> to vector<128x10xf32>
      %c0_72 = arith.constant 0 : index
      %c0_73 = arith.constant 0 : index
      %74 = vector.load %arg14[%c0_72, %c0_73] : memref<128x16xf32, #tpu.memory_space<vmem>>, vector<128x16xf32>
      %75 = vector.extract_strided_slice %61 {offsets = [1, 0, 0], sizes = [1, 10, 16], strides = [1, 1, 1]} : vector<9x10x16xf32> to vector<1x10x16xf32>
      %76 = vector.shape_cast %75 : vector<1x10x16xf32> to vector<10x16xf32>
      %cst_74 = arith.constant dense<0.000000e+00> : vector<128x16xf32>
      %77 = tpu.matmul %73, %76, %cst_74 {dimension_numbers = #tpu.dot_dimension_numbers<[1], [0], [0], [1], [0, 0, 1, 1], [], []>} : vector<128x10xf32>, vector<10x16xf32>, vector<128x16xf32> -> vector<128x16xf32>
      %78 = arith.addf %74, %77 : vector<128x16xf32>
      %c0_75 = arith.constant 0 : index
      %c0_76 = arith.constant 0 : index
      %79 = vector.load %arg14[%c0_75, %c0_76] : memref<128x16xf32, #tpu.memory_space<vmem>>, vector<128x16xf32>
      tpu.vector_store %arg14[%c0_75, %c0_76], %78 {strides = array<i32>} : memref<128x16xf32, #tpu.memory_space<vmem>>, vector<128x16xf32>,
      %80 = arith.index_cast %58 : i32 to index
      %c0_77 = arith.constant 0 : index
      %c2 = arith.constant 2 : index
      %c0_78 = arith.constant 0 : index
      %81 = vector.load %arg13[%80, %c0_77, %c2, %c0_78] : memref<4x10x10x10xf32, #tpu.memory_space<vmem>>, vector<2x8x8x10xf32>
      %82 = vector.shape_cast %81 : vector<2x8x8x10xf32> to vector<128x10xf32>
      %c0_79 = arith.constant 0 : index
      %c0_80 = arith.constant 0 : index
      %83 = vector.load %arg14[%c0_79, %c0_80] : memref<128x16xf32, #tpu.memory_space<vmem>>, vector<128x16xf32>
      %84 = vector.extract_strided_slice %61 {offsets = [2, 0, 0], sizes = [1, 10, 16], strides = [1, 1, 1]} : vector<9x10x16xf32> to vector<1x10x16xf32>
      %85 = vector.shape_cast %84 : vector<1x10x16xf32> to vector<10x16xf32>
      %cst_81 = arith.constant dense<0.000000e+00> : vector<128x16xf32>
      %86 = tpu.matmul %82, %85, %cst_81 {dimension_numbers = #tpu.dot_dimension_numbers<[1], [0], [0], [1], [0, 0, 1, 1], [], []>} : vector<128x10xf32>, vector<10x16xf32>, vector<128x16xf32> -> vector<128x16xf32>
      %87 = arith.addf %83, %86 : vector<128x16xf32>
      %c0_82 = arith.constant 0 : index
      %c0_83 = arith.constant 0 : index
      %88 = vector.load %arg14[%c0_82, %c0_83] : memref<128x16xf32, #tpu.memory_space<vmem>>, vector<128x16xf32>
      tpu.vector_store %arg14[%c0_82, %c0_83], %87 {strides = array<i32>} : memref<128x16xf32, #tpu.memory_space<vmem>>, vector<128x16xf32>,
      %89 = arith.index_cast %58 : i32 to index
      %c1_84 = arith.constant 1 : index
      %c0_85 = arith.constant 0 : index
      %c0_86 = arith.constant 0 : index
      %90 = vector.load %arg13[%89, %c1_84, %c0_85, %c0_86] : memref<4x10x10x10xf32, #tpu.memory_space<vmem>>, vector<2x8x8x10xf32>
      %91 = vector.shape_cast %90 : vector<2x8x8x10xf32> to vector<128x10xf32>
      %c0_87 = arith.constant 0 : index
      %c0_88 = arith.constant 0 : index
      %92 = vector.load %arg14[%c0_87, %c0_88] : memref<128x16xf32, #tpu.memory_space<vmem>>, vector<128x16xf32>
      %93 = vector.extract_strided_slice %61 {offsets = [3, 0, 0], sizes = [1, 10, 16], strides = [1, 1, 1]} : vector<9x10x16xf32> to vector<1x10x16xf32>
      %94 = vector.shape_cast %93 : vector<1x10x16xf32> to vector<10x16xf32>
      %cst_89 = arith.constant dense<0.000000e+00> : vector<128x16xf32>
      %95 = tpu.matmul %91, %94, %cst_89 {dimension_numbers = #tpu.dot_dimension_numbers<[1], [0], [0], [1], [0, 0, 1, 1], [], []>} : vector<128x10xf32>, vector<10x16xf32>, vector<128x16xf32> -> vector<128x16xf32>
      %96 = arith.addf %92, %95 : vector<128x16xf32>
      %c0_90 = arith.constant 0 : index
      %c0_91 = arith.constant 0 : index
      %97 = vector.load %arg14[%c0_90, %c0_91] : memref<128x16xf32, #tpu.memory_space<vmem>>, vector<128x16xf32>
      tpu.vector_store %arg14[%c0_90, %c0_91], %96 {strides = array<i32>} : memref<128x16xf32, #tpu.memory_space<vmem>>, vector<128x16xf32>,
      %98 = arith.index_cast %58 : i32 to index
      %c1_92 = arith.constant 1 : index
      %c1_93 = arith.constant 1 : index
      %c0_94 = arith.constant 0 : index
      %99 = vector.load %arg13[%98, %c1_92, %c1_93, %c0_94] : memref<4x10x10x10xf32, #tpu.memory_space<vmem>>, vector<2x8x8x10xf32>
      %100 = vector.shape_cast %99 : vector<2x8x8x10xf32> to vector<128x10xf32>
      %c0_95 = arith.constant 0 : index
      %c0_96 = arith.constant 0 : index
      %101 = vector.load %arg14[%c0_95, %c0_96] : memref<128x16xf32, #tpu.memory_space<vmem>>, vector<128x16xf32>
      %102 = vector.extract_strided_slice %61 {offsets = [4, 0, 0], sizes = [1, 10, 16], strides = [1, 1, 1]} : vector<9x10x16xf32> to vector<1x10x16xf32>
      %103 = vector.shape_cast %102 : vector<1x10x16xf32> to vector<10x16xf32>
      %cst_97 = arith.constant dense<0.000000e+00> : vector<128x16xf32>
      %104 = tpu.matmul %100, %103, %cst_97 {dimension_numbers = #tpu.dot_dimension_numbers<[1], [0], [0], [1], [0, 0, 1, 1], [], []>} : vector<128x10xf32>, vector<10x16xf32>, vector<128x16xf32> -> vector<128x16xf32>
      %105 = arith.addf %101, %104 : vector<128x16xf32>
      %c0_98 = arith.constant 0 : index
      %c0_99 = arith.constant 0 : index
      %106 = vector.load %arg14[%c0_98, %c0_99] : memref<128x16xf32, #tpu.memory_space<vmem>>, vector<128x16xf32>
      tpu.vector_store %arg14[%c0_98, %c0_99], %105 {strides = array<i32>} : memref<128x16xf32, #tpu.memory_space<vmem>>, vector<128x16xf32>,
      %107 = arith.index_cast %58 : i32 to index
      %c1_100 = arith.constant 1 : index
      %c2_101 = arith.constant 2 : index
      %c0_102 = arith.constant 0 : index
      %108 = vector.load %arg13[%107, %c1_100, %c2_101, %c0_102] : memref<4x10x10x10xf32, #tpu.memory_space<vmem>>, vector<2x8x8x10xf32>
      %109 = vector.shape_cast %108 : vector<2x8x8x10xf32> to vector<128x10xf32>
      %c0_103 = arith.constant 0 : index
      %c0_104 = arith.constant 0 : index
      %110 = vector.load %arg14[%c0_103, %c0_104] : memref<128x16xf32, #tpu.memory_space<vmem>>, vector<128x16xf32>
      %111 = vector.extract_strided_slice %61 {offsets = [5, 0, 0], sizes = [1, 10, 16], strides = [1, 1, 1]} : vector<9x10x16xf32> to vector<1x10x16xf32>
      %112 = vector.shape_cast %111 : vector<1x10x16xf32> to vector<10x16xf32>
      %cst_105 = arith.constant dense<0.000000e+00> : vector<128x16xf32>
      %113 = tpu.matmul %109, %112, %cst_105 {dimension_numbers = #tpu.dot_dimension_numbers<[1], [0], [0], [1], [0, 0, 1, 1], [], []>} : vector<128x10xf32>, vector<10x16xf32>, vector<128x16xf32> -> vector<128x16xf32>
      %114 = arith.addf %110, %113 : vector<128x16xf32>
      %c0_106 = arith.constant 0 : index
      %c0_107 = arith.constant 0 : index
      %115 = vector.load %arg14[%c0_106, %c0_107] : memref<128x16xf32, #tpu.memory_space<vmem>>, vector<128x16xf32>
      tpu.vector_store %arg14[%c0_106, %c0_107], %114 {strides = array<i32>} : memref<128x16xf32, #tpu.memory_space<vmem>>, vector<128x16xf32>,
      %116 = arith.index_cast %58 : i32 to index
      %c2_108 = arith.constant 2 : index
      %c0_109 = arith.constant 0 : index
      %c0_110 = arith.constant 0 : index
      %117 = vector.load %arg13[%116, %c2_108, %c0_109, %c0_110] : memref<4x10x10x10xf32, #tpu.memory_space<vmem>>, vector<2x8x8x10xf32>
      %118 = vector.shape_cast %117 : vector<2x8x8x10xf32> to vector<128x10xf32>
      %c0_111 = arith.constant 0 : index
      %c0_112 = arith.constant 0 : index
      %119 = vector.load %arg14[%c0_111, %c0_112] : memref<128x16xf32, #tpu.memory_space<vmem>>, vector<128x16xf32>
      %120 = vector.extract_strided_slice %61 {offsets = [6, 0, 0], sizes = [1, 10, 16], strides = [1, 1, 1]} : vector<9x10x16xf32> to vector<1x10x16xf32>
      %121 = vector.shape_cast %120 : vector<1x10x16xf32> to vector<10x16xf32>
      %cst_113 = arith.constant dense<0.000000e+00> : vector<128x16xf32>
      %122 = tpu.matmul %118, %121, %cst_113 {dimension_numbers = #tpu.dot_dimension_numbers<[1], [0], [0], [1], [0, 0, 1, 1], [], []>} : vector<128x10xf32>, vector<10x16xf32>, vector<128x16xf32> -> vector<128x16xf32>
      %123 = arith.addf %119, %122 : vector<128x16xf32>
      %c0_114 = arith.constant 0 : index
      %c0_115 = arith.constant 0 : index
      %124 = vector.load %arg14[%c0_114, %c0_115] : memref<128x16xf32, #tpu.memory_space<vmem>>, vector<128x16xf32>
      tpu.vector_store %arg14[%c0_114, %c0_115], %123 {strides = array<i32>} : memref<128x16xf32, #tpu.memory_space<vmem>>, vector<128x16xf32>,
      %125 = arith.index_cast %58 : i32 to index
      %c2_116 = arith.constant 2 : index
      %c1_117 = arith.constant 1 : index
      %c0_118 = arith.constant 0 : index
      %126 = vector.load %arg13[%125, %c2_116, %c1_117, %c0_118] : memref<4x10x10x10xf32, #tpu.memory_space<vmem>>, vector<2x8x8x10xf32>
      %127 = vector.shape_cast %126 : vector<2x8x8x10xf32> to vector<128x10xf32>
      %c0_119 = arith.constant 0 : index
      %c0_120 = arith.constant 0 : index
      %128 = vector.load %arg14[%c0_119, %c0_120] : memref<128x16xf32, #tpu.memory_space<vmem>>, vector<128x16xf32>
      %129 = vector.extract_strided_slice %61 {offsets = [7, 0, 0], sizes = [1, 10, 16], strides = [1, 1, 1]} : vector<9x10x16xf32> to vector<1x10x16xf32>
      %130 = vector.shape_cast %129 : vector<1x10x16xf32> to vector<10x16xf32>
      %cst_121 = arith.constant dense<0.000000e+00> : vector<128x16xf32>
      %131 = tpu.matmul %127, %130, %cst_121 {dimension_numbers = #tpu.dot_dimension_numbers<[1], [0], [0], [1], [0, 0, 1, 1], [], []>} : vector<128x10xf32>, vector<10x16xf32>, vector<128x16xf32> -> vector<128x16xf32>
      %132 = arith.addf %128, %131 : vector<128x16xf32>
      %c0_122 = arith.constant 0 : index
      %c0_123 = arith.constant 0 : index
      %133 = vector.load %arg14[%c0_122, %c0_123] : memref<128x16xf32, #tpu.memory_space<vmem>>, vector<128x16xf32>
      tpu.vector_store %arg14[%c0_122, %c0_123], %132 {strides = array<i32>} : memref<128x16xf32, #tpu.memory_space<vmem>>, vector<128x16xf32>,
      %134 = arith.index_cast %58 : i32 to index
      %c2_124 = arith.constant 2 : index
      %c2_125 = arith.constant 2 : index
      %c0_126 = arith.constant 0 : index
      %135 = vector.load %arg13[%134, %c2_124, %c2_125, %c0_126] : memref<4x10x10x10xf32, #tpu.memory_space<vmem>>, vector<2x8x8x10xf32>
      %136 = vector.shape_cast %135 : vector<2x8x8x10xf32> to vector<128x10xf32>
      %c0_127 = arith.constant 0 : index
      %c0_128 = arith.constant 0 : index
      %137 = vector.load %arg14[%c0_127, %c0_128] : memref<128x16xf32, #tpu.memory_space<vmem>>, vector<128x16xf32>
      %138 = vector.extract_strided_slice %61 {offsets = [8, 0, 0], sizes = [1, 10, 16], strides = [1, 1, 1]} : vector<9x10x16xf32> to vector<1x10x16xf32>
      %139 = vector.shape_cast %138 : vector<1x10x16xf32> to vector<10x16xf32>
      %cst_129 = arith.constant dense<0.000000e+00> : vector<128x16xf32>
      %140 = tpu.matmul %136, %139, %cst_129 {dimension_numbers = #tpu.dot_dimension_numbers<[1], [0], [0], [1], [0, 0, 1, 1], [], []>} : vector<128x10xf32>, vector<10x16xf32>, vector<128x16xf32> -> vector<128x16xf32>
      %141 = arith.addf %137, %140 : vector<128x16xf32>
      %c0_130 = arith.constant 0 : index
      %c0_131 = arith.constant 0 : index
      %142 = vector.load %arg14[%c0_130, %c0_131] : memref<128x16xf32, #tpu.memory_space<vmem>>, vector<128x16xf32>
      tpu.vector_store %arg14[%c0_130, %c0_131], %141 {strides = array<i32>} : memref<128x16xf32, #tpu.memory_space<vmem>>, vector<128x16xf32>,
    }
    %c3_i32_41 = arith.constant 3 : i32
    %c0_42 = arith.constant 0 : index
    %c0_43 = arith.constant 0 : index
    %c0_44 = arith.constant 0 : index
    %c0_45 = arith.constant 0 : index
    %30 = vector.load %arg12[%c0_42, %c0_43, %c0_44, %c0_45] : memref<4x10x10x4xf32, #tpu.memory_space<vmem>>, vector<4x10x10x4xf32>
    %31 = vector.extract_strided_slice %30 {offsets = [0, 0, 0, 0], sizes = [4, 10, 8, 4], strides = [1, 1, 1, 1]} : vector<4x10x10x4xf32> to vector<4x10x8x4xf32>
    %32 = vector.extract_strided_slice %30 {offsets = [0, 0, 1, 0], sizes = [4, 10, 8, 4], strides = [1, 1, 1, 1]} : vector<4x10x10x4xf32> to vector<4x10x8x4xf32>
    %33 = arith.maximumf %31, %32 : vector<4x10x8x4xf32>
    %34 = vector.extract_strided_slice %30 {offsets = [0, 0, 2, 0], sizes = [4, 10, 8, 4], strides = [1, 1, 1, 1]} : vector<4x10x10x4xf32> to vector<4x10x8x4xf32>
    %35 = arith.maximumf %33, %34 : vector<4x10x8x4xf32>
    %36 = vector.extract_strided_slice %35 {offsets = [0, 0, 0, 0], sizes = [4, 8, 8, 4], strides = [1, 1, 1, 1]} : vector<4x10x8x4xf32> to vector<4x8x8x4xf32>
    %37 = vector.extract_strided_slice %35 {offsets = [0, 1, 0, 0], sizes = [4, 8, 8, 4], strides = [1, 1, 1, 1]} : vector<4x10x8x4xf32> to vector<4x8x8x4xf32>
    %38 = arith.maximumf %36, %37 : vector<4x8x8x4xf32>
    %39 = vector.extract_strided_slice %35 {offsets = [0, 2, 0, 0], sizes = [4, 8, 8, 4], strides = [1, 1, 1, 1]} : vector<4x10x8x4xf32> to vector<4x8x8x4xf32>
    %40 = arith.maximumf %38, %39 : vector<4x8x8x4xf32>
    %41 = vector.extract_strided_slice %40 {offsets = [0, 0, 0, 0], sizes = [2, 8, 8, 4], strides = [1, 1, 1, 1]} : vector<4x8x8x4xf32> to vector<2x8x8x4xf32>
    %42 = vector.extract_strided_slice %40 {offsets = [1, 0, 0, 0], sizes = [2, 8, 8, 4], strides = [1, 1, 1, 1]} : vector<4x8x8x4xf32> to vector<2x8x8x4xf32>
    %43 = arith.maximumf %41, %42 : vector<2x8x8x4xf32>
    %44 = vector.extract_strided_slice %40 {offsets = [2, 0, 0, 0], sizes = [2, 8, 8, 4], strides = [1, 1, 1, 1]} : vector<4x8x8x4xf32> to vector<2x8x8x4xf32>
    %45 = arith.maximumf %43, %44 : vector<2x8x8x4xf32>
    %46 = vector.shape_cast %45 : vector<2x8x8x4xf32> to vector<128x4xf32>
    %c0_46 = arith.constant 0 : index
    %c0_47 = arith.constant 0 : index
    %47 = vector.load %arg9[%c0_46, %c0_47] : memref<4x104xf32, #tpu.memory_space<vmem>>, vector<4x104xf32>
    %cst_48 = arith.constant dense<0.000000e+00> : vector<128x104xf32>
    %48 = tpu.matmul %46, %47, %cst_48 {dimension_numbers = #tpu.dot_dimension_numbers<[1], [0], [0], [1], [0, 0, 1, 1], [], []>} : vector<128x4xf32>, vector<4x104xf32>, vector<128x104xf32> -> vector<128x104xf32>
    %c0_49 = arith.constant 0 : index
    %c0_50 = arith.constant 0 : index
    %49 = vector.load %arg14[%c0_49, %c0_50] : memref<128x16xf32, #tpu.memory_space<vmem>>, vector<128x16xf32>
    %50 = tpu.concatenate %28, %49, %48 in 1 : vector<128x8xf32>, vector<128x16xf32>, vector<128x104xf32> -> vector<128x128xf32>
    %c0_51 = arith.constant 0 : index
    %c0_52 = arith.constant 0 : index
    %51 = vector.load %arg10[%c0_51, %c0_52] : memref<1x128xf32, #tpu.memory_space<vmem>>, vector<1x128xf32>
    %52 = vector.broadcast %51 : vector<1x128xf32> to vector<128x128xf32>
    %53 = arith.addf %50, %52 : vector<128x128xf32>
    %cst_53 = arith.constant 0.000000e+00 : f32
    %54 = vector.broadcast %cst_53 : f32 to vector<128x128xf32>
    %55 = arith.maximumf %53, %54 : vector<128x128xf32>
    %c0_54 = arith.constant 0 : index
    %c0_55 = arith.constant 0 : index
    %56 = vector.load %arg11[%c0_54, %c0_55] : memref<128x128xf32, #tpu.memory_space<vmem>>, vector<128x128xf32>
    tpu.vector_store %arg11[%c0_54, %c0_55], %55 {strides = array<i32>} : memref<128x128xf32, #tpu.memory_space<vmem>>, vector<128x128xf32>,
    return
  }
  func.func @transform_0(%arg0: i32, %arg1: i32) -> (i32, i32, i32, i32, i32) {
    %c1_i32 = arith.constant 1 : i32
    %0 = arith.subi %arg1, %c1_i32 : i32
    %c0_i32 = arith.constant 0 : i32
    %1 = arith.maxsi %0, %c0_i32 : i32
    %c0_i32_0 = arith.constant 0 : i32
    %c0_i32_1 = arith.constant 0 : i32
    %c0_i32_2 = arith.constant 0 : i32
    %c0_i32_3 = arith.constant 0 : i32
    return %arg0, %1, %c0_i32_0, %c0_i32_1, %c0_i32_2 : i32, i32, i32, i32, i32
  }
  func.func @transform_1(%arg0: i32, %arg1: i32) -> (i32, i32, i32, i32, i32) {
    %c0_i32 = arith.constant 0 : i32
    %c0_i32_0 = arith.constant 0 : i32
    %c0_i32_1 = arith.constant 0 : i32
    %c0_i32_2 = arith.constant 0 : i32
    return %arg0, %arg1, %c0_i32, %c0_i32_0, %c0_i32_1 : i32, i32, i32, i32, i32
  }
  func.func @transform_2(%arg0: i32, %arg1: i32) -> (i32, i32, i32, i32, i32) {
    %c1_i32 = arith.constant 1 : i32
    %0 = arith.addi %arg1, %c1_i32 : i32
    %c1_i32_0 = arith.constant 1 : i32
    %1 = arith.minsi %0, %c1_i32_0 : i32
    %c0_i32 = arith.constant 0 : i32
    %c0_i32_1 = arith.constant 0 : i32
    %c0_i32_2 = arith.constant 0 : i32
    %c0_i32_3 = arith.constant 0 : i32
    return %arg0, %1, %c0_i32, %c0_i32_1, %c0_i32_2 : i32, i32, i32, i32, i32
  }
  func.func @transform_3(%arg0: i32, %arg1: i32) -> (i32, i32) {
    %c0_i32 = arith.constant 0 : i32
    %c0_i32_0 = arith.constant 0 : i32
    %c0_i32_1 = arith.constant 0 : i32
    return %c0_i32, %c0_i32_0 : i32, i32
  }
  func.func @transform_4(%arg0: i32, %arg1: i32) -> (i32, i32) {
    %c0_i32 = arith.constant 0 : i32
    %c0_i32_0 = arith.constant 0 : i32
    %c0_i32_1 = arith.constant 0 : i32
    return %c0_i32, %c0_i32_0 : i32, i32
  }
  func.func @transform_5(%arg0: i32, %arg1: i32) -> (i32, i32) {
    %c0_i32 = arith.constant 0 : i32
    %c0_i32_0 = arith.constant 0 : i32
    %c0_i32_1 = arith.constant 0 : i32
    return %c0_i32, %c0_i32_0 : i32, i32
  }
  func.func @transform_6(%arg0: i32, %arg1: i32) -> (i32, i32, i32, i32) {
    %c0_i32 = arith.constant 0 : i32
    %c0_i32_0 = arith.constant 0 : i32
    %c0_i32_1 = arith.constant 0 : i32
    %c0_i32_2 = arith.constant 0 : i32
    %c0_i32_3 = arith.constant 0 : i32
    return %c0_i32, %c0_i32_0, %c0_i32_1, %c0_i32_2 : i32, i32, i32, i32
  }
  func.func @transform_7(%arg0: i32, %arg1: i32) -> (i32, i32) {
    %c0_i32 = arith.constant 0 : i32
    %c0_i32_0 = arith.constant 0 : i32
    %c0_i32_1 = arith.constant 0 : i32
    return %c0_i32, %c0_i32_0 : i32, i32
  }
  func.func @transform_8(%arg0: i32, %arg1: i32) -> (i32, i32) {
    %c0_i32 = arith.constant 0 : i32
    %c0_i32_0 = arith.constant 0 : i32
    %c0_i32_1 = arith.constant 0 : i32
    return %c0_i32, %c0_i32_0 : i32, i32
  }
  func.func @transform_9(%arg0: i32, %arg1: i32) -> (i32, i32) {
    %c2_i32 = arith.constant 2 : i32
    %0 = arith.muli %arg0, %c2_i32 : i32
    %1 = arith.addi %0, %arg1 : i32
    %c0_i32 = arith.constant 0 : i32
    %c0_i32_0 = arith.constant 0 : i32
    return %1, %c0_i32 : i32, i32
  }
}

</mosaic_0001>

<llo_original>
// kernel: inception_forward.1
$region0: #{inception_forward.1}
  #allocation0 [shape = 'u32[]', space=smem, size = 0x4, offset = 0x4, fixed_abs, tag = 'smem constant byte address 0x4 - core index']
  #allocation1 [shape = 'u32[144,128]{1,0:T(1,128)}', space=vmem, size = 0x12000, scoped, tag = 'internal scratch']
  #allocation2 [shape = 'f32[4,10,10,4]{3,2,1,0:T(8,128)}', space=vmem, size = 0x50000, scoped, tag = 'scratch operand']
  #allocation3 [shape = 'f32[4,10,10,10]{3,2,1,0:T(8,128)}', space=vmem, size = 0x50000, scoped, tag = 'scratch operand']
  #allocation4 [shape = 'f32[128,16]{1,0:T(8,128)}', space=vmem, size = 0x10000, scoped, tag = 'scratch operand']
  %s0 = inlined_call_operand.vmem [shape: f32[2,4,8,8,4], index: 0, kind: input, shape index: {}, may-alias: {0,1,2}]
  %s1 = inlined_call_operand.vmem [shape: f32[2,4,8,8,4], index: 1, kind: input, shape index: {}, may-alias: {0,1,2}]
  %s2 = inlined_call_operand.vmem [shape: f32[2,4,8,8,4], index: 2, kind: input, shape index: {}, may-alias: {0,1,2}]
  %s3 = inlined_call_operand.vmem [shape: f32[4,10], index: 3, kind: input, shape index: {}]
  %s4 = inlined_call_operand.vmem [shape: f32[1,10], index: 4, kind: input, shape index: {}]
  %s5 = inlined_call_operand.vmem [shape: f32[4,8], index: 5, kind: input, shape index: {}]
  %s6 = inlined_call_operand.vmem [shape: f32[3,9,10,16], index: 6, kind: input, shape index: {}]
  %s7 = inlined_call_operand.vmem [shape: f32[4,104], index: 7, kind: input, shape index: {}]
  %s8 = inlined_call_operand.vmem [shape: f32[1,128], index: 8, kind: input, shape index: {}]
  %s9 = inlined_call_operand.hbm [shape: f32[512,128], index: 9, kind: output, shape index: {}]
  %s10 = sld [smem:[#allocation0]]
  $region84: #{inception_forward.1} parent=0
    _
  %s12 = ssub.s32 1, %s10
  %s13 = scalar_select 0, %s12, %s10
  $region1: #{inception_forward.1} parent=0
    #allocation5 [shape = 'u8[131072]{0}', space=vmem, size = 0x20000, scoped, tag = 'output window, operand 0']
    #allocation6 [shape = 's32[2]{0}', space=sflag, size = 0x8, scoped, tag = 'scoped memory for inception_forward.1']
    %14 = vsyncpa [#allocation6], 0
    %s15 = scalar_lea.sflag [#allocation6], 1
    %16 = vsyncpa %s15, 0
    loop: start=0, step=1, limit=6
    $region2: #{inception_forward.1} parent=1 // loop_pre_header
      _
    $region3: #{inception_forward.1} parent=1 // loop_header
      %s18 = sphi 0, %s22
      %p19 = scmp.ge.s32.totalorder %s18, 6
      %s25 = sphi 0, %s37
      %s26 = sphi 0, %s33
      %s27 = sphi 0, %s25
      %s28 = sphi 0, %s26
      %s29 = sphi 0, %s27
      %s30 = sphi 0, %s28
      %s48 = sphi 0, %s50
      %s51 = sphi 0, %s48
      %s52 = sphi 0, %s51
      %s68 = sphi 0, %s52
      %s76 = sphi 0, %s78
      %s79 = sphi 0, %s76
      %s80 = sphi 0, %s79
      %s96 = sphi 0, %s80
      %s110 = sphi 0, %s112
      %s113 = sphi 0, %s110
      %s114 = sphi 0, %s113
      %s130 = sphi 0, %s114
      %s134 = sphi 0, %s134
      %s136 = sphi 0, %s134
      %s137 = sphi 0, %s136
      %s151 = sphi 0, %s137
      %s155 = sphi 0, %s155
      %s157 = sphi 0, %s155
      %s158 = sphi 0, %s157
      %s172 = sphi 0, %s158
      %s176 = sphi 0, %s176
      %s178 = sphi 0, %s176
      %s179 = sphi 0, %s178
      %s193 = sphi 0, %s179
      %s197 = sphi 0, %s197
      %s199 = sphi 0, %s197
      %s200 = sphi 0, %s199
      %s214 = sphi 0, %s200
      %s218 = sphi 0, %s218
      %s220 = sphi 0, %s218
      %s221 = sphi 0, %s220
      %s235 = sphi 0, %s221
      %s239 = sphi 0, %s239
      %s241 = sphi 0, %s239
      %s242 = sphi 0, %s241
      %s256 = sphi 0, %s242
      %s266 = sphi 0, %s268
      %s269 = sphi 0, %s266
      %s270 = sphi 0, %s269
      %s286 = sphi 0, %s270
    $region4: #{inception_forward.1} parent=1 // loop_header_branch
      %21 = sbr.rel (%p19) target = $region8
    $region5: #{inception_forward.1} parent=1 // loop_body
      %s23 = ssub.s32 %s18, 1
      %s24 = ssub.s32 %s18, 2
      %s31 = sadd.s32 1, %s26
      %p32 = scmp.ge.s32.totalorder %s31, 2
      %s33 = scalar_select %p32, 0, %s31
      %s34 = sadd.s32 1, %s25
      %s35 = scalar_select %p32, %s34, %s25
      %p36 = scmp.ge.s32.totalorder %s35, 2
      %s37 = scalar_select %p36, 0, %s35
      %s38 = ssub.s32 %s26, 1
      %p39 = scmp.gt.s32.totalorder %s38, 0
      %s40 = scalar_select %p39, %s38, 0
      %s41 = ssub.s32 %s33, 1
      %p42 = scmp.gt.s32.totalorder %s41, 0
      %s43 = scalar_select %p42, %s41, 0
      %s44 = ssub.s32 %s25, %s37
      %s45 = ssub.s32 %s40, %s43
      %s46 = sor.u32 %s44, %s45
      %p47 = scmp.eq.s32.totalorder %s46, 0
      %s49 = sadd.s32 %s48, 1
      %s50 = scalar_select %p47, %s48, %s49
      %p53 = pneg %p47
      %p54 = scmp.eq.s32.totalorder %s18, 3
      %p55 = por %p53, %p54
      %p56 = scmp.ne.s32.totalorder %s48, %s51
      %p57 = scmp.eq.s32.totalorder %s18, 0
      %p58 = por %p56, %p57
      %p59 = scmp.ne.s32.totalorder %s48, %s51
      %p60 = scmp.eq.s32.totalorder %s23, 3
      %p61 = por %p59, %p60
      %p62 = scmp.ne.s32.totalorder %s51, %s52
      %p63 = scmp.eq.s32.totalorder %s23, 0
      %p64 = por %p62, %p63
      %p65 = scmp.ne.s32.totalorder %s51, %s52
      %p66 = scmp.eq.s32.totalorder %s24, 3
      %p67 = por %p65, %p66
      %p69 = scmp.ne.s32.totalorder %s52, %s68
      %p70 = scmp.eq.s32.totalorder %s24, 0
      %p71 = por %p69, %p70
      %s72 = ssub.s32 %s25, %s37
      %s73 = ssub.s32 %s26, %s33
      %s74 = sor.u32 %s72, %s73
      %p75 = scmp.eq.s32.totalorder %s74, 0
      %s77 = sadd.s32 %s76, 1
      %s78 = scalar_select %p75, %s76, %s77
      %p81 = pneg %p75
      %p82 = scmp.eq.s32.totalorder %s18, 3
      %p83 = por %p81, %p82
      %p84 = scmp.ne.s32.totalorder %s76, %s79
      %p85 = scmp.eq.s32.totalorder %s18, 0
      %p86 = por %p84, %p85
      %p87 = scmp.ne.s32.totalorder %s76, %s79
      %p88 = scmp.eq.s32.totalorder %s23, 3
      %p89 = por %p87, %p88
      %p90 = scmp.ne.s32.totalorder %s79, %s80
      %p91 = scmp.eq.s32.totalorder %s23, 0
      %p92 = por %p90, %p91
      %p93 = scmp.ne.s32.totalorder %s79, %s80
      %p94 = scmp.eq.s32.totalorder %s24, 3
      %p95 = por %p93, %p94
      %p97 = scmp.ne.s32.totalorder %s80, %s96
      %p98 = scmp.eq.s32.totalorder %s24, 0
      %p99 = por %p97, %p98
      %s100 = sadd.s32 %s26, 1
      %p101 = scmp.lt.s32.totalorder %s100, 1
      %s102 = scalar_select %p101, %s100, 1
      %s103 = sadd.s32 %s33, 1
      %p104 = scmp.lt.s32.totalorder %s103, 1
      %s105 = scalar_select %p104, %s103, 1
      %s106 = ssub.s32 %s25, %s37
      %s107 = ssub.s32 %s102, %s105
      %s108 = sor.u32 %s106, %s107
      %p109 = scmp.eq.s32.totalorder %s108, 0
      %s111 = sadd.s32 %s110, 1
      %s112 = scalar_select %p109, %s110, %s111
      %p115 = pneg %p109
      %p116 = scmp.eq.s32.totalorder %s18, 3
      %p117 = por %p115, %p116
      %p118 = scmp.ne.s32.totalorder %s110, %s113
      %p119 = scmp.eq.s32.totalorder %s18, 0
      %p120 = por %p118, %p119
      %p121 = scmp.ne.s32.totalorder %s110, %s113
      %p122 = scmp.eq.s32.totalorder %s23, 3
      %p123 = por %p121, %p122
      %p124 = scmp.ne.s32.totalorder %s113, %s114
      %p125 = scmp.eq.s32.totalorder %s23, 0
      %p126 = por %p124, %p125
      %p127 = scmp.ne.s32.totalorder %s113, %s114
      %p128 = scmp.eq.s32.totalorder %s24, 3
      %p129 = por %p127, %p128
      %p131 = scmp.ne.s32.totalorder %s114, %s130
      %p132 = scmp.eq.s32.totalorder %s24, 0
      %p133 = por %p131, %p132
      %s135 = sadd.s32 %s134, 1
      %p138 = scmp.eq.s32.totalorder %s18, 3
      %p139 = scmp.ne.s32.totalorder %s134, %s136
      %p140 = scmp.eq.s32.totalorder %s18, 0
      %p141 = por %p139, %p140
      %p142 = scmp.ne.s32.totalorder %s134, %s136
      %p143 = scmp.eq.s32.totalorder %s23, 3
      %p144 = por %p142, %p143
      %p145 = scmp.ne.s32.totalorder %s136, %s137
      %p146 = scmp.eq.s32.totalorder %s23, 0
      %p147 = por %p145, %p146
      %p148 = scmp.ne.s32.totalorder %s136, %s137
      %p149 = scmp.eq.s32.totalorder %s24, 3
      %p150 = por %p148, %p149
      %p152 = scmp.ne.s32.totalorder %s137, %s151
      %p153 = scmp.eq.s32.totalorder %s24, 0
      %p154 = por %p152, %p153
      %s156 = sadd.s32 %s155, 1
      %p159 = scmp.eq.s32.totalorder %s18, 3
      %p160 = scmp.ne.s32.totalorder %s155, %s157
      %p161 = scmp.eq.s32.totalorder %s18, 0
      %p162 = por %p160, %p161
      %p163 = scmp.ne.s32.totalorder %s155, %s157
      %p164 = scmp.eq.s32.totalorder %s23, 3
      %p165 = por %p163, %p164
      %p166 = scmp.ne.s32.totalorder %s157, %s158
      %p167 = scmp.eq.s32.totalorder %s23, 0
      %p168 = por %p166, %p167
      %p169 = scmp.ne.s32.totalorder %s157, %s158
      %p170 = scmp.eq.s32.totalorder %s24, 3
      %p171 = por %p169, %p170
      %p173 = scmp.ne.s32.totalorder %s158, %s172
      %p174 = scmp.eq.s32.totalorder %s24, 0
      %p175 = por %p173, %p174
      %s177 = sadd.s32 %s176, 1
      %p180 = scmp.eq.s32.totalorder %s18, 3
      %p181 = scmp.ne.s32.totalorder %s176, %s178
      %p182 = scmp.eq.s32.totalorder %s18, 0
      %p183 = por %p181, %p182
      %p184 = scmp.ne.s32.totalorder %s176, %s178
      %p185 = scmp.eq.s32.totalorder %s23, 3
      %p186 = por %p184, %p185
      %p187 = scmp.ne.s32.totalorder %s178, %s179
      %p188 = scmp.eq.s32.totalorder %s23, 0
      %p189 = por %p187, %p188
      %p190 = scmp.ne.s32.totalorder %s178, %s179
      %p191 = scmp.eq.s32.totalorder %s24, 3
      %p192 = por %p190, %p191
      %p194 = scmp.ne.s32.totalorder %s179, %s193
      %p195 = scmp.eq.s32.totalorder %s24, 0
      %p196 = por %p194, %p195
      %s198 = sadd.s32 %s197, 1
      %p201 = scmp.eq.s32.totalorder %s18, 3
      %p202 = scmp.ne.s32.totalorder %s197, %s199
      %p203 = scmp.eq.s32.totalorder %s18, 0
      %p204 = por %p202, %p203
      %p205 = scmp.ne.s32.totalorder %s197, %s199
      %p206 = scmp.eq.s32.totalorder %s23, 3
      %p207 = por %p205, %p206
      %p208 = scmp.ne.s32.totalorder %s199, %s200
      %p209 = scmp.eq.s32.totalorder %s23, 0
      %p210 = por %p208, %p209
      %p211 = scmp.ne.s32.totalorder %s199, %s200
      %p212 = scmp.eq.s32.totalorder %s24, 3
      %p213 = por %p211, %p212
      %p215 = scmp.ne.s32.totalorder %s200, %s214
      %p216 = scmp.eq.s32.totalorder %s24, 0
      %p217 = por %p215, %p216
      %s219 = sadd.s32 %s218, 1
      %p222 = scmp.eq.s32.totalorder %s18, 3
      %p223 = scmp.ne.s32.totalorder %s218, %s220
      %p224 = scmp.eq.s32.totalorder %s18, 0
      %p225 = por %p223, %p224
      %p226 = scmp.ne.s32.totalorder %s218, %s220
      %p227 = scmp.eq.s32.totalorder %s23, 3
      %p228 = por %p226, %p227
      %p229 = scmp.ne.s32.totalorder %s220, %s221
      %p230 = scmp.eq.s32.totalorder %s23, 0
      %p231 = por %p229, %p230
      %p232 = scmp.ne.s32.totalorder %s220, %s221
      %p233 = scmp.eq.s32.totalorder %s24, 3
      %p234 = por %p232, %p233
      %p236 = scmp.ne.s32.totalorder %s221, %s235
      %p237 = scmp.eq.s32.totalorder %s24, 0
      %p238 = por %p236, %p237
      %s240 = sadd.s32 %s239, 1
      %p243 = scmp.eq.s32.totalorder %s18, 3
      %p244 = scmp.ne.s32.totalorder %s239, %s241
      %p245 = scmp.eq.s32.totalorder %s18, 0
      %p246 = por %p244, %p245
      %p247 = scmp.ne.s32.totalorder %s239, %s241
      %p248 = scmp.eq.s32.totalorder %s23, 3
      %p249 = por %p247, %p248
      %p250 = scmp.ne.s32.totalorder %s241, %s242
      %p251 = scmp.eq.s32.totalorder %s23, 0
      %p252 = por %p250, %p251
      %p253 = scmp.ne.s32.totalorder %s241, %s242
      %p254 = scmp.eq.s32.totalorder %s24, 3
      %p255 = por %p253, %p254
      %p257 = scmp.ne.s32.totalorder %s242, %s256
      %p258 = scmp.eq.s32.totalorder %s24, 0
      %p259 = por %p257, %p258
      %s260 = smul.u32 %s25, 2
      %s261 = sadd.s32 %s260, %s26
      %s262 = smul.u32 %s37, 2
      %s263 = sadd.s32 %s262, %s33
      %s264 = ssub.s32 %s261, %s263
      %p265 = scmp.eq.s32.totalorder %s264, 0
      %s267 = sadd.s32 %s266, 1
      %s268 = scalar_select %p265, %s266, %s267
      %p271 = pneg %p265
      %p272 = scmp.eq.s32.totalorder %s18, 3
      %p273 = por %p271, %p272
      %p274 = scmp.ne.s32.totalorder %s266, %s269
      %p275 = scmp.eq.s32.totalorder %s18, 0
      %p276 = por %p274, %p275
      %p277 = scmp.ne.s32.totalorder %s266, %s269
      %p278 = scmp.eq.s32.totalorder %s23, 3
      %p279 = por %p277, %p278
      %p280 = scmp.ne.s32.totalorder %s269, %s270
      %p281 = scmp.eq.s32.totalorder %s23, 0
      %p282 = por %p280, %p281
      %p283 = scmp.ne.s32.totalorder %s269, %s270
      %p284 = scmp.eq.s32.totalorder %s24, 3
      %p285 = por %p283, %p284
      %p287 = scmp.ne.s32.totalorder %s270, %s286
      %p288 = scmp.eq.s32.totalorder %s24, 0
      %p289 = por %p287, %p288
      %p290 = scmp.le.s32.totalorder 1, %s18
      %p291 = scmp.lt.s32.totalorder %s18, 5
      %p292 = pnand %p290, %p291
      %p293 = pneg %p292
      // Predicated region
      $region9: #{inception_forward.1} parent=5 // pred_check
        _
      $region10: #{inception_forward.1} parent=5 // pred_check_branch
        %295 = sbr.rel (%p292) target = $region12
      $region11: #{inception_forward.1} parent=5 // pred_region
        %s296 = ssub.s32 %s18, 1
        // Predicated region
        $region13: #{inception_forward.1} parent=11 // pred_check
          %p297 = pneg %p147
        $region14: #{inception_forward.1} parent=11 // pred_check_branch
          %299 = sbr.rel (%p297) target = $region16
        $region15: #{inception_forward.1} parent=11 // pred_region
          _
        $region16: #{inception_forward.1} parent=11 // pred_fallthru
          _
        // Predicated region
        $region17: #{inception_forward.1} parent=11 // pred_check
          %p300 = pneg %p168
        $region18: #{inception_forward.1} parent=11 // pred_check_branch
          %302 = sbr.rel (%p300) target = $region20
        $region19: #{inception_forward.1} parent=11 // pred_region
          _
        $region20: #{inception_forward.1} parent=11 // pred_fallthru
          _
        // Predicated region
        $region21: #{inception_forward.1} parent=11 // pred_check
          %p303 = pneg %p189
        $region22: #{inception_forward.1} parent=11 // pred_check_branch
          %305 = sbr.rel (%p303) target = $region24
        $region23: #{inception_forward.1} parent=11 // pred_region
          _
        $region24: #{inception_forward.1} parent=11 // pred_fallthru
          _
        // Predicated region
        $region25: #{inception_forward.1} parent=11 // pred_check
          %p306 = pneg %p210
        $region26: #{inception_forward.1} parent=11 // pred_check_branch
          %308 = sbr.rel (%p306) target = $region28
        $region27: #{inception_forward.1} parent=11 // pred_region
          _
        $region28: #{inception_forward.1} parent=11 // pred_fallthru
          _
        // Predicated region
        $region29: #{inception_forward.1} parent=11 // pred_check
          %p309 = pneg %p231
        $region30: #{inception_forward.1} parent=11 // pred_check_branch
          %311 = sbr.rel (%p309) target = $region32
        $region31: #{inception_forward.1} parent=11 // pred_region
          _
        $region32: #{inception_forward.1} parent=11 // pred_fallthru
          _
        // Predicated region
        $region33: #{inception_forward.1} parent=11 // pred_check
          %p312 = pneg %p252
        $region34: #{inception_forward.1} parent=11 // pred_check_branch
          %314 = sbr.rel (%p312) target = $region36
        $region35: #{inception_forward.1} parent=11 // pred_region
          _
        $region36: #{inception_forward.1} parent=11 // pred_fallthru
          _
      $region12: #{inception_forward.1} parent=5 // pred_fallthru
        _
      %p315 = scmp.lt.s32.totalorder %s18, 4
      // Predicated region
      $region37: #{inception_forward.1} parent=5 // pred_check
        %p316 = pneg %p315
      $region38: #{inception_forward.1} parent=5 // pred_check_branch
        %318 = sbr.rel (%p316) target = $region40
      $region39: #{inception_forward.1} parent=5 // pred_region
        // Predicated region
        $region41: #{inception_forward.1} parent=39 // pred_check
          %p319 = pneg %p58
        $region42: #{inception_forward.1} parent=39 // pred_check_branch
          %321 = sbr.rel (%p319) target = $region44
        $region43: #{inception_forward.1} parent=39 // pred_region
          %s322 = ssub.s32 %s26, 1
          %p323 = scmp.gt.s32.totalorder %s322, 0
          %s324 = scalar_select %p323, %s322, 0
          %s325 = smul.u32 2, %s324
          %p326 = scmp.lt.s32.totalorder %s25, 1
          %s327 = scalar_select %p326, %s25, 1
          %p328 = scmp.lt.s32.totalorder %s325, 3
          %s329 = scalar_select %p328, %s325, 3
          %s330 = smul.addr %s329, 8
          %s331 = smul.addr %s327, 32
          %s332 = sadd.s32 %s330, %s331
          %s333 = smul.addr %s332, 8
          %s334 = scalar_lea.vmem %s0, %s333
          %s335 = ssub.s32 %s26, 1
          %p336 = scmp.gt.s32.totalorder %s335, 0
          %s337 = scalar_select %p336, %s335, 0
          %s338 = smul.u32 2, %s337
        $region44: #{inception_forward.1} parent=39 // pred_fallthru
          _
        // Predicated region
        $region45: #{inception_forward.1} parent=39 // pred_check
          %p339 = pneg %p86
        $region46: #{inception_forward.1} parent=39 // pred_check_branch
          %341 = sbr.rel (%p339) target = $region48
        $region47: #{inception_forward.1} parent=39 // pred_region
          %s342 = smul.u32 2, %s26
          %p343 = scmp.lt.s32.totalorder %s25, 1
          %s344 = scalar_select %p343, %s25, 1
          %p345 = scmp.lt.s32.totalorder %s342, 3
          %s346 = scalar_select %p345, %s342, 3
          %s347 = smul.addr %s346, 8
          %s348 = smul.addr %s344, 32
          %s349 = sadd.s32 %s347, %s348
          %s350 = smul.addr %s349, 8
          %s351 = scalar_lea.vmem %s1, %s350
          %s352 = smul.u32 2, %s26
        $region48: #{inception_forward.1} parent=39 // pred_fallthru
          _
        // Predicated region
        $region49: #{inception_forward.1} parent=39 // pred_check
          %p353 = pneg %p120
        $region50: #{inception_forward.1} parent=39 // pred_check_branch
          %355 = sbr.rel (%p353) target = $region52
        $region51: #{inception_forward.1} parent=39 // pred_region
          %s356 = sadd.s32 %s26, 1
          %p357 = scmp.lt.s32.totalorder %s356, 1
          %s358 = scalar_select %p357, %s356, 1
          %s359 = smul.u32 2, %s358
          %p360 = scmp.lt.s32.totalorder %s25, 1
          %s361 = scalar_select %p360, %s25, 1
          %p362 = scmp.lt.s32.totalorder %s359, 3
          %s363 = scalar_select %p362, %s359, 3
          %s364 = smul.addr %s363, 8
          %s365 = smul.addr %s361, 32
          %s366 = sadd.s32 %s364, %s365
          %s367 = smul.addr %s366, 8
          %s368 = scalar_lea.vmem %s2, %s367
          %s369 = sadd.s32 %s26, 1
          %p370 = scmp.lt.s32.totalorder %s369, 1
          %s371 = scalar_select %p370, %s369, 1
          %s372 = smul.u32 2, %s371
        $region52: #{inception_forward.1} parent=39 // pred_fallthru
          _
      $region40: #{inception_forward.1} parent=5 // pred_fallthru
        _
      %p373 = scmp.le.s32.totalorder 1, %s18
      %p374 = scmp.lt.s32.totalorder %s18, 5
      %p375 = pnand %p373, %p374
      %p376 = pneg %p375
      // Predicated region
      $region53: #{inception_forward.1} parent=5 // pred_check
        _
      $region54: #{inception_forward.1} parent=5 // pred_check_branch
        %378 = sbr.rel (%p375) target = $region56
      $region55: #{inception_forward.1} parent=5 // pred_region
        %s379 = ssub.s32 %s18, 1
        %s380 = ssub.s32 %s28, 1
        %p381 = scmp.gt.s32.totalorder %s380, 0
        %s382 = scalar_select %p381, %s380, 0
        %s383 = smul.u32 2, %s382
        %p384 = scmp.lt.s32.totalorder %s27, 1
        %s385 = scalar_select %p384, %s27, 1
        %p386 = scmp.lt.s32.totalorder %s383, 3
        %s387 = scalar_select %p386, %s383, 3
        %s388 = smul.addr %s387, 8
        %s389 = smul.addr %s385, 32
        %s390 = sadd.s32 %s388, %s389
        %s391 = smul.addr %s390, 8
        %s392 = scalar_lea.vmem %s0, %s391
        %p393 = pneg %p64
        %p394 = pneg %p61
        %s395 = smul.u32 2, %s28
        %p396 = scmp.lt.s32.totalorder %s27, 1
        %s397 = scalar_select %p396, %s27, 1
        %p398 = scmp.lt.s32.totalorder %s395, 3
        %s399 = scalar_select %p398, %s395, 3
        %s400 = smul.addr %s399, 8
        %s401 = smul.addr %s397, 32
        %s402 = sadd.s32 %s400, %s401
        %s403 = smul.addr %s402, 8
        %s404 = scalar_lea.vmem %s1, %s403
        %p405 = pneg %p92
        %p406 = pneg %p89
        %s407 = sadd.s32 %s28, 1
        %p408 = scmp.lt.s32.totalorder %s407, 1
        %s409 = scalar_select %p408, %s407, 1
        %s410 = smul.u32 2, %s409
        %p411 = scmp.lt.s32.totalorder %s27, 1
        %s412 = scalar_select %p411, %s27, 1
        %p413 = scmp.lt.s32.totalorder %s410, 3
        %s414 = scalar_select %p413, %s410, 3
        %s415 = smul.addr %s414, 8
        %s416 = smul.addr %s412, 32
        %s417 = sadd.s32 %s415, %s416
        %s418 = smul.addr %s417, 8
        %s419 = scalar_lea.vmem %s2, %s418
        %p420 = pneg %p126
        %p421 = pneg %p123
        %p422 = pneg %p147
        %p423 = pneg %p144
        %p424 = pneg %p168
        %p425 = pneg %p165
        %p426 = pneg %p189
        %p427 = pneg %p186
        %p428 = pneg %p210
        %p429 = pneg %p207
        %p430 = pneg %p231
        %p431 = pneg %p228
        %p432 = pneg %p252
        %p433 = pneg %p249
        %p434 = pneg %p282
        %p435 = pneg %p279
        %s436 = sand.u32 %s269, 1
        %s437 = scalar_lea.sflag [#allocation6], %s436
        %s438 = sand.u32 %s269, 1
        %s439 = smul.addr %s438, 128
        %s440 = scalar_lea.vmem [#allocation5], %s439
        %s441 = ssub.s32 %s28, 1
        %p442 = scmp.gt.s32.totalorder %s441, 0
        %s443 = scalar_select %p442, %s441, 0
        %s444 = smul.u32 2, %s443
        %p445 = scmp.lt.s32.totalorder %s27, 1
        %s446 = scalar_select %p445, %s27, 1
        %p447 = scmp.lt.s32.totalorder %s444, 3
        %s448 = scalar_select %p447, %s444, 3
        %s449 = smul.addr %s448, 8
        %s450 = smul.addr %s446, 32
        %s451 = sadd.s32 %s449, %s450
        %s452 = smul.addr %s451, 8
        %s453 = scalar_lea.vmem %s0, %s452
        %s454 = ssub.s32 %s28, 1
        %p455 = scmp.gt.s32.totalorder %s454, 0
        %s456 = scalar_select %p455, %s454, 0
        %s457 = smul.u32 2, %s456
        %s458 = smul.u32 2, %s28
        %p459 = scmp.lt.s32.totalorder %s27, 1
        %s460 = scalar_select %p459, %s27, 1
        %p461 = scmp.lt.s32.totalorder %s458, 3
        %s462 = scalar_select %p461, %s458, 3
        %s463 = smul.addr %s462, 8
        %s464 = smul.addr %s460, 32
        %s465 = sadd.s32 %s463, %s464
        %s466 = smul.addr %s465, 8
        %s467 = scalar_lea.vmem %s1, %s466
        %s468 = smul.u32 2, %s28
        %s469 = sadd.s32 %s28, 1
        %p470 = scmp.lt.s32.totalorder %s469, 1
        %s471 = scalar_select %p470, %s469, 1
        %s472 = smul.u32 2, %s471
        %p473 = scmp.lt.s32.totalorder %s27, 1
        %s474 = scalar_select %p473, %s27, 1
        %p475 = scmp.lt.s32.totalorder %s472, 3
        %s476 = scalar_select %p475, %s472, 3
        %s477 = smul.addr %s476, 8
        %s478 = smul.addr %s474, 32
        %s479 = sadd.s32 %s477, %s478
        %s480 = smul.addr %s479, 8
        %s481 = scalar_lea.vmem %s2, %s480
        %s482 = sadd.s32 %s28, 1
        %p483 = scmp.lt.s32.totalorder %s482, 1
        %s484 = scalar_select %p483, %s482, 1
        %s485 = smul.u32 2, %s484
        %s486 = smul.u32 %s27, 2
        %s487 = sadd.s32 %s486, %s28
        %s488 = smul.u32 16, %s487
        %vm489 = vcmask 31744
        %490 = vst.msk [vmem:[#allocation2] sm:$0xff] %vm489, 0.0
        %vm491 = vcmask 25600
        %492 = vst.msk [vmem:[#allocation2 + $0x8] sm:$0x3] %vm491, 0.0
        %493 = vst.msk [vmem:[#allocation2 + $0x10] sm:$0xff] %vm489, 0.0
        %494 = vst.msk [vmem:[#allocation2 + $0x18] sm:$0x3] %vm491, 0.0
        %495 = vst.msk [vmem:[#allocation2 + $0x20] sm:$0xff] %vm489, 0.0
        %496 = vst.msk [vmem:[#allocation2 + $0x28] sm:$0x3] %vm491, 0.0
        %497 = vst.msk [vmem:[#allocation2 + $0x30] sm:$0xff] %vm489, 0.0
        %498 = vst.msk [vmem:[#allocation2 + $0x38] sm:$0x3] %vm491, 0.0
        %499 = vst.msk [vmem:[#allocation2 + $0x40] sm:$0xff] %vm489, 0.0
        %500 = vst.msk [vmem:[#allocation2 + $0x48] sm:$0x3] %vm491, 0.0
        %501 = vst.msk [vmem:[#allocation2 + $0x50] sm:$0xff] %vm489, 0.0
        %502 = vst.msk [vmem:[#allocation2 + $0x58] sm:$0x3] %vm491, 0.0
        %503 = vst.msk [vmem:[#allocation2 + $0x60] sm:$0xff] %vm489, 0.0
        %504 = vst.msk [vmem:[#allocation2 + $0x68] sm:$0x3] %vm491, 0.0
        %505 = vst.msk [vmem:[#allocation2 + $0x70] sm:$0xff] %vm489, 0.0
        %506 = vst.msk [vmem:[#allocation2 + $0x78] sm:$0x3] %vm491, 0.0
        %507 = vst.msk [vmem:[#allocation2 + $0x80] sm:$0xff] %vm489, 0.0
        %508 = vst.msk [vmem:[#allocation2 + $0x88] sm:$0x3] %vm491, 0.0
        %509 = vst.msk [vmem:[#allocation2 + $0x90] sm:$0xff] %vm489, 0.0
        %510 = vst.msk [vmem:[#allocation2 + $0x98] sm:$0x3] %vm491, 0.0
        %511 = vst.msk [vmem:[#allocation2 + $0xa0] sm:$0xff] %vm489, 0.0
        %512 = vst.msk [vmem:[#allocation2 + $0xa8] sm:$0x3] %vm491, 0.0
        %513 = vst.msk [vmem:[#allocation2 + $0xb0] sm:$0xff] %vm489, 0.0
        %514 = vst.msk [vmem:[#allocation2 + $0xb8] sm:$0x3] %vm491, 0.0
        %515 = vst.msk [vmem:[#allocation2 + $0xc0] sm:$0xff] %vm489, 0.0
        %516 = vst.msk [vmem:[#allocation2 + $0xc8] sm:$0x3] %vm491, 0.0
        %517 = vst.msk [vmem:[#allocation2 + $0xd0] sm:$0xff] %vm489, 0.0
        %518 = vst.msk [vmem:[#allocation2 + $0xd8] sm:$0x3] %vm491, 0.0
        %519 = vst.msk [vmem:[#allocation2 + $0xe0] sm:$0xff] %vm489, 0.0
        %520 = vst.msk [vmem:[#allocation2 + $0xe8] sm:$0x3] %vm491, 0.0
        %521 = vst.msk [vmem:[#allocation2 + $0xf0] sm:$0xff] %vm489, 0.0
        %522 = vst.msk [vmem:[#allocation2 + $0xf8] sm:$0x3] %vm491, 0.0
        %523 = vst.msk [vmem:[#allocation2 + $0x100] sm:$0xff] %vm489, 0.0
        %524 = vst.msk [vmem:[#allocation2 + $0x108] sm:$0x3] %vm491, 0.0
        %525 = vst.msk [vmem:[#allocation2 + $0x110] sm:$0xff] %vm489, 0.0
        %526 = vst.msk [vmem:[#allocation2 + $0x118] sm:$0x3] %vm491, 0.0
        %527 = vst.msk [vmem:[#allocation2 + $0x120] sm:$0xff] %vm489, 0.0
        %528 = vst.msk [vmem:[#allocation2 + $0x128] sm:$0x3] %vm491, 0.0
        %529 = vst.msk [vmem:[#allocation2 + $0x130] sm:$0xff] %vm489, 0.0
        %530 = vst.msk [vmem:[#allocation2 + $0x138] sm:$0x3] %vm491, 0.0
        %531 = vst.msk [vmem:[#allocation2 + $0x140] sm:$0xff] %vm489, 0.0
        %532 = vst.msk [vmem:[#allocation2 + $0x148] sm:$0x3] %vm491, 0.0
        %533 = vst.msk [vmem:[#allocation2 + $0x150] sm:$0xff] %vm489, 0.0
        %534 = vst.msk [vmem:[#allocation2 + $0x158] sm:$0x3] %vm491, 0.0
        %535 = vst.msk [vmem:[#allocation2 + $0x160] sm:$0xff] %vm489, 0.0
        %536 = vst.msk [vmem:[#allocation2 + $0x168] sm:$0x3] %vm491, 0.0
        %537 = vst.msk [vmem:[#allocation2 + $0x170] sm:$0xff] %vm489, 0.0
        %538 = vst.msk [vmem:[#allocation2 + $0x178] sm:$0x3] %vm491, 0.0
        %539 = vst.msk [vmem:[#allocation2 + $0x180] sm:$0xff] %vm489, 0.0
        %540 = vst.msk [vmem:[#allocation2 + $0x188] sm:$0x3] %vm491, 0.0
        %541 = vst.msk [vmem:[#allocation2 + $0x190] sm:$0xff] %vm489, 0.0
        %542 = vst.msk [vmem:[#allocation2 + $0x198] sm:$0x3] %vm491, 0.0
        %543 = vst.msk [vmem:[#allocation2 + $0x1a0] sm:$0xff] %vm489, 0.0
        %544 = vst.msk [vmem:[#allocation2 + $0x1a8] sm:$0x3] %vm491, 0.0
        %545 = vst.msk [vmem:[#allocation2 + $0x1b0] sm:$0xff] %vm489, 0.0
        %546 = vst.msk [vmem:[#allocation2 + $0x1b8] sm:$0x3] %vm491, 0.0
        %547 = vst.msk [vmem:[#allocation2 + $0x1c0] sm:$0xff] %vm489, 0.0
        %548 = vst.msk [vmem:[#allocation2 + $0x1c8] sm:$0x3] %vm491, 0.0
        %549 = vst.msk [vmem:[#allocation2 + $0x1d0] sm:$0xff] %vm489, 0.0
        %550 = vst.msk [vmem:[#allocation2 + $0x1d8] sm:$0x3] %vm491, 0.0
        %551 = vst.msk [vmem:[#allocation2 + $0x1e0] sm:$0xff] %vm489, 0.0
        %552 = vst.msk [vmem:[#allocation2 + $0x1e8] sm:$0x3] %vm491, 0.0
        %553 = vst.msk [vmem:[#allocation2 + $0x1f0] sm:$0xff] %vm489, 0.0
        %554 = vst.msk [vmem:[#allocation2 + $0x1f8] sm:$0x3] %vm491, 0.0
        %555 = vst.msk [vmem:[#allocation2 + $0x200] sm:$0xff] %vm489, 0.0
        %556 = vst.msk [vmem:[#allocation2 + $0x208] sm:$0x3] %vm491, 0.0
        %557 = vst.msk [vmem:[#allocation2 + $0x210] sm:$0xff] %vm489, 0.0
        %558 = vst.msk [vmem:[#allocation2 + $0x218] sm:$0x3] %vm491, 0.0
        %559 = vst.msk [vmem:[#allocation2 + $0x220] sm:$0xff] %vm489, 0.0
        %560 = vst.msk [vmem:[#allocation2 + $0x228] sm:$0x3] %vm491, 0.0
        %561 = vst.msk [vmem:[#allocation2 + $0x230] sm:$0xff] %vm489, 0.0
        %562 = vst.msk [vmem:[#allocation2 + $0x238] sm:$0x3] %vm491, 0.0
        %563 = vst.msk [vmem:[#allocation2 + $0x240] sm:$0xff] %vm489, 0.0
        %564 = vst.msk [vmem:[#allocation2 + $0x248] sm:$0x3] %vm491, 0.0
        %565 = vst.msk [vmem:[#allocation2 + $0x250] sm:$0xff] %vm489, 0.0
        %566 = vst.msk [vmem:[#allocation2 + $0x258] sm:$0x3] %vm491, 0.0
        %567 = vst.msk [vmem:[#allocation2 + $0x260] sm:$0xff] %vm489, 0.0
        %568 = vst.msk [vmem:[#allocation2 + $0x268] sm:$0x3] %vm491, 0.0
        %569 = vst.msk [vmem:[#allocation2 + $0x270] sm:$0xff] %vm489, 0.0
        %570 = vst.msk [vmem:[#allocation2 + $0x278] sm:$0x3] %vm491, 0.0
        %vm571 = vcmask 80896
        %572 = vst.msk [vmem:[#allocation3] sm:$0xff] %vm571, 0.0
        %vm573 = vcmask 74752
        %574 = vst.msk [vmem:[#allocation3 + $0x8] sm:$0x3] %vm573, 0.0
        %575 = vst.msk [vmem:[#allocation3 + $0x10] sm:$0xff] %vm571, 0.0
        %576 = vst.msk [vmem:[#allocation3 + $0x18] sm:$0x3] %vm573, 0.0
        %577 = vst.msk [vmem:[#allocation3 + $0x20] sm:$0xff] %vm571, 0.0
        %578 = vst.msk [vmem:[#allocation3 + $0x28] sm:$0x3] %vm573, 0.0
        %579 = vst.msk [vmem:[#allocation3 + $0x30] sm:$0xff] %vm571, 0.0
        %580 = vst.msk [vmem:[#allocation3 + $0x38] sm:$0x3] %vm573, 0.0
        %581 = vst.msk [vmem:[#allocation3 + $0x40] sm:$0xff] %vm571, 0.0
        %582 = vst.msk [vmem:[#allocation3 + $0x48] sm:$0x3] %vm573, 0.0
        %583 = vst.msk [vmem:[#allocation3 + $0x50] sm:$0xff] %vm571, 0.0
        %584 = vst.msk [vmem:[#allocation3 + $0x58] sm:$0x3] %vm573, 0.0
        %585 = vst.msk [vmem:[#allocation3 + $0x60] sm:$0xff] %vm571, 0.0
        %586 = vst.msk [vmem:[#allocation3 + $0x68] sm:$0x3] %vm573, 0.0
        %587 = vst.msk [vmem:[#allocation3 + $0x70] sm:$0xff] %vm571, 0.0
        %588 = vst.msk [vmem:[#allocation3 + $0x78] sm:$0x3] %vm573, 0.0
        %589 = vst.msk [vmem:[#allocation3 + $0x80] sm:$0xff] %vm571, 0.0
        %590 = vst.msk [vmem:[#allocation3 + $0x88] sm:$0x3] %vm573, 0.0
        %591 = vst.msk [vmem:[#allocation3 + $0x90] sm:$0xff] %vm571, 0.0
        %592 = vst.msk [vmem:[#allocation3 + $0x98] sm:$0x3] %vm573, 0.0
        %593 = vst.msk [vmem:[#allocation3 + $0xa0] sm:$0xff] %vm571, 0.0
        %594 = vst.msk [vmem:[#allocation3 + $0xa8] sm:$0x3] %vm573, 0.0
        %595 = vst.msk [vmem:[#allocation3 + $0xb0] sm:$0xff] %vm571, 0.0
        %596 = vst.msk [vmem:[#allocation3 + $0xb8] sm:$0x3] %vm573, 0.0
        %597 = vst.msk [vmem:[#allocation3 + $0xc0] sm:$0xff] %vm571, 0.0
        %598 = vst.msk [vmem:[#allocation3 + $0xc8] sm:$0x3] %vm573, 0.0
        %599 = vst.msk [vmem:[#allocation3 + $0xd0] sm:$0xff] %vm571, 0.0
        %600 = vst.msk [vmem:[#allocation3 + $0xd8] sm:$0x3] %vm573, 0.0
        %601 = vst.msk [vmem:[#allocation3 + $0xe0] sm:$0xff] %vm571, 0.0
        %602 = vst.msk [vmem:[#allocation3 + $0xe8] sm:$0x3] %vm573, 0.0
        %603 = vst.msk [vmem:[#allocation3 + $0xf0] sm:$0xff] %vm571, 0.0
        %604 = vst.msk [vmem:[#allocation3 + $0xf8] sm:$0x3] %vm573, 0.0
        %605 = vst.msk [vmem:[#allocation3 + $0x100] sm:$0xff] %vm571, 0.0
        %606 = vst.msk [vmem:[#allocation3 + $0x108] sm:$0x3] %vm573, 0.0
        %607 = vst.msk [vmem:[#allocation3 + $0x110] sm:$0xff] %vm571, 0.0
        %608 = vst.msk [vmem:[#allocation3 + $0x118] sm:$0x3] %vm573, 0.0
        %609 = vst.msk [vmem:[#allocation3 + $0x120] sm:$0xff] %vm571, 0.0
        %610 = vst.msk [vmem:[#allocation3 + $0x128] sm:$0x3] %vm573, 0.0
        %611 = vst.msk [vmem:[#allocation3 + $0x130] sm:$0xff] %vm571, 0.0
        %612 = vst.msk [vmem:[#allocation3 + $0x138] sm:$0x3] %vm573, 0.0
        %613 = vst.msk [vmem:[#allocation3 + $0x140] sm:$0xff] %vm571, 0.0
        %614 = vst.msk [vmem:[#allocation3 + $0x148] sm:$0x3] %vm573, 0.0
        %615 = vst.msk [vmem:[#allocation3 + $0x150] sm:$0xff] %vm571, 0.0
        %616 = vst.msk [vmem:[#allocation3 + $0x158] sm:$0x3] %vm573, 0.0
        %617 = vst.msk [vmem:[#allocation3 + $0x160] sm:$0xff] %vm571, 0.0
        %618 = vst.msk [vmem:[#allocation3 + $0x168] sm:$0x3] %vm573, 0.0
        %619 = vst.msk [vmem:[#allocation3 + $0x170] sm:$0xff] %vm571, 0.0
        %620 = vst.msk [vmem:[#allocation3 + $0x178] sm:$0x3] %vm573, 0.0
        %621 = vst.msk [vmem:[#allocation3 + $0x180] sm:$0xff] %vm571, 0.0
        %622 = vst.msk [vmem:[#allocation3 + $0x188] sm:$0x3] %vm573, 0.0
        %623 = vst.msk [vmem:[#allocation3 + $0x190] sm:$0xff] %vm571, 0.0
        %624 = vst.msk [vmem:[#allocation3 + $0x198] sm:$0x3] %vm573, 0.0
        %625 = vst.msk [vmem:[#allocation3 + $0x1a0] sm:$0xff] %vm571, 0.0
        %626 = vst.msk [vmem:[#allocation3 + $0x1a8] sm:$0x3] %vm573, 0.0
        %627 = vst.msk [vmem:[#allocation3 + $0x1b0] sm:$0xff] %vm571, 0.0
        %628 = vst.msk [vmem:[#allocation3 + $0x1b8] sm:$0x3] %vm573, 0.0
        %629 = vst.msk [vmem:[#allocation3 + $0x1c0] sm:$0xff] %vm571, 0.0
        %630 = vst.msk [vmem:[#allocation3 + $0x1c8] sm:$0x3] %vm573, 0.0
        %631 = vst.msk [vmem:[#allocation3 + $0x1d0] sm:$0xff] %vm571, 0.0
        %632 = vst.msk [vmem:[#allocation3 + $0x1d8] sm:$0x3] %vm573, 0.0
        %633 = vst.msk [vmem:[#allocation3 + $0x1e0] sm:$0xff] %vm571, 0.0
        %634 = vst.msk [vmem:[#allocation3 + $0x1e8] sm:$0x3] %vm573, 0.0
        %635 = vst.msk [vmem:[#allocation3 + $0x1f0] sm:$0xff] %vm571, 0.0
        %636 = vst.msk [vmem:[#allocation3 + $0x1f8] sm:$0x3] %vm573, 0.0
        %637 = vst.msk [vmem:[#allocation3 + $0x200] sm:$0xff] %vm571, 0.0
        %638 = vst.msk [vmem:[#allocation3 + $0x208] sm:$0x3] %vm573, 0.0
        %639 = vst.msk [vmem:[#allocation3 + $0x210] sm:$0xff] %vm571, 0.0
        %640 = vst.msk [vmem:[#allocation3 + $0x218] sm:$0x3] %vm573, 0.0
        %641 = vst.msk [vmem:[#allocation3 + $0x220] sm:$0xff] %vm571, 0.0
        %642 = vst.msk [vmem:[#allocation3 + $0x228] sm:$0x3] %vm573, 0.0
        %643 = vst.msk [vmem:[#allocation3 + $0x230] sm:$0xff] %vm571, 0.0
        %644 = vst.msk [vmem:[#allocation3 + $0x238] sm:$0x3] %vm573, 0.0
        %645 = vst.msk [vmem:[#allocation3 + $0x240] sm:$0xff] %vm571, 0.0
        %646 = vst.msk [vmem:[#allocation3 + $0x248] sm:$0x3] %vm573, 0.0
        %647 = vst.msk [vmem:[#allocation3 + $0x250] sm:$0xff] %vm571, 0.0
        %648 = vst.msk [vmem:[#allocation3 + $0x258] sm:$0x3] %vm573, 0.0
        %649 = vst.msk [vmem:[#allocation3 + $0x260] sm:$0xff] %vm571, 0.0
        %650 = vst.msk [vmem:[#allocation3 + $0x268] sm:$0x3] %vm573, 0.0
        %651 = vst.msk [vmem:[#allocation3 + $0x270] sm:$0xff] %vm571, 0.0
        %652 = vst.msk [vmem:[#allocation3 + $0x278] sm:$0x3] %vm573, 0.0
        %vm653 = vcmask 130048
        %654 = vst.msk [vmem:[#allocation4] sm:$0xff] %vm653, 0.0
        %655 = vst.msk [vmem:[#allocation4 + $0x8] sm:$0xff] %vm653, 0.0
        %656 = vst.msk [vmem:[#allocation4 + $0x10] sm:$0xff] %vm653, 0.0
        %657 = vst.msk [vmem:[#allocation4 + $0x18] sm:$0xff] %vm653, 0.0
        %658 = vst.msk [vmem:[#allocation4 + $0x20] sm:$0xff] %vm653, 0.0
        %659 = vst.msk [vmem:[#allocation4 + $0x28] sm:$0xff] %vm653, 0.0
        %660 = vst.msk [vmem:[#allocation4 + $0x30] sm:$0xff] %vm653, 0.0
        %661 = vst.msk [vmem:[#allocation4 + $0x38] sm:$0xff] %vm653, 0.0
        %662 = vst.msk [vmem:[#allocation4 + $0x40] sm:$0xff] %vm653, 0.0
        %663 = vst.msk [vmem:[#allocation4 + $0x48] sm:$0xff] %vm653, 0.0
        %664 = vst.msk [vmem:[#allocation4 + $0x50] sm:$0xff] %vm653, 0.0
        %665 = vst.msk [vmem:[#allocation4 + $0x58] sm:$0xff] %vm653, 0.0
        %666 = vst.msk [vmem:[#allocation4 + $0x60] sm:$0xff] %vm653, 0.0
        %667 = vst.msk [vmem:[#allocation4 + $0x68] sm:$0xff] %vm653, 0.0
        %668 = vst.msk [vmem:[#allocation4 + $0x70] sm:$0xff] %vm653, 0.0
        %669 = vst.msk [vmem:[#allocation4 + $0x78] sm:$0xff] %vm653, 0.0
        %v670 = vld [vmem:[%s467] sm:$0xff]
        %v671 = vld [vmem:[%s467 + $0x8] sm:$0xff]
        %v672 = vld [vmem:[%s467 + $0x10] sm:$0xff]
        %v673 = vld [vmem:[%s467 + $0x18] sm:$0xff]
        %v674 = vld [vmem:[%s467 + $0x20] sm:$0xff]
        %v675 = vld [vmem:[%s467 + $0x28] sm:$0xff]
        %v676 = vld [vmem:[%s467 + $0x30] sm:$0xff]
        %v677 = vld [vmem:[%s467 + $0x38] sm:$0xff]
        %v678 = vld [vmem:[%s467 + $0x40] sm:$0xff]
        %v679 = vld [vmem:[%s467 + $0x48] sm:$0xff]
        %v680 = vld [vmem:[%s467 + $0x50] sm:$0xff]
        %v681 = vld [vmem:[%s467 + $0x58] sm:$0xff]
        %v682 = vld [vmem:[%s467 + $0x60] sm:$0xff]
        %v683 = vld [vmem:[%s467 + $0x68] sm:$0xff]
        %v684 = vld [vmem:[%s467 + $0x70] sm:$0xff]
        %v685 = vld [vmem:[%s467 + $0x78] sm:$0xff]
        %s686 = scalar_lea.vmem [#allocation2], 176
        %687 = vst.msk [vmem:[%s686 + $0x1] sm:$0xff] %vm489, %v670
        %688 = vst.msk [vmem:[%s686 + $0x11] sm:$0xff] %vm489, %v671
        %689 = vst.msk [vmem:[%s686 + $0x21] sm:$0xff] %vm489, %v672
        %690 = vst.msk [vmem:[%s686 + $0x31] sm:$0xff] %vm489, %v673
        %691 = vst.msk [vmem:[%s686 + $0x41] sm:$0xff] %vm489, %v674
        %692 = vst.msk [vmem:[%s686 + $0x51] sm:$0xff] %vm489, %v675
        %693 = vst.msk [vmem:[%s686 + $0x61] sm:$0xff] %vm489, %v676
        %694 = vst.msk [vmem:[%s686 + $0x71] sm:$0xff] %vm489, %v677
        %695 = vst.msk [vmem:[%s686 + $0xa1] sm:$0xff] %vm489, %v678
        %696 = vst.msk [vmem:[%s686 + $0xb1] sm:$0xff] %vm489, %v679
        %697 = vst.msk [vmem:[%s686 + $0xc1] sm:$0xff] %vm489, %v680
        %698 = vst.msk [vmem:[%s686 + $0xd1] sm:$0xff] %vm489, %v681
        %699 = vst.msk [vmem:[%s686 + $0xe1] sm:$0xff] %vm489, %v682
        %700 = vst.msk [vmem:[%s686 + $0xf1] sm:$0xff] %vm489, %v683
        %701 = vst.msk [vmem:[%s686 + $0x101] sm:$0xff] %vm489, %v684
        %702 = vst.msk [vmem:[%s686 + $0x111] sm:$0xff] %vm489, %v685
        %v703 = vld [vmem:[%s3] sm:$0xf]
        %v704 = vld [vmem:[%s4] sm:$0x1]
        %v706 = vlaneseq
        %v707 = vshrl.u32 %v706, 7
        %v708 = vsub.s32 0, %v707
        %v709 = vrot.slane %v704, %v708
        %v712 = vsel %vm489, %v670, 0
        %v715 = vsel %vm489, %v671, 0
        %v718 = vsel %vm489, %v672, 0
        %v721 = vsel %vm489, %v673, 0
        %v724 = vsel %vm489, %v674, 0
        %v727 = vsel %vm489, %v675, 0
        %v730 = vsel %vm489, %v676, 0
        %v733 = vsel %vm489, %v677, 0
        %v736 = vsel %vm489, %v678, 0
        %v739 = vsel %vm489, %v679, 0
        %v742 = vsel %vm489, %v680, 0
        %v745 = vsel %vm489, %v681, 0
        %v748 = vsel %vm489, %v682, 0
        %v751 = vsel %vm489, %v683, 0
        %v754 = vsel %vm489, %v684, 0
        %v757 = vsel %vm489, %v685, 0
        %vm759 = vcmask 1043456
        %v761 = vsel %vm759, %v703, 0
        %763 = vmatprep.subr.mxu0 0.0
        %764 = vmatpush1.msra.mxu0 0.0
        %765 = vmatprep.subr.mxu0 0.0
        %766 = vmatpush1.msra.mxu0 0.0
        %767 = vmatprep.subr.mxu0 0.0
        %768 = vmatpush1.msra.mxu0 0.0
        %769 = vmatprep.subr.mxu0 0.0
        %770 = vmatpush1.msra.mxu0 0.0
        %771 = vmatprep.subr.mxu0 0.0
        %772 = vmatpush1.msra.mxu0 0.0
        %773 = vmatprep.subr.mxu0 0.0
        %774 = vmatpush1.msra.mxu0 0.0
        %775 = vmatprep.subr.mxu0 0.0
        %776 = vmatpush1.msra.mxu0 0.0
        %777 = vmatprep.subr.mxu0 0.0
        %778 = vmatpush1.msra.mxu0 0.0
        %779 = vmatprep.subr.mxu0 0.0
        %780 = vmatpush1.msra.mxu0 0.0
        %781 = vmatprep.subr.mxu0 0.0
        %782 = vmatpush1.msra.mxu0 0.0
        %783 = vmatprep.subr.mxu0 0.0
        %784 = vmatpush1.msra.mxu0 0.0
        %785 = vmatprep.subr.mxu0 0.0
        %786 = vmatpush1.msra.mxu0 0.0
        %787 = vmatprep.subr.mxu0 0.0
        %788 = vmatpush1.msra.mxu0 0.0
        %789 = vmatprep.subr.mxu0 0.0
        %790 = vmatpush1.msra.mxu0 0.0
        %791 = vmatprep.subr.mxu0 0.0
        %792 = vmatpush1.msra.mxu0 0.0
        %793 = vmatprep.subr.mxu0 0.0
        %794 = vmatpush1.msra.mxu0 %v761
        %795 = vmatprep.subr.mxu0 0.0
        %796 = vmatpush2.msra.mxu0 0.0
        %797 = vmatprep.subr.mxu0 0.0
        %798 = vmatpush2.msra.mxu0 0.0
        %799 = vmatprep.subr.mxu0 0.0
        %800 = vmatpush2.msra.mxu0 0.0
        %801 = vmatprep.subr.mxu0 0.0
        %802 = vmatpush2.msra.mxu0 0.0
        %803 = vmatprep.subr.mxu0 0.0
        %804 = vmatpush2.msra.mxu0 0.0
        %805 = vmatprep.subr.mxu0 0.0
        %806 = vmatpush2.msra.mxu0 0.0
        %807 = vmatprep.subr.mxu0 0.0
        %808 = vmatpush2.msra.mxu0 0.0
        %809 = vmatprep.subr.mxu0 0.0
        %810 = vmatpush2.msra.mxu0 0.0
        %811 = vmatprep.subr.mxu0 0.0
        %812 = vmatpush2.msra.mxu0 0.0
        %813 = vmatprep.subr.mxu0 0.0
        %814 = vmatpush2.msra.mxu0 0.0
        %815 = vmatprep.subr.mxu0 0.0
        %816 = vmatpush2.msra.mxu0 0.0
        %817 = vmatprep.subr.mxu0 0.0
        %818 = vmatpush2.msra.mxu0 0.0
        %819 = vmatprep.subr.mxu0 0.0
        %820 = vmatpush2.msra.mxu0 0.0
        %821 = vmatprep.subr.mxu0 0.0
        %822 = vmatpush2.msra.mxu0 0.0
        %823 = vmatprep.subr.mxu0 0.0
        %824 = vmatpush2.msra.mxu0 0.0
        %825 = vmatprep.subr.mxu0 0.0
        %826 = vmatpush2.msra.mxu0 0.0
        %827 = vmatprep.mubr.f32.mxu0 0.0
        %828 = vmatmul.mubr.f32.gmra.mxu0 %v712
        %v829 = vpop.f32.mrf.mxu0
        %v830 = vadd.f32 %v709, %v829
        %v831 = vpop.f32.mrf.mxu0
        %832 = vmatprep.mubr.f32.mxu0 0.0
        %833 = vmatmul.mubr.f32.gmra.mxu0 %v715
        %v834 = vpop.f32.mrf.mxu0
        %v835 = vadd.f32 %v709, %v834
        %v836 = vpop.f32.mrf.mxu0
        %837 = vmatprep.mubr.f32.mxu0 0.0
        %838 = vmatmul.mubr.f32.gmra.mxu0 %v718
        %v839 = vpop.f32.mrf.mxu0
        %v840 = vadd.f32 %v709, %v839
        %v841 = vpop.f32.mrf.mxu0
        %842 = vmatprep.mubr.f32.mxu0 0.0
        %843 = vmatmul.mubr.f32.gmra.mxu0 %v721
        %v844 = vpop.f32.mrf.mxu0
        %v845 = vadd.f32 %v709, %v844
        %v846 = vpop.f32.mrf.mxu0
        %847 = vmatprep.mubr.f32.mxu0 0.0
        %848 = vmatmul.mubr.f32.gmra.mxu0 %v724
        %v849 = vpop.f32.mrf.mxu0
        %v850 = vadd.f32 %v709, %v849
        %v851 = vpop.f32.mrf.mxu0
        %852 = vmatprep.mubr.f32.mxu0 0.0
        %853 = vmatmul.mubr.f32.gmra.mxu0 %v727
        %v854 = vpop.f32.mrf.mxu0
        %v855 = vadd.f32 %v709, %v854
        %v856 = vpop.f32.mrf.mxu0
        %857 = vmatprep.mubr.f32.mxu0 0.0
        %858 = vmatmul.mubr.f32.gmra.mxu0 %v730
        %v859 = vpop.f32.mrf.mxu0
        %v860 = vadd.f32 %v709, %v859
        %v861 = vpop.f32.mrf.mxu0
        %862 = vmatprep.mubr.f32.mxu0 0.0
        %863 = vmatmul.mubr.f32.gmra.mxu0 %v733
        %v864 = vpop.f32.mrf.mxu0
        %v865 = vadd.f32 %v709, %v864
        %v866 = vpop.f32.mrf.mxu0
        %867 = vmatprep.mubr.f32.mxu0 0.0
        %868 = vmatmul.mubr.f32.gmra.mxu0 %v736
        %v869 = vpop.f32.mrf.mxu0
        %v870 = vadd.f32 %v709, %v869
        %v871 = vpop.f32.mrf.mxu0
        %872 = vmatprep.mubr.f32.mxu0 0.0
        %873 = vmatmul.mubr.f32.gmra.mxu0 %v739
        %v874 = vpop.f32.mrf.mxu0
        %v875 = vadd.f32 %v709, %v874
        %v876 = vpop.f32.mrf.mxu0
        %877 = vmatprep.mubr.f32.mxu0 0.0
        %878 = vmatmul.mubr.f32.gmra.mxu0 %v742
        %v879 = vpop.f32.mrf.mxu0
        %v880 = vadd.f32 %v709, %v879
        %v881 = vpop.f32.mrf.mxu0
        %882 = vmatprep.mubr.f32.mxu0 0.0
        %883 = vmatmul.mubr.f32.gmra.mxu0 %v745
        %v884 = vpop.f32.mrf.mxu0
        %v885 = vadd.f32 %v709, %v884
        %v886 = vpop.f32.mrf.mxu0
        %887 = vmatprep.mubr.f32.mxu0 0.0
        %888 = vmatmul.mubr.f32.gmra.mxu0 %v748
        %v889 = vpop.f32.mrf.mxu0
        %v890 = vadd.f32 %v709, %v889
        %v891 = vpop.f32.mrf.mxu0
        %892 = vmatprep.mubr.f32.mxu0 0.0
        %893 = vmatmul.mubr.f32.gmra.mxu0 %v751
        %v894 = vpop.f32.mrf.mxu0
        %v895 = vadd.f32 %v709, %v894
        %v896 = vpop.f32.mrf.mxu0
        %897 = vmatprep.mubr.f32.mxu0 0.0
        %898 = vmatmul.mubr.f32.gmra.mxu0 %v754
        %v899 = vpop.f32.mrf.mxu0
        %v900 = vadd.f32 %v709, %v899
        %v901 = vpop.f32.mrf.mxu0
        %902 = vmatprep.mubr.f32.mxu0 0.0
        %903 = vmatmul.mubr.f32.gmra.mxu0 %v757
        %v904 = vpop.f32.mrf.mxu0
        %v905 = vadd.f32 %v709, %v904
        %v906 = vpop.f32.mrf.mxu0
        %907 = vdwg.mxu0
        %v908 = vmax.f32 %v830, 0.0
        %v909 = vmax.f32 %v835, 0.0
        %v910 = vmax.f32 %v840, 0.0
        %v911 = vmax.f32 %v845, 0.0
        %v912 = vmax.f32 %v850, 0.0
        %v913 = vmax.f32 %v855, 0.0
        %v914 = vmax.f32 %v860, 0.0
        %v915 = vmax.f32 %v865, 0.0
        %v916 = vmax.f32 %v870, 0.0
        %v917 = vmax.f32 %v875, 0.0
        %v918 = vmax.f32 %v880, 0.0
        %v919 = vmax.f32 %v885, 0.0
        %v920 = vmax.f32 %v890, 0.0
        %v921 = vmax.f32 %v895, 0.0
        %v922 = vmax.f32 %v900, 0.0
        %v923 = vmax.f32 %v905, 0.0
        %s924 = scalar_lea.vmem [#allocation3], 176
        %925 = vst.msk [vmem:[%s924 + $0x1] sm:$0xff] %vm571, %v908
        %926 = vst.msk [vmem:[%s924 + $0x11] sm:$0xff] %vm571, %v909
        %927 = vst.msk [vmem:[%s924 + $0x21] sm:$0xff] %vm571, %v910
        %928 = vst.msk [vmem:[%s924 + $0x31] sm:$0xff] %vm571, %v911
        %929 = vst.msk [vmem:[%s924 + $0x41] sm:$0xff] %vm571, %v912
        %930 = vst.msk [vmem:[%s924 + $0x51] sm:$0xff] %vm571, %v913
        %931 = vst.msk [vmem:[%s924 + $0x61] sm:$0xff] %vm571, %v914
        %932 = vst.msk [vmem:[%s924 + $0x71] sm:$0xff] %vm571, %v915
        %933 = vst.msk [vmem:[%s924 + $0xa1] sm:$0xff] %vm571, %v916
        %934 = vst.msk [vmem:[%s924 + $0xb1] sm:$0xff] %vm571, %v917
        %935 = vst.msk [vmem:[%s924 + $0xc1] sm:$0xff] %vm571, %v918
        %936 = vst.msk [vmem:[%s924 + $0xd1] sm:$0xff] %vm571, %v919
        %937 = vst.msk [vmem:[%s924 + $0xe1] sm:$0xff] %vm571, %v920
        %938 = vst.msk [vmem:[%s924 + $0xf1] sm:$0xff] %vm571, %v921
        %939 = vst.msk [vmem:[%s924 + $0x101] sm:$0xff] %vm571, %v922
        %940 = vst.msk [vmem:[%s924 + $0x111] sm:$0xff] %vm571, %v923
        %p941 = scmp.gt.s32.totalorder %s28, 0
        // Predicated region
        $region57: #{inception_forward.1} parent=55 // pred_check
          %p942 = pneg %p941
        $region58: #{inception_forward.1} parent=55 // pred_check_branch
          %944 = sbr.rel (%p942) target = $region60
        $region59: #{inception_forward.1} parent=55 // pred_region
          %s945 = scalar_lea.vmem %s453, 64
          %v946 = vld [vmem:[%s945] sm:$0xff]
          %v947 = vld [vmem:[%s945 + $0x8] sm:$0xff]
          %v948 = vld [vmem:[%s945 + $0x10] sm:$0xff]
          %v949 = vld [vmem:[%s945 + $0x18] sm:$0xff]
          %v950 = vld [vmem:[%s945 + $0x20] sm:$0xff]
          %v951 = vld [vmem:[%s945 + $0x28] sm:$0xff]
          %v952 = vld [vmem:[%s945 + $0x30] sm:$0xff]
          %v953 = vld [vmem:[%s945 + $0x38] sm:$0xff]
          %s954 = scalar_lea.vmem [#allocation2], 16
          %955 = vst.msk [vmem:[%s954 + $0x1] sm:$0xff] %vm489, %v946
          %956 = vst.msk [vmem:[%s954 + $0x11] sm:$0xff] %vm489, %v947
          %957 = vst.msk [vmem:[%s954 + $0x21] sm:$0xff] %vm489, %v948
          %958 = vst.msk [vmem:[%s954 + $0x31] sm:$0xff] %vm489, %v949
          %959 = vst.msk [vmem:[%s954 + $0x41] sm:$0xff] %vm489, %v950
          %960 = vst.msk [vmem:[%s954 + $0x51] sm:$0xff] %vm489, %v951
          %961 = vst.msk [vmem:[%s954 + $0x61] sm:$0xff] %vm489, %v952
          %962 = vst.msk [vmem:[%s954 + $0x71] sm:$0xff] %vm489, %v953
          %v963 = vld [vmem:[%s3] sm:$0xf]
          %v964 = vld [vmem:[%s4] sm:$0x1]
          %v966 = vlaneseq
          %v967 = vshrl.u32 %v966, 7
          %v968 = vsub.s32 0, %v967
          %v969 = vrot.slane %v964, %v968
          %v972 = vsel %vm489, %v946, 0
          %v975 = vsel %vm489, %v947, 0
          %v978 = vsel %vm489, %v948, 0
          %v981 = vsel %vm489, %v949, 0
          %v984 = vsel %vm489, %v950, 0
          %v987 = vsel %vm489, %v951, 0
          %v990 = vsel %vm489, %v952, 0
          %v993 = vsel %vm489, %v953, 0
          %v996 = vsel %vm759, %v963, 0
          %998 = vmatprep.subr.mxu0 0.0
          %999 = vmatpush1.msra.mxu0 0.0
          %1000 = vmatprep.subr.mxu0 0.0
          %1001 = vmatpush1.msra.mxu0 0.0
          %1002 = vmatprep.subr.mxu0 0.0
          %1003 = vmatpush1.msra.mxu0 0.0
          %1004 = vmatprep.subr.mxu0 0.0
          %1005 = vmatpush1.msra.mxu0 0.0
          %1006 = vmatprep.subr.mxu0 0.0
          %1007 = vmatpush1.msra.mxu0 0.0
          %1008 = vmatprep.subr.mxu0 0.0
          %1009 = vmatpush1.msra.mxu0 0.0
          %1010 = vmatprep.subr.mxu0 0.0
          %1011 = vmatpush1.msra.mxu0 0.0
          %1012 = vmatprep.subr.mxu0 0.0
          %1013 = vmatpush1.msra.mxu0 0.0
          %1014 = vmatprep.subr.mxu0 0.0
          %1015 = vmatpush1.msra.mxu0 0.0
          %1016 = vmatprep.subr.mxu0 0.0
          %1017 = vmatpush1.msra.mxu0 0.0
          %1018 = vmatprep.subr.mxu0 0.0
          %1019 = vmatpush1.msra.mxu0 0.0
          %1020 = vmatprep.subr.mxu0 0.0
          %1021 = vmatpush1.msra.mxu0 0.0
          %1022 = vmatprep.subr.mxu0 0.0
          %1023 = vmatpush1.msra.mxu0 0.0
          %1024 = vmatprep.subr.mxu0 0.0
          %1025 = vmatpush1.msra.mxu0 0.0
          %1026 = vmatprep.subr.mxu0 0.0
          %1027 = vmatpush1.msra.mxu0 0.0
          %1028 = vmatprep.subr.mxu0 0.0
          %1029 = vmatpush1.msra.mxu0 %v996
          %1030 = vmatprep.subr.mxu0 0.0
          %1031 = vmatpush2.msra.mxu0 0.0
          %1032 = vmatprep.subr.mxu0 0.0
          %1033 = vmatpush2.msra.mxu0 0.0
          %1034 = vmatprep.subr.mxu0 0.0
          %1035 = vmatpush2.msra.mxu0 0.0
          %1036 = vmatprep.subr.mxu0 0.0
          %1037 = vmatpush2.msra.mxu0 0.0
          %1038 = vmatprep.subr.mxu0 0.0
          %1039 = vmatpush2.msra.mxu0 0.0
          %1040 = vmatprep.subr.mxu0 0.0
          %1041 = vmatpush2.msra.mxu0 0.0
          %1042 = vmatprep.subr.mxu0 0.0
          %1043 = vmatpush2.msra.mxu0 0.0
          %1044 = vmatprep.subr.mxu0 0.0
          %1045 = vmatpush2.msra.mxu0 0.0
          %1046 = vmatprep.subr.mxu0 0.0
          %1047 = vmatpush2.msra.mxu0 0.0
          %1048 = vmatprep.subr.mxu0 0.0
          %1049 = vmatpush2.msra.mxu0 0.0
          %1050 = vmatprep.subr.mxu0 0.0
          %1051 = vmatpush2.msra.mxu0 0.0
          %1052 = vmatprep.subr.mxu0 0.0
          %1053 = vmatpush2.msra.mxu0 0.0
          %1054 = vmatprep.subr.mxu0 0.0
          %1055 = vmatpush2.msra.mxu0 0.0
          %1056 = vmatprep.subr.mxu0 0.0
          %1057 = vmatpush2.msra.mxu0 0.0
          %1058 = vmatprep.subr.mxu0 0.0
          %1059 = vmatpush2.msra.mxu0 0.0
          %1060 = vmatprep.subr.mxu0 0.0
          %1061 = vmatpush2.msra.mxu0 0.0
          %1062 = vmatprep.mubr.f32.mxu0 0.0
          %1063 = vmatmul.mubr.f32.gmra.mxu0 %v972
          %v1064 = vpop.f32.mrf.mxu0
          %v1065 = vadd.f32 %v969, %v1064
          %v1066 = vpop.f32.mrf.mxu0
          %1067 = vmatprep.mubr.f32.mxu0 0.0
          %1068 = vmatmul.mubr.f32.gmra.mxu0 %v975
          %v1069 = vpop.f32.mrf.mxu0
          %v1070 = vadd.f32 %v969, %v1069
          %v1071 = vpop.f32.mrf.mxu0
          %1072 = vmatprep.mubr.f32.mxu0 0.0
          %1073 = vmatmul.mubr.f32.gmra.mxu0 %v978
          %v1074 = vpop.f32.mrf.mxu0
          %v1075 = vadd.f32 %v969, %v1074
          %v1076 = vpop.f32.mrf.mxu0
          %1077 = vmatprep.mubr.f32.mxu0 0.0
          %1078 = vmatmul.mubr.f32.gmra.mxu0 %v981
          %v1079 = vpop.f32.mrf.mxu0
          %v1080 = vadd.f32 %v969, %v1079
          %v1081 = vpop.f32.mrf.mxu0
          %1082 = vmatprep.mubr.f32.mxu0 0.0
          %1083 = vmatmul.mubr.f32.gmra.mxu0 %v984
          %v1084 = vpop.f32.mrf.mxu0
          %v1085 = vadd.f32 %v969, %v1084
          %v1086 = vpop.f32.mrf.mxu0
          %1087 = vmatprep.mubr.f32.mxu0 0.0
          %1088 = vmatmul.mubr.f32.gmra.mxu0 %v987
          %v1089 = vpop.f32.mrf.mxu0
          %v1090 = vadd.f32 %v969, %v1089
          %v1091 = vpop.f32.mrf.mxu0
          %1092 = vmatprep.mubr.f32.mxu0 0.0
          %1093 = vmatmul.mubr.f32.gmra.mxu0 %v990
          %v1094 = vpop.f32.mrf.mxu0
          %v1095 = vadd.f32 %v969, %v1094
          %v1096 = vpop.f32.mrf.mxu0
          %1097 = vmatprep.mubr.f32.mxu0 0.0
          %1098 = vmatmul.mubr.f32.gmra.mxu0 %v993
          %v1099 = vpop.f32.mrf.mxu0
          %v1100 = vadd.f32 %v969, %v1099
          %v1101 = vpop.f32.mrf.mxu0
          %1102 = vdwg.mxu0
          %v1103 = vmax.f32 %v1065, 0.0
          %v1104 = vmax.f32 %v1070, 0.0
          %v1105 = vmax.f32 %v1075, 0.0
          %v1106 = vmax.f32 %v1080, 0.0
          %v1107 = vmax.f32 %v1085, 0.0
          %v1108 = vmax.f32 %v1090, 0.0
          %v1109 = vmax.f32 %v1095, 0.0
          %v1110 = vmax.f32 %v1100, 0.0
          %s1111 = scalar_lea.vmem [#allocation3], 16
          %1112 = vst.msk [vmem:[%s1111 + $0x1] sm:$0xff] %vm571, %v1103
          %1113 = vst.msk [vmem:[%s1111 + $0x11] sm:$0xff] %vm571, %v1104
          %1114 = vst.msk [vmem:[%s1111 + $0x21] sm:$0xff] %vm571, %v1105
          %1115 = vst.msk [vmem:[%s1111 + $0x31] sm:$0xff] %vm571, %v1106
          %1116 = vst.msk [vmem:[%s1111 + $0x41] sm:$0xff] %vm571, %v1107
          %1117 = vst.msk [vmem:[%s1111 + $0x51] sm:$0xff] %vm571, %v1108
          %1118 = vst.msk [vmem:[%s1111 + $0x61] sm:$0xff] %vm571, %v1109
          %1119 = vst.msk [vmem:[%s1111 + $0x71] sm:$0xff] %vm571, %v1110
        $region60: #{inception_forward.1} parent=55 // pred_fallthru
          _
        %p1120 = scmp.lt.s32.totalorder %s28, 1
        // Predicated region
        $region61: #{inception_forward.1} parent=55 // pred_check
          %p1121 = pneg %p1120
        $region62: #{inception_forward.1} parent=55 // pred_check_branch
          %1123 = sbr.rel (%p1121) target = $region64
        $region63: #{inception_forward.1} parent=55 // pred_region
          %v1124 = vld [vmem:[%s481] sm:$0xff]
          %v1125 = vld [vmem:[%s481 + $0x8] sm:$0xff]
          %v1126 = vld [vmem:[%s481 + $0x10] sm:$0xff]
          %v1127 = vld [vmem:[%s481 + $0x18] sm:$0xff]
          %v1128 = vld [vmem:[%s481 + $0x20] sm:$0xff]
          %v1129 = vld [vmem:[%s481 + $0x28] sm:$0xff]
          %v1130 = vld [vmem:[%s481 + $0x30] sm:$0xff]
          %v1131 = vld [vmem:[%s481 + $0x38] sm:$0xff]
          %s1132 = scalar_lea.vmem [#allocation2], 496
          %1133 = vst.msk [vmem:[%s1132 + $0x1] sm:$0xff] %vm489, %v1124
          %1134 = vst.msk [vmem:[%s1132 + $0x11] sm:$0xff] %vm489, %v1125
          %1135 = vst.msk [vmem:[%s1132 + $0x21] sm:$0xff] %vm489, %v1126
          %1136 = vst.msk [vmem:[%s1132 + $0x31] sm:$0xff] %vm489, %v1127
          %1137 = vst.msk [vmem:[%s1132 + $0x41] sm:$0xff] %vm489, %v1128
          %1138 = vst.msk [vmem:[%s1132 + $0x51] sm:$0xff] %vm489, %v1129
          %1139 = vst.msk [vmem:[%s1132 + $0x61] sm:$0xff] %vm489, %v1130
          %1140 = vst.msk [vmem:[%s1132 + $0x71] sm:$0xff] %vm489, %v1131
          %v1141 = vld [vmem:[%s3] sm:$0xf]
          %v1142 = vld [vmem:[%s4] sm:$0x1]
          %v1144 = vlaneseq
          %v1145 = vshrl.u32 %v1144, 7
          %v1146 = vsub.s32 0, %v1145
          %v1147 = vrot.slane %v1142, %v1146
          %v1150 = vsel %vm489, %v1124, 0
          %v1153 = vsel %vm489, %v1125, 0
          %v1156 = vsel %vm489, %v1126, 0
          %v1159 = vsel %vm489, %v1127, 0
          %v1162 = vsel %vm489, %v1128, 0
          %v1165 = vsel %vm489, %v1129, 0
          %v1168 = vsel %vm489, %v1130, 0
          %v1171 = vsel %vm489, %v1131, 0
          %v1174 = vsel %vm759, %v1141, 0
          %1176 = vmatprep.subr.mxu0 0.0
          %1177 = vmatpush1.msra.mxu0 0.0
          %1178 = vmatprep.subr.mxu0 0.0
          %1179 = vmatpush1.msra.mxu0 0.0
          %1180 = vmatprep.subr.mxu0 0.0
          %1181 = vmatpush1.msra.mxu0 0.0
          %1182 = vmatprep.subr.mxu0 0.0
          %1183 = vmatpush1.msra.mxu0 0.0
          %1184 = vmatprep.subr.mxu0 0.0
          %1185 = vmatpush1.msra.mxu0 0.0
          %1186 = vmatprep.subr.mxu0 0.0
          %1187 = vmatpush1.msra.mxu0 0.0
          %1188 = vmatprep.subr.mxu0 0.0
          %1189 = vmatpush1.msra.mxu0 0.0
          %1190 = vmatprep.subr.mxu0 0.0
          %1191 = vmatpush1.msra.mxu0 0.0
          %1192 = vmatprep.subr.mxu0 0.0
          %1193 = vmatpush1.msra.mxu0 0.0
          %1194 = vmatprep.subr.mxu0 0.0
          %1195 = vmatpush1.msra.mxu0 0.0
          %1196 = vmatprep.subr.mxu0 0.0
          %1197 = vmatpush1.msra.mxu0 0.0
          %1198 = vmatprep.subr.mxu0 0.0
          %1199 = vmatpush1.msra.mxu0 0.0
          %1200 = vmatprep.subr.mxu0 0.0
          %1201 = vmatpush1.msra.mxu0 0.0
          %1202 = vmatprep.subr.mxu0 0.0
          %1203 = vmatpush1.msra.mxu0 0.0
          %1204 = vmatprep.subr.mxu0 0.0
          %1205 = vmatpush1.msra.mxu0 0.0
          %1206 = vmatprep.subr.mxu0 0.0
          %1207 = vmatpush1.msra.mxu0 %v1174
          %1208 = vmatprep.subr.mxu0 0.0
          %1209 = vmatpush2.msra.mxu0 0.0
          %1210 = vmatprep.subr.mxu0 0.0
          %1211 = vmatpush2.msra.mxu0 0.0
          %1212 = vmatprep.subr.mxu0 0.0
          %1213 = vmatpush2.msra.mxu0 0.0
          %1214 = vmatprep.subr.mxu0 0.0
          %1215 = vmatpush2.msra.mxu0 0.0
          %1216 = vmatprep.subr.mxu0 0.0
          %1217 = vmatpush2.msra.mxu0 0.0
          %1218 = vmatprep.subr.mxu0 0.0
          %1219 = vmatpush2.msra.mxu0 0.0
          %1220 = vmatprep.subr.mxu0 0.0
          %1221 = vmatpush2.msra.mxu0 0.0
          %1222 = vmatprep.subr.mxu0 0.0
          %1223 = vmatpush2.msra.mxu0 0.0
          %1224 = vmatprep.subr.mxu0 0.0
          %1225 = vmatpush2.msra.mxu0 0.0
          %1226 = vmatprep.subr.mxu0 0.0
          %1227 = vmatpush2.msra.mxu0 0.0
          %1228 = vmatprep.subr.mxu0 0.0
          %1229 = vmatpush2.msra.mxu0 0.0
          %1230 = vmatprep.subr.mxu0 0.0
          %1231 = vmatpush2.msra.mxu0 0.0
          %1232 = vmatprep.subr.mxu0 0.0
          %1233 = vmatpush2.msra.mxu0 0.0
          %1234 = vmatprep.subr.mxu0 0.0
          %1235 = vmatpush2.msra.mxu0 0.0
          %1236 = vmatprep.subr.mxu0 0.0
          %1237 = vmatpush2.msra.mxu0 0.0
          %1238 = vmatprep.subr.mxu0 0.0
          %1239 = vmatpush2.msra.mxu0 0.0
          %1240 = vmatprep.mubr.f32.mxu0 0.0
          %1241 = vmatmul.mubr.f32.gmra.mxu0 %v1150
          %v1242 = vpop.f32.mrf.mxu0
          %v1243 = vadd.f32 %v1147, %v1242
          %v1244 = vpop.f32.mrf.mxu0
          %1245 = vmatprep.mubr.f32.mxu0 0.0
          %1246 = vmatmul.mubr.f32.gmra.mxu0 %v1153
          %v1247 = vpop.f32.mrf.mxu0
          %v1248 = vadd.f32 %v1147, %v1247
          %v1249 = vpop.f32.mrf.mxu0
          %1250 = vmatprep.mubr.f32.mxu0 0.0
          %1251 = vmatmul.mubr.f32.gmra.mxu0 %v1156
          %v1252 = vpop.f32.mrf.mxu0
          %v1253 = vadd.f32 %v1147, %v1252
          %v1254 = vpop.f32.mrf.mxu0
          %1255 = vmatprep.mubr.f32.mxu0 0.0
          %1256 = vmatmul.mubr.f32.gmra.mxu0 %v1159
          %v1257 = vpop.f32.mrf.mxu0
          %v1258 = vadd.f32 %v1147, %v1257
          %v1259 = vpop.f32.mrf.mxu0
          %1260 = vmatprep.mubr.f32.mxu0 0.0
          %1261 = vmatmul.mubr.f32.gmra.mxu0 %v1162
          %v1262 = vpop.f32.mrf.mxu0
          %v1263 = vadd.f32 %v1147, %v1262
          %v1264 = vpop.f32.mrf.mxu0
          %1265 = vmatprep.mubr.f32.mxu0 0.0
          %1266 = vmatmul.mubr.f32.gmra.mxu0 %v1165
          %v1267 = vpop.f32.mrf.mxu0
          %v1268 = vadd.f32 %v1147, %v1267
          %v1269 = vpop.f32.mrf.mxu0
          %1270 = vmatprep.mubr.f32.mxu0 0.0
          %1271 = vmatmul.mubr.f32.gmra.mxu0 %v1168
          %v1272 = vpop.f32.mrf.mxu0
          %v1273 = vadd.f32 %v1147, %v1272
          %v1274 = vpop.f32.mrf.mxu0
          %1275 = vmatprep.mubr.f32.mxu0 0.0
          %1276 = vmatmul.mubr.f32.gmra.mxu0 %v1171
          %v1277 = vpop.f32.mrf.mxu0
          %v1278 = vadd.f32 %v1147, %v1277
          %v1279 = vpop.f32.mrf.mxu0
          %1280 = vdwg.mxu0
          %v1281 = vmax.f32 %v1243, 0.0
          %v1282 = vmax.f32 %v1248, 0.0
          %v1283 = vmax.f32 %v1253, 0.0
          %v1284 = vmax.f32 %v1258, 0.0
          %v1285 = vmax.f32 %v1263, 0.0
          %v1286 = vmax.f32 %v1268, 0.0
          %v1287 = vmax.f32 %v1273, 0.0
          %v1288 = vmax.f32 %v1278, 0.0
          %s1289 = scalar_lea.vmem [#allocation3], 496
          %1290 = vst.msk [vmem:[%s1289 + $0x1] sm:$0xff] %vm571, %v1281
          %1291 = vst.msk [vmem:[%s1289 + $0x11] sm:$0xff] %vm571, %v1282
          %1292 = vst.msk [vmem:[%s1289 + $0x21] sm:$0xff] %vm571, %v1283
          %1293 = vst.msk [vmem:[%s1289 + $0x31] sm:$0xff] %vm571, %v1284
          %1294 = vst.msk [vmem:[%s1289 + $0x41] sm:$0xff] %vm571, %v1285
          %1295 = vst.msk [vmem:[%s1289 + $0x51] sm:$0xff] %vm571, %v1286
          %1296 = vst.msk [vmem:[%s1289 + $0x61] sm:$0xff] %vm571, %v1287
          %1297 = vst.msk [vmem:[%s1289 + $0x71] sm:$0xff] %vm571, %v1288
        $region64: #{inception_forward.1} parent=55 // pred_fallthru
          _
        %v1298 = vld [vmem:[%s5] sm:$0xf]
        %v1300 = vsel %vm759, %v1298, 0
        %1302 = vmatprep.subr.mxu0 0.0
        %1303 = vmatpush1.msra.mxu0 0.0
        %1304 = vmatprep.subr.mxu0 0.0
        %1305 = vmatpush1.msra.mxu0 0.0
        %1306 = vmatprep.subr.mxu0 0.0
        %1307 = vmatpush1.msra.mxu0 0.0
        %1308 = vmatprep.subr.mxu0 0.0
        %1309 = vmatpush1.msra.mxu0 0.0
        %1310 = vmatprep.subr.mxu0 0.0
        %1311 = vmatpush1.msra.mxu0 0.0
        %1312 = vmatprep.subr.mxu0 0.0
        %1313 = vmatpush1.msra.mxu0 0.0
        %1314 = vmatprep.subr.mxu0 0.0
        %1315 = vmatpush1.msra.mxu0 0.0
        %1316 = vmatprep.subr.mxu0 0.0
        %1317 = vmatpush1.msra.mxu0 0.0
        %1318 = vmatprep.subr.mxu0 0.0
        %1319 = vmatpush1.msra.mxu0 0.0
        %1320 = vmatprep.subr.mxu0 0.0
        %1321 = vmatpush1.msra.mxu0 0.0
        %1322 = vmatprep.subr.mxu0 0.0
        %1323 = vmatpush1.msra.mxu0 0.0
        %1324 = vmatprep.subr.mxu0 0.0
        %1325 = vmatpush1.msra.mxu0 0.0
        %1326 = vmatprep.subr.mxu0 0.0
        %1327 = vmatpush1.msra.mxu0 0.0
        %1328 = vmatprep.subr.mxu0 0.0
        %1329 = vmatpush1.msra.mxu0 0.0
        %1330 = vmatprep.subr.mxu0 0.0
        %1331 = vmatpush1.msra.mxu0 0.0
        %1332 = vmatprep.subr.mxu0 0.0
        %1333 = vmatpush1.msra.mxu0 %v1300
        %1334 = vmatprep.subr.mxu0 0.0
        %1335 = vmatpush2.msra.mxu0 0.0
        %1336 = vmatprep.subr.mxu0 0.0
        %1337 = vmatpush2.msra.mxu0 0.0
        %1338 = vmatprep.subr.mxu0 0.0
        %1339 = vmatpush2.msra.mxu0 0.0
        %1340 = vmatprep.subr.mxu0 0.0
        %1341 = vmatpush2.msra.mxu0 0.0
        %1342 = vmatprep.subr.mxu0 0.0
        %1343 = vmatpush2.msra.mxu0 0.0
        %1344 = vmatprep.subr.mxu0 0.0
        %1345 = vmatpush2.msra.mxu0 0.0
        %1346 = vmatprep.subr.mxu0 0.0
        %1347 = vmatpush2.msra.mxu0 0.0
        %1348 = vmatprep.subr.mxu0 0.0
        %1349 = vmatpush2.msra.mxu0 0.0
        %1350 = vmatprep.subr.mxu0 0.0
        %1351 = vmatpush2.msra.mxu0 0.0
        %1352 = vmatprep.subr.mxu0 0.0
        %1353 = vmatpush2.msra.mxu0 0.0
        %1354 = vmatprep.subr.mxu0 0.0
        %1355 = vmatpush2.msra.mxu0 0.0
        %1356 = vmatprep.subr.mxu0 0.0
        %1357 = vmatpush2.msra.mxu0 0.0
        %1358 = vmatprep.subr.mxu0 0.0
        %1359 = vmatpush2.msra.mxu0 0.0
        %1360 = vmatprep.subr.mxu0 0.0
        %1361 = vmatpush2.msra.mxu0 0.0
        %1362 = vmatprep.subr.mxu0 0.0
        %1363 = vmatpush2.msra.mxu0 0.0
        %1364 = vmatprep.subr.mxu0 0.0
        %1365 = vmatpush2.msra.mxu0 0.0
        %1366 = vmatprep.mubr.f32.mxu0 0.0
        %1367 = vmatmul.mubr.f32.gmra.mxu0 %v712
        %v1368 = vpop.f32.mrf.mxu0
        %v1369 = vadd.f32 0.0, %v1368
        %v1370 = vpop.f32.mrf.mxu0
        %1371 = vmatprep.mubr.f32.mxu0 0.0
        %1372 = vmatmul.mubr.f32.gmra.mxu0 %v715
        %v1373 = vpop.f32.mrf.mxu0
        %v1374 = vadd.f32 0.0, %v1373
        %v1375 = vpop.f32.mrf.mxu0
        %1376 = vmatprep.mubr.f32.mxu0 0.0
        %1377 = vmatmul.mubr.f32.gmra.mxu0 %v718
        %v1378 = vpop.f32.mrf.mxu0
        %v1379 = vadd.f32 0.0, %v1378
        %v1380 = vpop.f32.mrf.mxu0
        %1381 = vmatprep.mubr.f32.mxu0 0.0
        %1382 = vmatmul.mubr.f32.gmra.mxu0 %v721
        %v1383 = vpop.f32.mrf.mxu0
        %v1384 = vadd.f32 0.0, %v1383
        %v1385 = vpop.f32.mrf.mxu0
        %1386 = vmatprep.mubr.f32.mxu0 0.0
        %1387 = vmatmul.mubr.f32.gmra.mxu0 %v724
        %v1388 = vpop.f32.mrf.mxu0
        %v1389 = vadd.f32 0.0, %v1388
        %v1390 = vpop.f32.mrf.mxu0
        %1391 = vmatprep.mubr.f32.mxu0 0.0
        %1392 = vmatmul.mubr.f32.gmra.mxu0 %v727
        %v1393 = vpop.f32.mrf.mxu0
        %v1394 = vadd.f32 0.0, %v1393
        %v1395 = vpop.f32.mrf.mxu0
        %1396 = vmatprep.mubr.f32.mxu0 0.0
        %1397 = vmatmul.mubr.f32.gmra.mxu0 %v730
        %v1398 = vpop.f32.mrf.mxu0
        %v1399 = vadd.f32 0.0, %v1398
        %v1400 = vpop.f32.mrf.mxu0
        %1401 = vmatprep.mubr.f32.mxu0 0.0
        %1402 = vmatmul.mubr.f32.gmra.mxu0 %v733
        %v1403 = vpop.f32.mrf.mxu0
        %v1404 = vadd.f32 0.0, %v1403
        %v1405 = vpop.f32.mrf.mxu0
        %1406 = vmatprep.mubr.f32.mxu0 0.0
        %1407 = vmatmul.mubr.f32.gmra.mxu0 %v736
        %v1408 = vpop.f32.mrf.mxu0
        %v1409 = vadd.f32 0.0, %v1408
        %v1410 = vpop.f32.mrf.mxu0
        %1411 = vmatprep.mubr.f32.mxu0 0.0
        %1412 = vmatmul.mubr.f32.gmra.mxu0 %v739
        %v1413 = vpop.f32.mrf.mxu0
        %v1414 = vadd.f32 0.0, %v1413
        %v1415 = vpop.f32.mrf.mxu0
        %1416 = vmatprep.mubr.f32.mxu0 0.0
        %1417 = vmatmul.mubr.f32.gmra.mxu0 %v742
        %v1418 = vpop.f32.mrf.mxu0
        %v1419 = vadd.f32 0.0, %v1418
        %v1420 = vpop.f32.mrf.mxu0
        %1421 = vmatprep.mubr.f32.mxu0 0.0
        %1422 = vmatmul.mubr.f32.gmra.mxu0 %v745
        %v1423 = vpop.f32.mrf.mxu0
        %v1424 = vadd.f32 0.0, %v1423
        %v1425 = vpop.f32.mrf.mxu0
        %1426 = vmatprep.mubr.f32.mxu0 0.0
        %1427 = vmatmul.mubr.f32.gmra.mxu0 %v748
        %v1428 = vpop.f32.mrf.mxu0
        %v1429 = vadd.f32 0.0, %v1428
        %v1430 = vpop.f32.mrf.mxu0
        %1431 = vmatprep.mubr.f32.mxu0 0.0
        %1432 = vmatmul.mubr.f32.gmra.mxu0 %v751
        %v1433 = vpop.f32.mrf.mxu0
        %v1434 = vadd.f32 0.0, %v1433
        %v1435 = vpop.f32.mrf.mxu0
        %1436 = vmatprep.mubr.f32.mxu0 0.0
        %1437 = vmatmul.mubr.f32.gmra.mxu0 %v754
        %v1438 = vpop.f32.mrf.mxu0
        %v1439 = vadd.f32 0.0, %v1438
        %v1440 = vpop.f32.mrf.mxu0
        %1441 = vmatprep.mubr.f32.mxu0 0.0
        %1442 = vmatmul.mubr.f32.gmra.mxu0 %v757
        %v1443 = vpop.f32.mrf.mxu0
        %v1444 = vadd.f32 0.0, %v1443
        %v1445 = vpop.f32.mrf.mxu0
        %1446 = vdwg.mxu0
        loop: start=0, step=1, limit=3
        $region65: #{inception_forward.1} parent=55 // loop_pre_header
          _
        $region66: #{inception_forward.1} parent=55 // loop_header
          %s1448 = sphi 0, %s1452
          %p1449 = scmp.ge.s32.totalorder %s1448, 3
        $region67: #{inception_forward.1} parent=55 // loop_header_branch
          %1451 = sbr.rel (%p1449) target = $region71
        $region68: #{inception_forward.1} parent=55 // loop_body
          %s1453 = smul.u32 %s1448, 144
          %s1454 = scalar_lea.vmem %s6, %s1453
          %v1455 = vld [vmem:[%s1454] sm:$0xff]
          %v1456 = vld [vmem:[%s1454 + $0x8] sm:$0x3]
          %v1457 = vld [vmem:[%s1454 + $0x10] sm:$0xff]
          %v1458 = vld [vmem:[%s1454 + $0x18] sm:$0x3]
          %v1459 = vld [vmem:[%s1454 + $0x20] sm:$0xff]
          %v1460 = vld [vmem:[%s1454 + $0x28] sm:$0x3]
          %v1461 = vld [vmem:[%s1454 + $0x30] sm:$0xff]
          %v1462 = vld [vmem:[%s1454 + $0x38] sm:$0x3]
          %v1463 = vld [vmem:[%s1454 + $0x40] sm:$0xff]
          %v1464 = vld [vmem:[%s1454 + $0x48] sm:$0x3]
          %v1465 = vld [vmem:[%s1454 + $0x50] sm:$0xff]
          %v1466 = vld [vmem:[%s1454 + $0x58] sm:$0x3]
          %v1467 = vld [vmem:[%s1454 + $0x60] sm:$0xff]
          %v1468 = vld [vmem:[%s1454 + $0x68] sm:$0x3]
          %v1469 = vld [vmem:[%s1454 + $0x70] sm:$0xff]
          %v1470 = vld [vmem:[%s1454 + $0x78] sm:$0x3]
          %v1471 = vld [vmem:[%s1454 + $0x80] sm:$0xff]
          %v1472 = vld [vmem:[%s1454 + $0x88] sm:$0x3]
          %s1473 = smul.u32 %s1448, 160
          %s1474 = scalar_lea.vmem [#allocation3], %s1473
          %v1475 = vld [vmem:[%s1474] sm:$0xff]
          %v1476 = vld [vmem:[%s1474 + $0x10] sm:$0xff]
          %v1477 = vld [vmem:[%s1474 + $0x20] sm:$0xff]
          %v1478 = vld [vmem:[%s1474 + $0x30] sm:$0xff]
          %v1479 = vld [vmem:[%s1474 + $0x40] sm:$0xff]
          %v1480 = vld [vmem:[%s1474 + $0x50] sm:$0xff]
          %v1481 = vld [vmem:[%s1474 + $0x60] sm:$0xff]
          %v1482 = vld [vmem:[%s1474 + $0x70] sm:$0xff]
          %v1483 = vld [vmem:[%s1474 + $0xa0] sm:$0xff]
          %v1484 = vld [vmem:[%s1474 + $0xb0] sm:$0xff]
          %v1485 = vld [vmem:[%s1474 + $0xc0] sm:$0xff]
          %v1486 = vld [vmem:[%s1474 + $0xd0] sm:$0xff]
          %v1487 = vld [vmem:[%s1474 + $0xe0] sm:$0xff]
          %v1488 = vld [vmem:[%s1474 + $0xf0] sm:$0xff]
          %v1489 = vld [vmem:[%s1474 + $0x100] sm:$0xff]
          %v1490 = vld [vmem:[%s1474 + $0x110] sm:$0xff]
          %v1491 = vld [vmem:[#allocation4] sm:$0xff]
          %v1492 = vld [vmem:[#allocation4 + $0x8] sm:$0xff]
          %v1493 = vld [vmem:[#allocation4 + $0x10] sm:$0xff]
          %v1494 = vld [vmem:[#allocation4 + $0x18] sm:$0xff]
          %v1495 = vld [vmem:[#allocation4 + $0x20] sm:$0xff]
          %v1496 = vld [vmem:[#allocation4 + $0x28] sm:$0xff]
          %v1497 = vld [vmem:[#allocation4 + $0x30] sm:$0xff]
          %v1498 = vld [vmem:[#allocation4 + $0x38] sm:$0xff]
          %v1499 = vld [vmem:[#allocation4 + $0x40] sm:$0xff]
          %v1500 = vld [vmem:[#allocation4 + $0x48] sm:$0xff]
          %v1501 = vld [vmem:[#allocation4 + $0x50] sm:$0xff]
          %v1502 = vld [vmem:[#allocation4 + $0x58] sm:$0xff]
          %v1503 = vld [vmem:[#allocation4 + $0x60] sm:$0xff]
          %v1504 = vld [vmem:[#allocation4 + $0x68] sm:$0xff]
          %v1505 = vld [vmem:[#allocation4 + $0x70] sm:$0xff]
          %v1506 = vld [vmem:[#allocation4 + $0x78] sm:$0xff]
          %v1508 = vsel %vm571, %v1475, 0
          %v1511 = vsel %vm571, %v1476, 0
          %v1514 = vsel %vm571, %v1477, 0
          %v1517 = vsel %vm571, %v1478, 0
          %v1520 = vsel %vm571, %v1479, 0
          %v1523 = vsel %vm571, %v1480, 0
          %v1526 = vsel %vm571, %v1481, 0
          %v1529 = vsel %vm571, %v1482, 0
          %v1532 = vsel %vm571, %v1483, 0
          %v1535 = vsel %vm571, %v1484, 0
          %v1538 = vsel %vm571, %v1485, 0
          %v1541 = vsel %vm571, %v1486, 0
          %v1544 = vsel %vm571, %v1487, 0
          %v1547 = vsel %vm571, %v1488, 0
          %v1550 = vsel %vm571, %v1489, 0
          %v1553 = vsel %vm571, %v1490, 0
          %vm1555 = vcmask 1041408
          %v1557 = vsel %vm1555, %v1456, 0
          %1559 = vmatprep.subr.mxu0 0.0
          %1560 = vmatpush1.msra.mxu0 0.0
          %1561 = vmatprep.subr.mxu0 0.0
          %1562 = vmatpush1.msra.mxu0 0.0
          %1563 = vmatprep.subr.mxu0 0.0
          %1564 = vmatpush1.msra.mxu0 0.0
          %1565 = vmatprep.subr.mxu0 0.0
          %1566 = vmatpush1.msra.mxu0 0.0
          %1567 = vmatprep.subr.mxu0 0.0
          %1568 = vmatpush1.msra.mxu0 0.0
          %1569 = vmatprep.subr.mxu0 0.0
          %1570 = vmatpush1.msra.mxu0 0.0
          %1571 = vmatprep.subr.mxu0 0.0
          %1572 = vmatpush1.msra.mxu0 0.0
          %1573 = vmatprep.subr.mxu0 0.0
          %1574 = vmatpush1.msra.mxu0 0.0
          %1575 = vmatprep.subr.mxu0 0.0
          %1576 = vmatpush1.msra.mxu0 0.0
          %1577 = vmatprep.subr.mxu0 0.0
          %1578 = vmatpush1.msra.mxu0 0.0
          %1579 = vmatprep.subr.mxu0 0.0
          %1580 = vmatpush1.msra.mxu0 0.0
          %1581 = vmatprep.subr.mxu0 0.0
          %1582 = vmatpush1.msra.mxu0 0.0
          %1583 = vmatprep.subr.mxu0 0.0
          %1584 = vmatpush1.msra.mxu0 0.0
          %1585 = vmatprep.subr.mxu0 0.0
          %1586 = vmatpush1.msra.mxu0 0.0
          %1587 = vmatprep.subr.mxu0 0.0
          %1588 = vmatpush1.msra.mxu0 %v1557
          %1589 = vmatprep.subr.mxu0 0.0
          %1590 = vmatpush1.msra.mxu0 %v1455
          %1591 = vmatprep.subr.mxu0 0.0
          %1592 = vmatpush2.msra.mxu0 0.0
          %1593 = vmatprep.subr.mxu0 0.0
          %1594 = vmatpush2.msra.mxu0 0.0
          %1595 = vmatprep.subr.mxu0 0.0
          %1596 = vmatpush2.msra.mxu0 0.0
          %1597 = vmatprep.subr.mxu0 0.0
          %1598 = vmatpush2.msra.mxu0 0.0
          %1599 = vmatprep.subr.mxu0 0.0
          %1600 = vmatpush2.msra.mxu0 0.0
          %1601 = vmatprep.subr.mxu0 0.0
          %1602 = vmatpush2.msra.mxu0 0.0
          %1603 = vmatprep.subr.mxu0 0.0
          %1604 = vmatpush2.msra.mxu0 0.0
          %1605 = vmatprep.subr.mxu0 0.0
          %1606 = vmatpush2.msra.mxu0 0.0
          %1607 = vmatprep.subr.mxu0 0.0
          %1608 = vmatpush2.msra.mxu0 0.0
          %1609 = vmatprep.subr.mxu0 0.0
          %1610 = vmatpush2.msra.mxu0 0.0
          %1611 = vmatprep.subr.mxu0 0.0
          %1612 = vmatpush2.msra.mxu0 0.0
          %1613 = vmatprep.subr.mxu0 0.0
          %1614 = vmatpush2.msra.mxu0 0.0
          %1615 = vmatprep.subr.mxu0 0.0
          %1616 = vmatpush2.msra.mxu0 0.0
          %1617 = vmatprep.subr.mxu0 0.0
          %1618 = vmatpush2.msra.mxu0 0.0
          %1619 = vmatprep.subr.mxu0 0.0
          %1620 = vmatpush2.msra.mxu0 0.0
          %1621 = vmatprep.subr.mxu0 0.0
          %1622 = vmatpush2.msra.mxu0 0.0
          %1623 = vmatprep.mubr.f32.mxu0 0.0
          %1624 = vmatmul.mubr.f32.gmra.mxu0 %v1508
          %v1625 = vpop.f32.mrf.mxu0
          %v1626 = vadd.f32 0.0, %v1625
          %v1627 = vpop.f32.mrf.mxu0
          %1628 = vmatprep.mubr.f32.mxu0 0.0
          %1629 = vmatmul.mubr.f32.gmra.mxu0 %v1511
          %v1630 = vpop.f32.mrf.mxu0
          %v1631 = vadd.f32 0.0, %v1630
          %v1632 = vpop.f32.mrf.mxu0
          %1633 = vmatprep.mubr.f32.mxu0 0.0
          %1634 = vmatmul.mubr.f32.gmra.mxu0 %v1514
          %v1635 = vpop.f32.mrf.mxu0
          %v1636 = vadd.f32 0.0, %v1635
          %v1637 = vpop.f32.mrf.mxu0
          %1638 = vmatprep.mubr.f32.mxu0 0.0
          %1639 = vmatmul.mubr.f32.gmra.mxu0 %v1517
          %v1640 = vpop.f32.mrf.mxu0
          %v1641 = vadd.f32 0.0, %v1640
          %v1642 = vpop.f32.mrf.mxu0
          %1643 = vmatprep.mubr.f32.mxu0 0.0
          %1644 = vmatmul.mubr.f32.gmra.mxu0 %v1520
          %v1645 = vpop.f32.mrf.mxu0
          %v1646 = vadd.f32 0.0, %v1645
          %v1647 = vpop.f32.mrf.mxu0
          %1648 = vmatprep.mubr.f32.mxu0 0.0
          %1649 = vmatmul.mubr.f32.gmra.mxu0 %v1523
          %v1650 = vpop.f32.mrf.mxu0
          %v1651 = vadd.f32 0.0, %v1650
          %v1652 = vpop.f32.mrf.mxu0
          %1653 = vmatprep.mubr.f32.mxu0 0.0
          %1654 = vmatmul.mubr.f32.gmra.mxu0 %v1526
          %v1655 = vpop.f32.mrf.mxu0
          %v1656 = vadd.f32 0.0, %v1655
          %v1657 = vpop.f32.mrf.mxu0
          %1658 = vmatprep.mubr.f32.mxu0 0.0
          %1659 = vmatmul.mubr.f32.gmra.mxu0 %v1529
          %v1660 = vpop.f32.mrf.mxu0
          %v1661 = vadd.f32 0.0, %v1660
          %v1662 = vpop.f32.mrf.mxu0
          %1663 = vmatprep.mubr.f32.mxu0 0.0
          %1664 = vmatmul.mubr.f32.gmra.mxu0 %v1532
          %v1665 = vpop.f32.mrf.mxu0
          %v1666 = vadd.f32 0.0, %v1665
          %v1667 = vpop.f32.mrf.mxu0
          %1668 = vmatprep.mubr.f32.mxu0 0.0
          %1669 = vmatmul.mubr.f32.gmra.mxu0 %v1535
          %v1670 = vpop.f32.mrf.mxu0
          %v1671 = vadd.f32 0.0, %v1670
          %v1672 = vpop.f32.mrf.mxu0
          %1673 = vmatprep.mubr.f32.mxu0 0.0
          %1674 = vmatmul.mubr.f32.gmra.mxu0 %v1538
          %v1675 = vpop.f32.mrf.mxu0
          %v1676 = vadd.f32 0.0, %v1675
          %v1677 = vpop.f32.mrf.mxu0
          %1678 = vmatprep.mubr.f32.mxu0 0.0
          %1679 = vmatmul.mubr.f32.gmra.mxu0 %v1541
          %v1680 = vpop.f32.mrf.mxu0
          %v1681 = vadd.f32 0.0, %v1680
          %v1682 = vpop.f32.mrf.mxu0
          %1683 = vmatprep.mubr.f32.mxu0 0.0
          %1684 = vmatmul.mubr.f32.gmra.mxu0 %v1544
          %v1685 = vpop.f32.mrf.mxu0
          %v1686 = vadd.f32 0.0, %v1685
          %v1687 = vpop.f32.mrf.mxu0
          %1688 = vmatprep.mubr.f32.mxu0 0.0
          %1689 = vmatmul.mubr.f32.gmra.mxu0 %v1547
          %v1690 = vpop.f32.mrf.mxu0
          %v1691 = vadd.f32 0.0, %v1690
          %v1692 = vpop.f32.mrf.mxu0
          %1693 = vmatprep.mubr.f32.mxu0 0.0
          %1694 = vmatmul.mubr.f32.gmra.mxu0 %v1550
          %v1695 = vpop.f32.mrf.mxu0
          %v1696 = vadd.f32 0.0, %v1695
          %v1697 = vpop.f32.mrf.mxu0
          %1698 = vmatprep.mubr.f32.mxu0 0.0
          %1699 = vmatmul.mubr.f32.gmra.mxu0 %v1553
          %v1700 = vpop.f32.mrf.mxu0
          %v1701 = vadd.f32 0.0, %v1700
          %v1702 = vpop.f32.mrf.mxu0
          %1703 = vdwg.mxu0
          %v1704 = vadd.f32 %v1491, %v1626
          %v1705 = vadd.f32 %v1492, %v1631
          %v1706 = vadd.f32 %v1493, %v1636
          %v1707 = vadd.f32 %v1494, %v1641
          %v1708 = vadd.f32 %v1495, %v1646
          %v1709 = vadd.f32 %v1496, %v1651
          %v1710 = vadd.f32 %v1497, %v1656
          %v1711 = vadd.f32 %v1498, %v1661
          %v1712 = vadd.f32 %v1499, %v1666
          %v1713 = vadd.f32 %v1500, %v1671
          %v1714 = vadd.f32 %v1501, %v1676
          %v1715 = vadd.f32 %v1502, %v1681
          %v1716 = vadd.f32 %v1503, %v1686
          %v1717 = vadd.f32 %v1504, %v1691
          %v1718 = vadd.f32 %v1505, %v1696
          %v1719 = vadd.f32 %v1506, %v1701
          %1720 = vst.msk [vmem:[#allocation4] sm:$0xff] %vm653, %v1704
          %1721 = vst.msk [vmem:[#allocation4 + $0x8] sm:$0xff] %vm653, %v1705
          %1722 = vst.msk [vmem:[#allocation4 + $0x10] sm:$0xff] %vm653, %v1706
          %1723 = vst.msk [vmem:[#allocation4 + $0x18] sm:$0xff] %vm653, %v1707
          %1724 = vst.msk [vmem:[#allocation4 + $0x20] sm:$0xff] %vm653, %v1708
          %1725 = vst.msk [vmem:[#allocation4 + $0x28] sm:$0xff] %vm653, %v1709
          %1726 = vst.msk [vmem:[#allocation4 + $0x30] sm:$0xff] %vm653, %v1710
          %1727 = vst.msk [vmem:[#allocation4 + $0x38] sm:$0xff] %vm653, %v1711
          %1728 = vst.msk [vmem:[#allocation4 + $0x40] sm:$0xff] %vm653, %v1712
          %1729 = vst.msk [vmem:[#allocation4 + $0x48] sm:$0xff] %vm653, %v1713
          %1730 = vst.msk [vmem:[#allocation4 + $0x50] sm:$0xff] %vm653, %v1714
          %1731 = vst.msk [vmem:[#allocation4 + $0x58] sm:$0xff] %vm653, %v1715
          %1732 = vst.msk [vmem:[#allocation4 + $0x60] sm:$0xff] %vm653, %v1716
          %1733 = vst.msk [vmem:[#allocation4 + $0x68] sm:$0xff] %vm653, %v1717
          %1734 = vst.msk [vmem:[#allocation4 + $0x70] sm:$0xff] %vm653, %v1718
          %1735 = vst.msk [vmem:[#allocation4 + $0x78] sm:$0xff] %vm653, %v1719
          %v1736 = vld [vmem:[%s1474 + $0x1] sm:$0xff]
          %v1737 = vld [vmem:[%s1474 + $0x11] sm:$0xff]
          %v1738 = vld [vmem:[%s1474 + $0x21] sm:$0xff]
          %v1739 = vld [vmem:[%s1474 + $0x31] sm:$0xff]
          %v1740 = vld [vmem:[%s1474 + $0x41] sm:$0xff]
          %v1741 = vld [vmem:[%s1474 + $0x51] sm:$0xff]
          %v1742 = vld [vmem:[%s1474 + $0x61] sm:$0xff]
          %v1743 = vld [vmem:[%s1474 + $0x71] sm:$0xff]
          %v1744 = vld [vmem:[%s1474 + $0xa1] sm:$0xff]
          %v1745 = vld [vmem:[%s1474 + $0xb1] sm:$0xff]
          %v1746 = vld [vmem:[%s1474 + $0xc1] sm:$0xff]
          %v1747 = vld [vmem:[%s1474 + $0xd1] sm:$0xff]
          %v1748 = vld [vmem:[%s1474 + $0xe1] sm:$0xff]
          %v1749 = vld [vmem:[%s1474 + $0xf1] sm:$0xff]
          %v1750 = vld [vmem:[%s1474 + $0x101] sm:$0xff]
          %v1751 = vld [vmem:[%s1474 + $0x111] sm:$0xff]
          %v1752 = vld [vmem:[#allocation4] sm:$0xff]
          %v1753 = vld [vmem:[#allocation4 + $0x8] sm:$0xff]
          %v1754 = vld [vmem:[#allocation4 + $0x10] sm:$0xff]
          %v1755 = vld [vmem:[#allocation4 + $0x18] sm:$0xff]
          %v1756 = vld [vmem:[#allocation4 + $0x20] sm:$0xff]
          %v1757 = vld [vmem:[#allocation4 + $0x28] sm:$0xff]
          %v1758 = vld [vmem:[#allocation4 + $0x30] sm:$0xff]
          %v1759 = vld [vmem:[#allocation4 + $0x38] sm:$0xff]
          %v1760 = vld [vmem:[#allocation4 + $0x40] sm:$0xff]
          %v1761 = vld [vmem:[#allocation4 + $0x48] sm:$0xff]
          %v1762 = vld [vmem:[#allocation4 + $0x50] sm:$0xff]
          %v1763 = vld [vmem:[#allocation4 + $0x58] sm:$0xff]
          %v1764 = vld [vmem:[#allocation4 + $0x60] sm:$0xff]
          %v1765 = vld [vmem:[#allocation4 + $0x68] sm:$0xff]
          %v1766 = vld [vmem:[#allocation4 + $0x70] sm:$0xff]
          %v1767 = vld [vmem:[#allocation4 + $0x78] sm:$0xff]
          %v1769 = vsel %vm571, %v1736, 0
          %v1772 = vsel %vm571, %v1737, 0
          %v1775 = vsel %vm571, %v1738, 0
          %v1778 = vsel %vm571, %v1739, 0
          %v1781 = vsel %vm571, %v1740, 0
          %v1784 = vsel %vm571, %v1741, 0
          %v1787 = vsel %vm571, %v1742, 0
          %v1790 = vsel %vm571, %v1743, 0
          %v1793 = vsel %vm571, %v1744, 0
          %v1796 = vsel %vm571, %v1745, 0
          %v1799 = vsel %vm571, %v1746, 0
          %v1802 = vsel %vm571, %v1747, 0
          %v1805 = vsel %vm571, %v1748, 0
          %v1808 = vsel %vm571, %v1749, 0
          %v1811 = vsel %vm571, %v1750, 0
          %v1814 = vsel %vm571, %v1751, 0
          %v1817 = vsel %vm1555, %v1458, 0
          %1819 = vmatprep.subr.mxu0 0.0
          %1820 = vmatpush1.msra.mxu0 0.0
          %1821 = vmatprep.subr.mxu0 0.0
          %1822 = vmatpush1.msra.mxu0 0.0
          %1823 = vmatprep.subr.mxu0 0.0
          %1824 = vmatpush1.msra.mxu0 0.0
          %1825 = vmatprep.subr.mxu0 0.0
          %1826 = vmatpush1.msra.mxu0 0.0
          %1827 = vmatprep.subr.mxu0 0.0
          %1828 = vmatpush1.msra.mxu0 0.0
          %1829 = vmatprep.subr.mxu0 0.0
          %1830 = vmatpush1.msra.mxu0 0.0
          %1831 = vmatprep.subr.mxu0 0.0
          %1832 = vmatpush1.msra.mxu0 0.0
          %1833 = vmatprep.subr.mxu0 0.0
          %1834 = vmatpush1.msra.mxu0 0.0
          %1835 = vmatprep.subr.mxu0 0.0
          %1836 = vmatpush1.msra.mxu0 0.0
          %1837 = vmatprep.subr.mxu0 0.0
          %1838 = vmatpush1.msra.mxu0 0.0
          %1839 = vmatprep.subr.mxu0 0.0
          %1840 = vmatpush1.msra.mxu0 0.0
          %1841 = vmatprep.subr.mxu0 0.0
          %1842 = vmatpush1.msra.mxu0 0.0
          %1843 = vmatprep.subr.mxu0 0.0
          %1844 = vmatpush1.msra.mxu0 0.0
          %1845 = vmatprep.subr.mxu0 0.0
          %1846 = vmatpush1.msra.mxu0 0.0
          %1847 = vmatprep.subr.mxu0 0.0
          %1848 = vmatpush1.msra.mxu0 %v1817
          %1849 = vmatprep.subr.mxu0 0.0
          %1850 = vmatpush1.msra.mxu0 %v1457
          %1851 = vmatprep.subr.mxu0 0.0
          %1852 = vmatpush2.msra.mxu0 0.0
          %1853 = vmatprep.subr.mxu0 0.0
          %1854 = vmatpush2.msra.mxu0 0.0
          %1855 = vmatprep.subr.mxu0 0.0
          %1856 = vmatpush2.msra.mxu0 0.0
          %1857 = vmatprep.subr.mxu0 0.0
          %1858 = vmatpush2.msra.mxu0 0.0
          %1859 = vmatprep.subr.mxu0 0.0
          %1860 = vmatpush2.msra.mxu0 0.0
          %1861 = vmatprep.subr.mxu0 0.0
          %1862 = vmatpush2.msra.mxu0 0.0
          %1863 = vmatprep.subr.mxu0 0.0
          %1864 = vmatpush2.msra.mxu0 0.0
          %1865 = vmatprep.subr.mxu0 0.0
          %1866 = vmatpush2.msra.mxu0 0.0
          %1867 = vmatprep.subr.mxu0 0.0
          %1868 = vmatpush2.msra.mxu0 0.0
          %1869 = vmatprep.subr.mxu0 0.0
          %1870 = vmatpush2.msra.mxu0 0.0
          %1871 = vmatprep.subr.mxu0 0.0
          %1872 = vmatpush2.msra.mxu0 0.0
          %1873 = vmatprep.subr.mxu0 0.0
          %1874 = vmatpush2.msra.mxu0 0.0
          %1875 = vmatprep.subr.mxu0 0.0
          %1876 = vmatpush2.msra.mxu0 0.0
          %1877 = vmatprep.subr.mxu0 0.0
          %1878 = vmatpush2.msra.mxu0 0.0
          %1879 = vmatprep.subr.mxu0 0.0
          %1880 = vmatpush2.msra.mxu0 0.0
          %1881 = vmatprep.subr.mxu0 0.0
          %1882 = vmatpush2.msra.mxu0 0.0
          %1883 = vmatprep.mubr.f32.mxu0 0.0
          %1884 = vmatmul.mubr.f32.gmra.mxu0 %v1769
          %v1885 = vpop.f32.mrf.mxu0
          %v1886 = vadd.f32 0.0, %v1885
          %v1887 = vpop.f32.mrf.mxu0
          %1888 = vmatprep.mubr.f32.mxu0 0.0
          %1889 = vmatmul.mubr.f32.gmra.mxu0 %v1772
          %v1890 = vpop.f32.mrf.mxu0
          %v1891 = vadd.f32 0.0, %v1890
          %v1892 = vpop.f32.mrf.mxu0
          %1893 = vmatprep.mubr.f32.mxu0 0.0
          %1894 = vmatmul.mubr.f32.gmra.mxu0 %v1775
          %v1895 = vpop.f32.mrf.mxu0
          %v1896 = vadd.f32 0.0, %v1895
          %v1897 = vpop.f32.mrf.mxu0
          %1898 = vmatprep.mubr.f32.mxu0 0.0
          %1899 = vmatmul.mubr.f32.gmra.mxu0 %v1778
          %v1900 = vpop.f32.mrf.mxu0
          %v1901 = vadd.f32 0.0, %v1900
          %v1902 = vpop.f32.mrf.mxu0
          %1903 = vmatprep.mubr.f32.mxu0 0.0
          %1904 = vmatmul.mubr.f32.gmra.mxu0 %v1781
          %v1905 = vpop.f32.mrf.mxu0
          %v1906 = vadd.f32 0.0, %v1905
          %v1907 = vpop.f32.mrf.mxu0
          %1908 = vmatprep.mubr.f32.mxu0 0.0
          %1909 = vmatmul.mubr.f32.gmra.mxu0 %v1784
          %v1910 = vpop.f32.mrf.mxu0
          %v1911 = vadd.f32 0.0, %v1910
          %v1912 = vpop.f32.mrf.mxu0
          %1913 = vmatprep.mubr.f32.mxu0 0.0
          %1914 = vmatmul.mubr.f32.gmra.mxu0 %v1787
          %v1915 = vpop.f32.mrf.mxu0
          %v1916 = vadd.f32 0.0, %v1915
          %v1917 = vpop.f32.mrf.mxu0
          %1918 = vmatprep.mubr.f32.mxu0 0.0
          %1919 = vmatmul.mubr.f32.gmra.mxu0 %v1790
          %v1920 = vpop.f32.mrf.mxu0
          %v1921 = vadd.f32 0.0, %v1920
          %v1922 = vpop.f32.mrf.mxu0
          %1923 = vmatprep.mubr.f32.mxu0 0.0
          %1924 = vmatmul.mubr.f32.gmra.mxu0 %v1793
          %v1925 = vpop.f32.mrf.mxu0
          %v1926 = vadd.f32 0.0, %v1925
          %v1927 = vpop.f32.mrf.mxu0
          %1928 = vmatprep.mubr.f32.mxu0 0.0
          %1929 = vmatmul.mubr.f32.gmra.mxu0 %v1796
          %v1930 = vpop.f32.mrf.mxu0
          %v1931 = vadd.f32 0.0, %v1930
          %v1932 = vpop.f32.mrf.mxu0
          %1933 = vmatprep.mubr.f32.mxu0 0.0
          %1934 = vmatmul.mubr.f32.gmra.mxu0 %v1799
          %v1935 = vpop.f32.mrf.mxu0
          %v1936 = vadd.f32 0.0, %v1935
          %v1937 = vpop.f32.mrf.mxu0
          %1938 = vmatprep.mubr.f32.mxu0 0.0
          %1939 = vmatmul.mubr.f32.gmra.mxu0 %v1802
          %v1940 = vpop.f32.mrf.mxu0
          %v1941 = vadd.f32 0.0, %v1940
          %v1942 = vpop.f32.mrf.mxu0
          %1943 = vmatprep.mubr.f32.mxu0 0.0
          %1944 = vmatmul.mubr.f32.gmra.mxu0 %v1805
          %v1945 = vpop.f32.mrf.mxu0
          %v1946 = vadd.f32 0.0, %v1945
          %v1947 = vpop.f32.mrf.mxu0
          %1948 = vmatprep.mubr.f32.mxu0 0.0
          %1949 = vmatmul.mubr.f32.gmra.mxu0 %v1808
          %v1950 = vpop.f32.mrf.mxu0
          %v1951 = vadd.f32 0.0, %v1950
          %v1952 = vpop.f32.mrf.mxu0
          %1953 = vmatprep.mubr.f32.mxu0 0.0
          %1954 = vmatmul.mubr.f32.gmra.mxu0 %v1811
          %v1955 = vpop.f32.mrf.mxu0
          %v1956 = vadd.f32 0.0, %v1955
          %v1957 = vpop.f32.mrf.mxu0
          %1958 = vmatprep.mubr.f32.mxu0 0.0
          %1959 = vmatmul.mubr.f32.gmra.mxu0 %v1814
          %v1960 = vpop.f32.mrf.mxu0
          %v1961 = vadd.f32 0.0, %v1960
          %v1962 = vpop.f32.mrf.mxu0
          %1963 = vdwg.mxu0
          %v1964 = vadd.f32 %v1752, %v1886
          %v1965 = vadd.f32 %v1753, %v1891
          %v1966 = vadd.f32 %v1754, %v1896
          %v1967 = vadd.f32 %v1755, %v1901
          %v1968 = vadd.f32 %v1756, %v1906
          %v1969 = vadd.f32 %v1757, %v1911
          %v1970 = vadd.f32 %v1758, %v1916
          %v1971 = vadd.f32 %v1759, %v1921
          %v1972 = vadd.f32 %v1760, %v1926
          %v1973 = vadd.f32 %v1761, %v1931
          %v1974 = vadd.f32 %v1762, %v1936
          %v1975 = vadd.f32 %v1763, %v1941
          %v1976 = vadd.f32 %v1764, %v1946
          %v1977 = vadd.f32 %v1765, %v1951
          %v1978 = vadd.f32 %v1766, %v1956
          %v1979 = vadd.f32 %v1767, %v1961
          %1980 = vst.msk [vmem:[#allocation4] sm:$0xff] %vm653, %v1964
          %1981 = vst.msk [vmem:[#allocation4 + $0x8] sm:$0xff] %vm653, %v1965
          %1982 = vst.msk [vmem:[#allocation4 + $0x10] sm:$0xff] %vm653, %v1966
          %1983 = vst.msk [vmem:[#allocation4 + $0x18] sm:$0xff] %vm653, %v1967
          %1984 = vst.msk [vmem:[#allocation4 + $0x20] sm:$0xff] %vm653, %v1968
          %1985 = vst.msk [vmem:[#allocation4 + $0x28] sm:$0xff] %vm653, %v1969
          %1986 = vst.msk [vmem:[#allocation4 + $0x30] sm:$0xff] %vm653, %v1970
          %1987 = vst.msk [vmem:[#allocation4 + $0x38] sm:$0xff] %vm653, %v1971
          %1988 = vst.msk [vmem:[#allocation4 + $0x40] sm:$0xff] %vm653, %v1972
          %1989 = vst.msk [vmem:[#allocation4 + $0x48] sm:$0xff] %vm653, %v1973
          %1990 = vst.msk [vmem:[#allocation4 + $0x50] sm:$0xff] %vm653, %v1974
          %1991 = vst.msk [vmem:[#allocation4 + $0x58] sm:$0xff] %vm653, %v1975
          %1992 = vst.msk [vmem:[#allocation4 + $0x60] sm:$0xff] %vm653, %v1976
          %1993 = vst.msk [vmem:[#allocation4 + $0x68] sm:$0xff] %vm653, %v1977
          %1994 = vst.msk [vmem:[#allocation4 + $0x70] sm:$0xff] %vm653, %v1978
          %1995 = vst.msk [vmem:[#allocation4 + $0x78] sm:$0xff] %vm653, %v1979
          %v1996 = vld [vmem:[%s1474 + $0x2] sm:$0xff]
          %v1997 = vld [vmem:[%s1474 + $0x12] sm:$0xff]
          %v1998 = vld [vmem:[%s1474 + $0x22] sm:$0xff]
          %v1999 = vld [vmem:[%s1474 + $0x32] sm:$0xff]
          %v2000 = vld [vmem:[%s1474 + $0x42] sm:$0xff]
          %v2001 = vld [vmem:[%s1474 + $0x52] sm:$0xff]
          %v2002 = vld [vmem:[%s1474 + $0x62] sm:$0xff]
          %v2003 = vld [vmem:[%s1474 + $0x72] sm:$0xff]
          %v2004 = vld [vmem:[%s1474 + $0xa2] sm:$0xff]
          %v2005 = vld [vmem:[%s1474 + $0xb2] sm:$0xff]
          %v2006 = vld [vmem:[%s1474 + $0xc2] sm:$0xff]
          %v2007 = vld [vmem:[%s1474 + $0xd2] sm:$0xff]
          %v2008 = vld [vmem:[%s1474 + $0xe2] sm:$0xff]
          %v2009 = vld [vmem:[%s1474 + $0xf2] sm:$0xff]
          %v2010 = vld [vmem:[%s1474 + $0x102] sm:$0xff]
          %v2011 = vld [vmem:[%s1474 + $0x112] sm:$0xff]
          %v2012 = vld [vmem:[#allocation4] sm:$0xff]
          %v2013 = vld [vmem:[#allocation4 + $0x8] sm:$0xff]
          %v2014 = vld [vmem:[#allocation4 + $0x10] sm:$0xff]
          %v2015 = vld [vmem:[#allocation4 + $0x18] sm:$0xff]
          %v2016 = vld [vmem:[#allocation4 + $0x20] sm:$0xff]
          %v2017 = vld [vmem:[#allocation4 + $0x28] sm:$0xff]
          %v2018 = vld [vmem:[#allocation4 + $0x30] sm:$0xff]
          %v2019 = vld [vmem:[#allocation4 + $0x38] sm:$0xff]
          %v2020 = vld [vmem:[#allocation4 + $0x40] sm:$0xff]
          %v2021 = vld [vmem:[#allocation4 + $0x48] sm:$0xff]
          %v2022 = vld [vmem:[#allocation4 + $0x50] sm:$0xff]
          %v2023 = vld [vmem:[#allocation4 + $0x58] sm:$0xff]
          %v2024 = vld [vmem:[#allocation4 + $0x60] sm:$0xff]
          %v2025 = vld [vmem:[#allocation4 + $0x68] sm:$0xff]
          %v2026 = vld [vmem:[#allocation4 + $0x70] sm:$0xff]
          %v2027 = vld [vmem:[#allocation4 + $0x78] sm:$0xff]
          %v2029 = vsel %vm571, %v1996, 0
          %v2032 = vsel %vm571, %v1997, 0
          %v2035 = vsel %vm571, %v1998, 0
          %v2038 = vsel %vm571, %v1999, 0
          %v2041 = vsel %vm571, %v2000, 0
          %v2044 = vsel %vm571, %v2001, 0
          %v2047 = vsel %vm571, %v2002, 0
          %v2050 = vsel %vm571, %v2003, 0
          %v2053 = vsel %vm571, %v2004, 0
          %v2056 = vsel %vm571, %v2005, 0
          %v2059 = vsel %vm571, %v2006, 0
          %v2062 = vsel %vm571, %v2007, 0
          %v2065 = vsel %vm571, %v2008, 0
          %v2068 = vsel %vm571, %v2009, 0
          %v2071 = vsel %vm571, %v2010, 0
          %v2074 = vsel %vm571, %v2011, 0
          %v2077 = vsel %vm1555, %v1460, 0
          %2079 = vmatprep.subr.mxu0 0.0
          %2080 = vmatpush1.msra.mxu0 0.0
          %2081 = vmatprep.subr.mxu0 0.0
          %2082 = vmatpush1.msra.mxu0 0.0
          %2083 = vmatprep.subr.mxu0 0.0
          %2084 = vmatpush1.msra.mxu0 0.0
          %2085 = vmatprep.subr.mxu0 0.0
          %2086 = vmatpush1.msra.mxu0 0.0
          %2087 = vmatprep.subr.mxu0 0.0
          %2088 = vmatpush1.msra.mxu0 0.0
          %2089 = vmatprep.subr.mxu0 0.0
          %2090 = vmatpush1.msra.mxu0 0.0
          %2091 = vmatprep.subr.mxu0 0.0
          %2092 = vmatpush1.msra.mxu0 0.0
          %2093 = vmatprep.subr.mxu0 0.0
          %2094 = vmatpush1.msra.mxu0 0.0
          %2095 = vmatprep.subr.mxu0 0.0
          %2096 = vmatpush1.msra.mxu0 0.0
          %2097 = vmatprep.subr.mxu0 0.0
          %2098 = vmatpush1.msra.mxu0 0.0
          %2099 = vmatprep.subr.mxu0 0.0
          %2100 = vmatpush1.msra.mxu0 0.0
          %2101 = vmatprep.subr.mxu0 0.0
          %2102 = vmatpush1.msra.mxu0 0.0
          %2103 = vmatprep.subr.mxu0 0.0
          %2104 = vmatpush1.msra.mxu0 0.0
          %2105 = vmatprep.subr.mxu0 0.0
          %2106 = vmatpush1.msra.mxu0 0.0
          %2107 = vmatprep.subr.mxu0 0.0
          %2108 = vmatpush1.msra.mxu0 %v2077
          %2109 = vmatprep.subr.mxu0 0.0
          %2110 = vmatpush1.msra.mxu0 %v1459
          %2111 = vmatprep.subr.mxu0 0.0
          %2112 = vmatpush2.msra.mxu0 0.0
          %2113 = vmatprep.subr.mxu0 0.0
          %2114 = vmatpush2.msra.mxu0 0.0
          %2115 = vmatprep.subr.mxu0 0.0
          %2116 = vmatpush2.msra.mxu0 0.0
          %2117 = vmatprep.subr.mxu0 0.0
          %2118 = vmatpush2.msra.mxu0 0.0
          %2119 = vmatprep.subr.mxu0 0.0
          %2120 = vmatpush2.msra.mxu0 0.0
          %2121 = vmatprep.subr.mxu0 0.0
          %2122 = vmatpush2.msra.mxu0 0.0
          %2123 = vmatprep.subr.mxu0 0.0
          %2124 = vmatpush2.msra.mxu0 0.0
          %2125 = vmatprep.subr.mxu0 0.0
          %2126 = vmatpush2.msra.mxu0 0.0
          %2127 = vmatprep.subr.mxu0 0.0
          %2128 = vmatpush2.msra.mxu0 0.0
          %2129 = vmatprep.subr.mxu0 0.0
          %2130 = vmatpush2.msra.mxu0 0.0
          %2131 = vmatprep.subr.mxu0 0.0
          %2132 = vmatpush2.msra.mxu0 0.0
          %2133 = vmatprep.subr.mxu0 0.0
          %2134 = vmatpush2.msra.mxu0 0.0
          %2135 = vmatprep.subr.mxu0 0.0
          %2136 = vmatpush2.msra.mxu0 0.0
          %2137 = vmatprep.subr.mxu0 0.0
          %2138 = vmatpush2.msra.mxu0 0.0
          %2139 = vmatprep.subr.mxu0 0.0
          %2140 = vmatpush2.msra.mxu0 0.0
          %2141 = vmatprep.subr.mxu0 0.0
          %2142 = vmatpush2.msra.mxu0 0.0
          %2143 = vmatprep.mubr.f32.mxu0 0.0
          %2144 = vmatmul.mubr.f32.gmra.mxu0 %v2029
          %v2145 = vpop.f32.mrf.mxu0
          %v2146 = vadd.f32 0.0, %v2145
          %v2147 = vpop.f32.mrf.mxu0
          %2148 = vmatprep.mubr.f32.mxu0 0.0
          %2149 = vmatmul.mubr.f32.gmra.mxu0 %v2032
          %v2150 = vpop.f32.mrf.mxu0
          %v2151 = vadd.f32 0.0, %v2150
          %v2152 = vpop.f32.mrf.mxu0
          %2153 = vmatprep.mubr.f32.mxu0 0.0
          %2154 = vmatmul.mubr.f32.gmra.mxu0 %v2035
          %v2155 = vpop.f32.mrf.mxu0
          %v2156 = vadd.f32 0.0, %v2155
          %v2157 = vpop.f32.mrf.mxu0
          %2158 = vmatprep.mubr.f32.mxu0 0.0
          %2159 = vmatmul.mubr.f32.gmra.mxu0 %v2038
          %v2160 = vpop.f32.mrf.mxu0
          %v2161 = vadd.f32 0.0, %v2160
          %v2162 = vpop.f32.mrf.mxu0
          %2163 = vmatprep.mubr.f32.mxu0 0.0
          %2164 = vmatmul.mubr.f32.gmra.mxu0 %v2041
          %v2165 = vpop.f32.mrf.mxu0
          %v2166 = vadd.f32 0.0, %v2165
          %v2167 = vpop.f32.mrf.mxu0
          %2168 = vmatprep.mubr.f32.mxu0 0.0
          %2169 = vmatmul.mubr.f32.gmra.mxu0 %v2044
          %v2170 = vpop.f32.mrf.mxu0
          %v2171 = vadd.f32 0.0, %v2170
          %v2172 = vpop.f32.mrf.mxu0
          %2173 = vmatprep.mubr.f32.mxu0 0.0
          %2174 = vmatmul.mubr.f32.gmra.mxu0 %v2047
          %v2175 = vpop.f32.mrf.mxu0
          %v2176 = vadd.f32 0.0, %v2175
          %v2177 = vpop.f32.mrf.mxu0
          %2178 = vmatprep.mubr.f32.mxu0 0.0
          %2179 = vmatmul.mubr.f32.gmra.mxu0 %v2050
          %v2180 = vpop.f32.mrf.mxu0
          %v2181 = vadd.f32 0.0, %v2180
          %v2182 = vpop.f32.mrf.mxu0
          %2183 = vmatprep.mubr.f32.mxu0 0.0
          %2184 = vmatmul.mubr.f32.gmra.mxu0 %v2053
          %v2185 = vpop.f32.mrf.mxu0
          %v2186 = vadd.f32 0.0, %v2185
          %v2187 = vpop.f32.mrf.mxu0
          %2188 = vmatprep.mubr.f32.mxu0 0.0
          %2189 = vmatmul.mubr.f32.gmra.mxu0 %v2056
          %v2190 = vpop.f32.mrf.mxu0
          %v2191 = vadd.f32 0.0, %v2190
          %v2192 = vpop.f32.mrf.mxu0
          %2193 = vmatprep.mubr.f32.mxu0 0.0
          %2194 = vmatmul.mubr.f32.gmra.mxu0 %v2059
          %v2195 = vpop.f32.mrf.mxu0
          %v2196 = vadd.f32 0.0, %v2195
          %v2197 = vpop.f32.mrf.mxu0
          %2198 = vmatprep.mubr.f32.mxu0 0.0
          %2199 = vmatmul.mubr.f32.gmra.mxu0 %v2062
          %v2200 = vpop.f32.mrf.mxu0
          %v2201 = vadd.f32 0.0, %v2200
          %v2202 = vpop.f32.mrf.mxu0
          %2203 = vmatprep.mubr.f32.mxu0 0.0
          %2204 = vmatmul.mubr.f32.gmra.mxu0 %v2065
          %v2205 = vpop.f32.mrf.mxu0
          %v2206 = vadd.f32 0.0, %v2205
          %v2207 = vpop.f32.mrf.mxu0
          %2208 = vmatprep.mubr.f32.mxu0 0.0
          %2209 = vmatmul.mubr.f32.gmra.mxu0 %v2068
          %v2210 = vpop.f32.mrf.mxu0
          %v2211 = vadd.f32 0.0, %v2210
          %v2212 = vpop.f32.mrf.mxu0
          %2213 = vmatprep.mubr.f32.mxu0 0.0
          %2214 = vmatmul.mubr.f32.gmra.mxu0 %v2071
          %v2215 = vpop.f32.mrf.mxu0
          %v2216 = vadd.f32 0.0, %v2215
          %v2217 = vpop.f32.mrf.mxu0
          %2218 = vmatprep.mubr.f32.mxu0 0.0
          %2219 = vmatmul.mubr.f32.gmra.mxu0 %v2074
          %v2220 = vpop.f32.mrf.mxu0
          %v2221 = vadd.f32 0.0, %v2220
          %v2222 = vpop.f32.mrf.mxu0
          %2223 = vdwg.mxu0
          %v2224 = vadd.f32 %v2012, %v2146
          %v2225 = vadd.f32 %v2013, %v2151
          %v2226 = vadd.f32 %v2014, %v2156
          %v2227 = vadd.f32 %v2015, %v2161
          %v2228 = vadd.f32 %v2016, %v2166
          %v2229 = vadd.f32 %v2017, %v2171
          %v2230 = vadd.f32 %v2018, %v2176
          %v2231 = vadd.f32 %v2019, %v2181
          %v2232 = vadd.f32 %v2020, %v2186
          %v2233 = vadd.f32 %v2021, %v2191
          %v2234 = vadd.f32 %v2022, %v2196
          %v2235 = vadd.f32 %v2023, %v2201
          %v2236 = vadd.f32 %v2024, %v2206
          %v2237 = vadd.f32 %v2025, %v2211
          %v2238 = vadd.f32 %v2026, %v2216
          %v2239 = vadd.f32 %v2027, %v2221
          %2240 = vst.msk [vmem:[#allocation4] sm:$0xff] %vm653, %v2224
          %2241 = vst.msk [vmem:[#allocation4 + $0x8] sm:$0xff] %vm653, %v2225
          %2242 = vst.msk [vmem:[#allocation4 + $0x10] sm:$0xff] %vm653, %v2226
          %2243 = vst.msk [vmem:[#allocation4 + $0x18] sm:$0xff] %vm653, %v2227
          %2244 = vst.msk [vmem:[#allocation4 + $0x20] sm:$0xff] %vm653, %v2228
          %2245 = vst.msk [vmem:[#allocation4 + $0x28] sm:$0xff] %vm653, %v2229
          %2246 = vst.msk [vmem:[#allocation4 + $0x30] sm:$0xff] %vm653, %v2230
          %2247 = vst.msk [vmem:[#allocation4 + $0x38] sm:$0xff] %vm653, %v2231
          %2248 = vst.msk [vmem:[#allocation4 + $0x40] sm:$0xff] %vm653, %v2232
          %2249 = vst.msk [vmem:[#allocation4 + $0x48] sm:$0xff] %vm653, %v2233
          %2250 = vst.msk [vmem:[#allocation4 + $0x50] sm:$0xff] %vm653, %v2234
          %2251 = vst.msk [vmem:[#allocation4 + $0x58] sm:$0xff] %vm653, %v2235
          %2252 = vst.msk [vmem:[#allocation4 + $0x60] sm:$0xff] %vm653, %v2236
          %2253 = vst.msk [vmem:[#allocation4 + $0x68] sm:$0xff] %vm653, %v2237
          %2254 = vst.msk [vmem:[#allocation4 + $0x70] sm:$0xff] %vm653, %v2238
          %2255 = vst.msk [vmem:[#allocation4 + $0x78] sm:$0xff] %vm653, %v2239
          %s2256 = sadd.s32 16, %s1473
          %s2257 = scalar_lea.vmem [#allocation3], %s2256
          %v2258 = vld [vmem:[%s2257] sm:$0xff]
          %v2259 = vld [vmem:[%s2257 + $0x10] sm:$0xff]
          %v2260 = vld [vmem:[%s2257 + $0x20] sm:$0xff]
          %v2261 = vld [vmem:[%s2257 + $0x30] sm:$0xff]
          %v2262 = vld [vmem:[%s2257 + $0x40] sm:$0xff]
          %v2263 = vld [vmem:[%s2257 + $0x50] sm:$0xff]
          %v2264 = vld [vmem:[%s2257 + $0x60] sm:$0xff]
          %v2265 = vld [vmem:[%s2257 + $0x70] sm:$0xff]
          %v2266 = vld [vmem:[%s2257 + $0xa0] sm:$0xff]
          %v2267 = vld [vmem:[%s2257 + $0xb0] sm:$0xff]
          %v2268 = vld [vmem:[%s2257 + $0xc0] sm:$0xff]
          %v2269 = vld [vmem:[%s2257 + $0xd0] sm:$0xff]
          %v2270 = vld [vmem:[%s2257 + $0xe0] sm:$0xff]
          %v2271 = vld [vmem:[%s2257 + $0xf0] sm:$0xff]
          %v2272 = vld [vmem:[%s2257 + $0x100] sm:$0xff]
          %v2273 = vld [vmem:[%s2257 + $0x110] sm:$0xff]
          %v2274 = vld [vmem:[#allocation4] sm:$0xff]
          %v2275 = vld [vmem:[#allocation4 + $0x8] sm:$0xff]
          %v2276 = vld [vmem:[#allocation4 + $0x10] sm:$0xff]
          %v2277 = vld [vmem:[#allocation4 + $0x18] sm:$0xff]
          %v2278 = vld [vmem:[#allocation4 + $0x20] sm:$0xff]
          %v2279 = vld [vmem:[#allocation4 + $0x28] sm:$0xff]
          %v2280 = vld [vmem:[#allocation4 + $0x30] sm:$0xff]
          %v2281 = vld [vmem:[#allocation4 + $0x38] sm:$0xff]
          %v2282 = vld [vmem:[#allocation4 + $0x40] sm:$0xff]
          %v2283 = vld [vmem:[#allocation4 + $0x48] sm:$0xff]
          %v2284 = vld [vmem:[#allocation4 + $0x50] sm:$0xff]
          %v2285 = vld [vmem:[#allocation4 + $0x58] sm:$0xff]
          %v2286 = vld [vmem:[#allocation4 + $0x60] sm:$0xff]
          %v2287 = vld [vmem:[#allocation4 + $0x68] sm:$0xff]
          %v2288 = vld [vmem:[#allocation4 + $0x70] sm:$0xff]
          %v2289 = vld [vmem:[#allocation4 + $0x78] sm:$0xff]
          %v2291 = vsel %vm571, %v2258, 0
          %v2294 = vsel %vm571, %v2259, 0
          %v2297 = vsel %vm571, %v2260, 0
          %v2300 = vsel %vm571, %v2261, 0
          %v2303 = vsel %vm571, %v2262, 0
          %v2306 = vsel %vm571, %v2263, 0
          %v2309 = vsel %vm571, %v2264, 0
          %v2312 = vsel %vm571, %v2265, 0
          %v2315 = vsel %vm571, %v2266, 0
          %v2318 = vsel %vm571, %v2267, 0
          %v2321 = vsel %vm571, %v2268, 0
          %v2324 = vsel %vm571, %v2269, 0
          %v2327 = vsel %vm571, %v2270, 0
          %v2330 = vsel %vm571, %v2271, 0
          %v2333 = vsel %vm571, %v2272, 0
          %v2336 = vsel %vm571, %v2273, 0
          %v2339 = vsel %vm1555, %v1462, 0
          %2341 = vmatprep.subr.mxu0 0.0
          %2342 = vmatpush1.msra.mxu0 0.0
          %2343 = vmatprep.subr.mxu0 0.0
          %2344 = vmatpush1.msra.mxu0 0.0
          %2345 = vmatprep.subr.mxu0 0.0
          %2346 = vmatpush1.msra.mxu0 0.0
          %2347 = vmatprep.subr.mxu0 0.0
          %2348 = vmatpush1.msra.mxu0 0.0
          %2349 = vmatprep.subr.mxu0 0.0
          %2350 = vmatpush1.msra.mxu0 0.0
          %2351 = vmatprep.subr.mxu0 0.0
          %2352 = vmatpush1.msra.mxu0 0.0
          %2353 = vmatprep.subr.mxu0 0.0
          %2354 = vmatpush1.msra.mxu0 0.0
          %2355 = vmatprep.subr.mxu0 0.0
          %2356 = vmatpush1.msra.mxu0 0.0
          %2357 = vmatprep.subr.mxu0 0.0
          %2358 = vmatpush1.msra.mxu0 0.0
          %2359 = vmatprep.subr.mxu0 0.0
          %2360 = vmatpush1.msra.mxu0 0.0
          %2361 = vmatprep.subr.mxu0 0.0
          %2362 = vmatpush1.msra.mxu0 0.0
          %2363 = vmatprep.subr.mxu0 0.0
          %2364 = vmatpush1.msra.mxu0 0.0
          %2365 = vmatprep.subr.mxu0 0.0
          %2366 = vmatpush1.msra.mxu0 0.0
          %2367 = vmatprep.subr.mxu0 0.0
          %2368 = vmatpush1.msra.mxu0 0.0
          %2369 = vmatprep.subr.mxu0 0.0
          %2370 = vmatpush1.msra.mxu0 %v2339
          %2371 = vmatprep.subr.mxu0 0.0
          %2372 = vmatpush1.msra.mxu0 %v1461
          %2373 = vmatprep.subr.mxu0 0.0
          %2374 = vmatpush2.msra.mxu0 0.0
          %2375 = vmatprep.subr.mxu0 0.0
          %2376 = vmatpush2.msra.mxu0 0.0
          %2377 = vmatprep.subr.mxu0 0.0
          %2378 = vmatpush2.msra.mxu0 0.0
          %2379 = vmatprep.subr.mxu0 0.0
          %2380 = vmatpush2.msra.mxu0 0.0
          %2381 = vmatprep.subr.mxu0 0.0
          %2382 = vmatpush2.msra.mxu0 0.0
          %2383 = vmatprep.subr.mxu0 0.0
          %2384 = vmatpush2.msra.mxu0 0.0
          %2385 = vmatprep.subr.mxu0 0.0
          %2386 = vmatpush2.msra.mxu0 0.0
          %2387 = vmatprep.subr.mxu0 0.0
          %2388 = vmatpush2.msra.mxu0 0.0
          %2389 = vmatprep.subr.mxu0 0.0
          %2390 = vmatpush2.msra.mxu0 0.0
          %2391 = vmatprep.subr.mxu0 0.0
          %2392 = vmatpush2.msra.mxu0 0.0
          %2393 = vmatprep.subr.mxu0 0.0
          %2394 = vmatpush2.msra.mxu0 0.0
          %2395 = vmatprep.subr.mxu0 0.0
          %2396 = vmatpush2.msra.mxu0 0.0
          %2397 = vmatprep.subr.mxu0 0.0
          %2398 = vmatpush2.msra.mxu0 0.0
          %2399 = vmatprep.subr.mxu0 0.0
          %2400 = vmatpush2.msra.mxu0 0.0
          %2401 = vmatprep.subr.mxu0 0.0
          %2402 = vmatpush2.msra.mxu0 0.0
          %2403 = vmatprep.subr.mxu0 0.0
          %2404 = vmatpush2.msra.mxu0 0.0
          %2405 = vmatprep.mubr.f32.mxu0 0.0
          %2406 = vmatmul.mubr.f32.gmra.mxu0 %v2291
          %v2407 = vpop.f32.mrf.mxu0
          %v2408 = vadd.f32 0.0, %v2407
          %v2409 = vpop.f32.mrf.mxu0
          %2410 = vmatprep.mubr.f32.mxu0 0.0
          %2411 = vmatmul.mubr.f32.gmra.mxu0 %v2294
          %v2412 = vpop.f32.mrf.mxu0
          %v2413 = vadd.f32 0.0, %v2412
          %v2414 = vpop.f32.mrf.mxu0
          %2415 = vmatprep.mubr.f32.mxu0 0.0
          %2416 = vmatmul.mubr.f32.gmra.mxu0 %v2297
          %v2417 = vpop.f32.mrf.mxu0
          %v2418 = vadd.f32 0.0, %v2417
          %v2419 = vpop.f32.mrf.mxu0
          %2420 = vmatprep.mubr.f32.mxu0 0.0
          %2421 = vmatmul.mubr.f32.gmra.mxu0 %v2300
          %v2422 = vpop.f32.mrf.mxu0
          %v2423 = vadd.f32 0.0, %v2422
          %v2424 = vpop.f32.mrf.mxu0
          %2425 = vmatprep.mubr.f32.mxu0 0.0
          %2426 = vmatmul.mubr.f32.gmra.mxu0 %v2303
          %v2427 = vpop.f32.mrf.mxu0
          %v2428 = vadd.f32 0.0, %v2427
          %v2429 = vpop.f32.mrf.mxu0
          %2430 = vmatprep.mubr.f32.mxu0 0.0
          %2431 = vmatmul.mubr.f32.gmra.mxu0 %v2306
          %v2432 = vpop.f32.mrf.mxu0
          %v2433 = vadd.f32 0.0, %v2432
          %v2434 = vpop.f32.mrf.mxu0
          %2435 = vmatprep.mubr.f32.mxu0 0.0
          %2436 = vmatmul.mubr.f32.gmra.mxu0 %v2309
          %v2437 = vpop.f32.mrf.mxu0
          %v2438 = vadd.f32 0.0, %v2437
          %v2439 = vpop.f32.mrf.mxu0
          %2440 = vmatprep.mubr.f32.mxu0 0.0
          %2441 = vmatmul.mubr.f32.gmra.mxu0 %v2312
          %v2442 = vpop.f32.mrf.mxu0
          %v2443 = vadd.f32 0.0, %v2442
          %v2444 = vpop.f32.mrf.mxu0
          %2445 = vmatprep.mubr.f32.mxu0 0.0
          %2446 = vmatmul.mubr.f32.gmra.mxu0 %v2315
          %v2447 = vpop.f32.mrf.mxu0
          %v2448 = vadd.f32 0.0, %v2447
          %v2449 = vpop.f32.mrf.mxu0
          %2450 = vmatprep.mubr.f32.mxu0 0.0
          %2451 = vmatmul.mubr.f32.gmra.mxu0 %v2318
          %v2452 = vpop.f32.mrf.mxu0
          %v2453 = vadd.f32 0.0, %v2452
          %v2454 = vpop.f32.mrf.mxu0
          %2455 = vmatprep.mubr.f32.mxu0 0.0
          %2456 = vmatmul.mubr.f32.gmra.mxu0 %v2321
          %v2457 = vpop.f32.mrf.mxu0
          %v2458 = vadd.f32 0.0, %v2457
          %v2459 = vpop.f32.mrf.mxu0
          %2460 = vmatprep.mubr.f32.mxu0 0.0
          %2461 = vmatmul.mubr.f32.gmra.mxu0 %v2324
          %v2462 = vpop.f32.mrf.mxu0
          %v2463 = vadd.f32 0.0, %v2462
          %v2464 = vpop.f32.mrf.mxu0
          %2465 = vmatprep.mubr.f32.mxu0 0.0
          %2466 = vmatmul.mubr.f32.gmra.mxu0 %v2327
          %v2467 = vpop.f32.mrf.mxu0
          %v2468 = vadd.f32 0.0, %v2467
          %v2469 = vpop.f32.mrf.mxu0
          %2470 = vmatprep.mubr.f32.mxu0 0.0
          %2471 = vmatmul.mubr.f32.gmra.mxu0 %v2330
          %v2472 = vpop.f32.mrf.mxu0
          %v2473 = vadd.f32 0.0, %v2472
          %v2474 = vpop.f32.mrf.mxu0
          %2475 = vmatprep.mubr.f32.mxu0 0.0
          %2476 = vmatmul.mubr.f32.gmra.mxu0 %v2333
          %v2477 = vpop.f32.mrf.mxu0
          %v2478 = vadd.f32 0.0, %v2477
          %v2479 = vpop.f32.mrf.mxu0
          %2480 = vmatprep.mubr.f32.mxu0 0.0
          %2481 = vmatmul.mubr.f32.gmra.mxu0 %v2336
          %v2482 = vpop.f32.mrf.mxu0
          %v2483 = vadd.f32 0.0, %v2482
          %v2484 = vpop.f32.mrf.mxu0
          %2485 = vdwg.mxu0
          %v2486 = vadd.f32 %v2274, %v2408
          %v2487 = vadd.f32 %v2275, %v2413
          %v2488 = vadd.f32 %v2276, %v2418
          %v2489 = vadd.f32 %v2277, %v2423
          %v2490 = vadd.f32 %v2278, %v2428
          %v2491 = vadd.f32 %v2279, %v2433
          %v2492 = vadd.f32 %v2280, %v2438
          %v2493 = vadd.f32 %v2281, %v2443
          %v2494 = vadd.f32 %v2282, %v2448
          %v2495 = vadd.f32 %v2283, %v2453
          %v2496 = vadd.f32 %v2284, %v2458
          %v2497 = vadd.f32 %v2285, %v2463
          %v2498 = vadd.f32 %v2286, %v2468
          %v2499 = vadd.f32 %v2287, %v2473
          %v2500 = vadd.f32 %v2288, %v2478
          %v2501 = vadd.f32 %v2289, %v2483
          %2502 = vst.msk [vmem:[#allocation4] sm:$0xff] %vm653, %v2486
          %2503 = vst.msk [vmem:[#allocation4 + $0x8] sm:$0xff] %vm653, %v2487
          %2504 = vst.msk [vmem:[#allocation4 + $0x10] sm:$0xff] %vm653, %v2488
          %2505 = vst.msk [vmem:[#allocation4 + $0x18] sm:$0xff] %vm653, %v2489
          %2506 = vst.msk [vmem:[#allocation4 + $0x20] sm:$0xff] %vm653, %v2490
          %2507 = vst.msk [vmem:[#allocation4 + $0x28] sm:$0xff] %vm653, %v2491
          %2508 = vst.msk [vmem:[#allocation4 + $0x30] sm:$0xff] %vm653, %v2492
          %2509 = vst.msk [vmem:[#allocation4 + $0x38] sm:$0xff] %vm653, %v2493
          %2510 = vst.msk [vmem:[#allocation4 + $0x40] sm:$0xff] %vm653, %v2494
          %2511 = vst.msk [vmem:[#allocation4 + $0x48] sm:$0xff] %vm653, %v2495
          %2512 = vst.msk [vmem:[#allocation4 + $0x50] sm:$0xff] %vm653, %v2496
          %2513 = vst.msk [vmem:[#allocation4 + $0x58] sm:$0xff] %vm653, %v2497
          %2514 = vst.msk [vmem:[#allocation4 + $0x60] sm:$0xff] %vm653, %v2498
          %2515 = vst.msk [vmem:[#allocation4 + $0x68] sm:$0xff] %vm653, %v2499
          %2516 = vst.msk [vmem:[#allocation4 + $0x70] sm:$0xff] %vm653, %v2500
          %2517 = vst.msk [vmem:[#allocation4 + $0x78] sm:$0xff] %vm653, %v2501
          %v2518 = vld [vmem:[%s2257 + $0x1] sm:$0xff]
          %v2519 = vld [vmem:[%s2257 + $0x11] sm:$0xff]
          %v2520 = vld [vmem:[%s2257 + $0x21] sm:$0xff]
          %v2521 = vld [vmem:[%s2257 + $0x31] sm:$0xff]
          %v2522 = vld [vmem:[%s2257 + $0x41] sm:$0xff]
          %v2523 = vld [vmem:[%s2257 + $0x51] sm:$0xff]
          %v2524 = vld [vmem:[%s2257 + $0x61] sm:$0xff]
          %v2525 = vld [vmem:[%s2257 + $0x71] sm:$0xff]
          %v2526 = vld [vmem:[%s2257 + $0xa1] sm:$0xff]
          %v2527 = vld [vmem:[%s2257 + $0xb1] sm:$0xff]
          %v2528 = vld [vmem:[%s2257 + $0xc1] sm:$0xff]
          %v2529 = vld [vmem:[%s2257 + $0xd1] sm:$0xff]
          %v2530 = vld [vmem:[%s2257 + $0xe1] sm:$0xff]
          %v2531 = vld [vmem:[%s2257 + $0xf1] sm:$0xff]
          %v2532 = vld [vmem:[%s2257 + $0x101] sm:$0xff]
          %v2533 = vld [vmem:[%s2257 + $0x111] sm:$0xff]
          %v2534 = vld [vmem:[#allocation4] sm:$0xff]
          %v2535 = vld [vmem:[#allocation4 + $0x8] sm:$0xff]
          %v2536 = vld [vmem:[#allocation4 + $0x10] sm:$0xff]
          %v2537 = vld [vmem:[#allocation4 + $0x18] sm:$0xff]
          %v2538 = vld [vmem:[#allocation4 + $0x20] sm:$0xff]
          %v2539 = vld [vmem:[#allocation4 + $0x28] sm:$0xff]
          %v2540 = vld [vmem:[#allocation4 + $0x30] sm:$0xff]
          %v2541 = vld [vmem:[#allocation4 + $0x38] sm:$0xff]
          %v2542 = vld [vmem:[#allocation4 + $0x40] sm:$0xff]
          %v2543 = vld [vmem:[#allocation4 + $0x48] sm:$0xff]
          %v2544 = vld [vmem:[#allocation4 + $0x50] sm:$0xff]
          %v2545 = vld [vmem:[#allocation4 + $0x58] sm:$0xff]
          %v2546 = vld [vmem:[#allocation4 + $0x60] sm:$0xff]
          %v2547 = vld [vmem:[#allocation4 + $0x68] sm:$0xff]
          %v2548 = vld [vmem:[#allocation4 + $0x70] sm:$0xff]
          %v2549 = vld [vmem:[#allocation4 + $0x78] sm:$0xff]
          %v2551 = vsel %vm571, %v2518, 0
          %v2554 = vsel %vm571, %v2519, 0
          %v2557 = vsel %vm571, %v2520, 0
          %v2560 = vsel %vm571, %v2521, 0
          %v2563 = vsel %vm571, %v2522, 0
          %v2566 = vsel %vm571, %v2523, 0
          %v2569 = vsel %vm571, %v2524, 0
          %v2572 = vsel %vm571, %v2525, 0
          %v2575 = vsel %vm571, %v2526, 0
          %v2578 = vsel %vm571, %v2527, 0
          %v2581 = vsel %vm571, %v2528, 0
          %v2584 = vsel %vm571, %v2529, 0
          %v2587 = vsel %vm571, %v2530, 0
          %v2590 = vsel %vm571, %v2531, 0
          %v2593 = vsel %vm571, %v2532, 0
          %v2596 = vsel %vm571, %v2533, 0
          %v2599 = vsel %vm1555, %v1464, 0
          %2601 = vmatprep.subr.mxu0 0.0
          %2602 = vmatpush1.msra.mxu0 0.0
          %2603 = vmatprep.subr.mxu0 0.0
          %2604 = vmatpush1.msra.mxu0 0.0
          %2605 = vmatprep.subr.mxu0 0.0
          %2606 = vmatpush1.msra.mxu0 0.0
          %2607 = vmatprep.subr.mxu0 0.0
          %2608 = vmatpush1.msra.mxu0 0.0
          %2609 = vmatprep.subr.mxu0 0.0
          %2610 = vmatpush1.msra.mxu0 0.0
          %2611 = vmatprep.subr.mxu0 0.0
          %2612 = vmatpush1.msra.mxu0 0.0
          %2613 = vmatprep.subr.mxu0 0.0
          %2614 = vmatpush1.msra.mxu0 0.0
          %2615 = vmatprep.subr.mxu0 0.0
          %2616 = vmatpush1.msra.mxu0 0.0
          %2617 = vmatprep.subr.mxu0 0.0
          %2618 = vmatpush1.msra.mxu0 0.0
          %2619 = vmatprep.subr.mxu0 0.0
          %2620 = vmatpush1.msra.mxu0 0.0
          %2621 = vmatprep.subr.mxu0 0.0
          %2622 = vmatpush1.msra.mxu0 0.0
          %2623 = vmatprep.subr.mxu0 0.0
          %2624 = vmatpush1.msra.mxu0 0.0
          %2625 = vmatprep.subr.mxu0 0.0
          %2626 = vmatpush1.msra.mxu0 0.0
          %2627 = vmatprep.subr.mxu0 0.0
          %2628 = vmatpush1.msra.mxu0 0.0
          %2629 = vmatprep.subr.mxu0 0.0
          %2630 = vmatpush1.msra.mxu0 %v2599
          %2631 = vmatprep.subr.mxu0 0.0
          %2632 = vmatpush1.msra.mxu0 %v1463
          %2633 = vmatprep.subr.mxu0 0.0
          %2634 = vmatpush2.msra.mxu0 0.0
          %2635 = vmatprep.subr.mxu0 0.0
          %2636 = vmatpush2.msra.mxu0 0.0
          %2637 = vmatprep.subr.mxu0 0.0
          %2638 = vmatpush2.msra.mxu0 0.0
          %2639 = vmatprep.subr.mxu0 0.0
          %2640 = vmatpush2.msra.mxu0 0.0
          %2641 = vmatprep.subr.mxu0 0.0
          %2642 = vmatpush2.msra.mxu0 0.0
          %2643 = vmatprep.subr.mxu0 0.0
          %2644 = vmatpush2.msra.mxu0 0.0
          %2645 = vmatprep.subr.mxu0 0.0
          %2646 = vmatpush2.msra.mxu0 0.0
          %2647 = vmatprep.subr.mxu0 0.0
          %2648 = vmatpush2.msra.mxu0 0.0
          %2649 = vmatprep.subr.mxu0 0.0
          %2650 = vmatpush2.msra.mxu0 0.0
          %2651 = vmatprep.subr.mxu0 0.0
          %2652 = vmatpush2.msra.mxu0 0.0
          %2653 = vmatprep.subr.mxu0 0.0
          %2654 = vmatpush2.msra.mxu0 0.0
          %2655 = vmatprep.subr.mxu0 0.0
          %2656 = vmatpush2.msra.mxu0 0.0
          %2657 = vmatprep.subr.mxu0 0.0
          %2658 = vmatpush2.msra.mxu0 0.0
          %2659 = vmatprep.subr.mxu0 0.0
          %2660 = vmatpush2.msra.mxu0 0.0
          %2661 = vmatprep.subr.mxu0 0.0
          %2662 = vmatpush2.msra.mxu0 0.0
          %2663 = vmatprep.subr.mxu0 0.0
          %2664 = vmatpush2.msra.mxu0 0.0
          %2665 = vmatprep.mubr.f32.mxu0 0.0
          %2666 = vmatmul.mubr.f32.gmra.mxu0 %v2551
          %v2667 = vpop.f32.mrf.mxu0
          %v2668 = vadd.f32 0.0, %v2667
          %v2669 = vpop.f32.mrf.mxu0
          %2670 = vmatprep.mubr.f32.mxu0 0.0
          %2671 = vmatmul.mubr.f32.gmra.mxu0 %v2554
          %v2672 = vpop.f32.mrf.mxu0
          %v2673 = vadd.f32 0.0, %v2672
          %v2674 = vpop.f32.mrf.mxu0
          %2675 = vmatprep.mubr.f32.mxu0 0.0
          %2676 = vmatmul.mubr.f32.gmra.mxu0 %v2557
          %v2677 = vpop.f32.mrf.mxu0
          %v2678 = vadd.f32 0.0, %v2677
          %v2679 = vpop.f32.mrf.mxu0
          %2680 = vmatprep.mubr.f32.mxu0 0.0
          %2681 = vmatmul.mubr.f32.gmra.mxu0 %v2560
          %v2682 = vpop.f32.mrf.mxu0
          %v2683 = vadd.f32 0.0, %v2682
          %v2684 = vpop.f32.mrf.mxu0
          %2685 = vmatprep.mubr.f32.mxu0 0.0
          %2686 = vmatmul.mubr.f32.gmra.mxu0 %v2563
          %v2687 = vpop.f32.mrf.mxu0
          %v2688 = vadd.f32 0.0, %v2687
          %v2689 = vpop.f32.mrf.mxu0
          %2690 = vmatprep.mubr.f32.mxu0 0.0
          %2691 = vmatmul.mubr.f32.gmra.mxu0 %v2566
          %v2692 = vpop.f32.mrf.mxu0
          %v2693 = vadd.f32 0.0, %v2692
          %v2694 = vpop.f32.mrf.mxu0
          %2695 = vmatprep.mubr.f32.mxu0 0.0
          %2696 = vmatmul.mubr.f32.gmra.mxu0 %v2569
          %v2697 = vpop.f32.mrf.mxu0
          %v2698 = vadd.f32 0.0, %v2697
          %v2699 = vpop.f32.mrf.mxu0
          %2700 = vmatprep.mubr.f32.mxu0 0.0
          %2701 = vmatmul.mubr.f32.gmra.mxu0 %v2572
          %v2702 = vpop.f32.mrf.mxu0
          %v2703 = vadd.f32 0.0, %v2702
          %v2704 = vpop.f32.mrf.mxu0
          %2705 = vmatprep.mubr.f32.mxu0 0.0
          %2706 = vmatmul.mubr.f32.gmra.mxu0 %v2575
          %v2707 = vpop.f32.mrf.mxu0
          %v2708 = vadd.f32 0.0, %v2707
          %v2709 = vpop.f32.mrf.mxu0
          %2710 = vmatprep.mubr.f32.mxu0 0.0
          %2711 = vmatmul.mubr.f32.gmra.mxu0 %v2578
          %v2712 = vpop.f32.mrf.mxu0
          %v2713 = vadd.f32 0.0, %v2712
          %v2714 = vpop.f32.mrf.mxu0
          %2715 = vmatprep.mubr.f32.mxu0 0.0
          %2716 = vmatmul.mubr.f32.gmra.mxu0 %v2581
          %v2717 = vpop.f32.mrf.mxu0
          %v2718 = vadd.f32 0.0, %v2717
          %v2719 = vpop.f32.mrf.mxu0
          %2720 = vmatprep.mubr.f32.mxu0 0.0
          %2721 = vmatmul.mubr.f32.gmra.mxu0 %v2584
          %v2722 = vpop.f32.mrf.mxu0
          %v2723 = vadd.f32 0.0, %v2722
          %v2724 = vpop.f32.mrf.mxu0
          %2725 = vmatprep.mubr.f32.mxu0 0.0
          %2726 = vmatmul.mubr.f32.gmra.mxu0 %v2587
          %v2727 = vpop.f32.mrf.mxu0
          %v2728 = vadd.f32 0.0, %v2727
          %v2729 = vpop.f32.mrf.mxu0
          %2730 = vmatprep.mubr.f32.mxu0 0.0
          %2731 = vmatmul.mubr.f32.gmra.mxu0 %v2590
          %v2732 = vpop.f32.mrf.mxu0
          %v2733 = vadd.f32 0.0, %v2732
          %v2734 = vpop.f32.mrf.mxu0
          %2735 = vmatprep.mubr.f32.mxu0 0.0
          %2736 = vmatmul.mubr.f32.gmra.mxu0 %v2593
          %v2737 = vpop.f32.mrf.mxu0
          %v2738 = vadd.f32 0.0, %v2737
          %v2739 = vpop.f32.mrf.mxu0
          %2740 = vmatprep.mubr.f32.mxu0 0.0
          %2741 = vmatmul.mubr.f32.gmra.mxu0 %v2596
          %v2742 = vpop.f32.mrf.mxu0
          %v2743 = vadd.f32 0.0, %v2742
          %v2744 = vpop.f32.mrf.mxu0
          %2745 = vdwg.mxu0
          %v2746 = vadd.f32 %v2534, %v2668
          %v2747 = vadd.f32 %v2535, %v2673
          %v2748 = vadd.f32 %v2536, %v2678
          %v2749 = vadd.f32 %v2537, %v2683
          %v2750 = vadd.f32 %v2538, %v2688
          %v2751 = vadd.f32 %v2539, %v2693
          %v2752 = vadd.f32 %v2540, %v2698
          %v2753 = vadd.f32 %v2541, %v2703
          %v2754 = vadd.f32 %v2542, %v2708
          %v2755 = vadd.f32 %v2543, %v2713
          %v2756 = vadd.f32 %v2544, %v2718
          %v2757 = vadd.f32 %v2545, %v2723
          %v2758 = vadd.f32 %v2546, %v2728
          %v2759 = vadd.f32 %v2547, %v2733
          %v2760 = vadd.f32 %v2548, %v2738
          %v2761 = vadd.f32 %v2549, %v2743
          %2762 = vst.msk [vmem:[#allocation4] sm:$0xff] %vm653, %v2746
          %2763 = vst.msk [vmem:[#allocation4 + $0x8] sm:$0xff] %vm653, %v2747
          %2764 = vst.msk [vmem:[#allocation4 + $0x10] sm:$0xff] %vm653, %v2748
          %2765 = vst.msk [vmem:[#allocation4 + $0x18] sm:$0xff] %vm653, %v2749
          %2766 = vst.msk [vmem:[#allocation4 + $0x20] sm:$0xff] %vm653, %v2750
          %2767 = vst.msk [vmem:[#allocation4 + $0x28] sm:$0xff] %vm653, %v2751
          %2768 = vst.msk [vmem:[#allocation4 + $0x30] sm:$0xff] %vm653, %v2752
          %2769 = vst.msk [vmem:[#allocation4 + $0x38] sm:$0xff] %vm653, %v2753
          %2770 = vst.msk [vmem:[#allocation4 + $0x40] sm:$0xff] %vm653, %v2754
          %2771 = vst.msk [vmem:[#allocation4 + $0x48] sm:$0xff] %vm653, %v2755
          %2772 = vst.msk [vmem:[#allocation4 + $0x50] sm:$0xff] %vm653, %v2756
          %2773 = vst.msk [vmem:[#allocation4 + $0x58] sm:$0xff] %vm653, %v2757
          %2774 = vst.msk [vmem:[#allocation4 + $0x60] sm:$0xff] %vm653, %v2758
          %2775 = vst.msk [vmem:[#allocation4 + $0x68] sm:$0xff] %vm653, %v2759
          %2776 = vst.msk [vmem:[#allocation4 + $0x70] sm:$0xff] %vm653, %v2760
          %2777 = vst.msk [vmem:[#allocation4 + $0x78] sm:$0xff] %vm653, %v2761
          %v2778 = vld [vmem:[%s2257 + $0x2] sm:$0xff]
          %v2779 = vld [vmem:[%s2257 + $0x12] sm:$0xff]
          %v2780 = vld [vmem:[%s2257 + $0x22] sm:$0xff]
          %v2781 = vld [vmem:[%s2257 + $0x32] sm:$0xff]
          %v2782 = vld [vmem:[%s2257 + $0x42] sm:$0xff]
          %v2783 = vld [vmem:[%s2257 + $0x52] sm:$0xff]
          %v2784 = vld [vmem:[%s2257 + $0x62] sm:$0xff]
          %v2785 = vld [vmem:[%s2257 + $0x72] sm:$0xff]
          %v2786 = vld [vmem:[%s2257 + $0xa2] sm:$0xff]
          %v2787 = vld [vmem:[%s2257 + $0xb2] sm:$0xff]
          %v2788 = vld [vmem:[%s2257 + $0xc2] sm:$0xff]
          %v2789 = vld [vmem:[%s2257 + $0xd2] sm:$0xff]
          %v2790 = vld [vmem:[%s2257 + $0xe2] sm:$0xff]
          %v2791 = vld [vmem:[%s2257 + $0xf2] sm:$0xff]
          %v2792 = vld [vmem:[%s2257 + $0x102] sm:$0xff]
          %v2793 = vld [vmem:[%s2257 + $0x112] sm:$0xff]
          %v2794 = vld [vmem:[#allocation4] sm:$0xff]
          %v2795 = vld [vmem:[#allocation4 + $0x8] sm:$0xff]
          %v2796 = vld [vmem:[#allocation4 + $0x10] sm:$0xff]
          %v2797 = vld [vmem:[#allocation4 + $0x18] sm:$0xff]
          %v2798 = vld [vmem:[#allocation4 + $0x20] sm:$0xff]
          %v2799 = vld [vmem:[#allocation4 + $0x28] sm:$0xff]
          %v2800 = vld [vmem:[#allocation4 + $0x30] sm:$0xff]
          %v2801 = vld [vmem:[#allocation4 + $0x38] sm:$0xff]
          %v2802 = vld [vmem:[#allocation4 + $0x40] sm:$0xff]
          %v2803 = vld [vmem:[#allocation4 + $0x48] sm:$0xff]
          %v2804 = vld [vmem:[#allocation4 + $0x50] sm:$0xff]
          %v2805 = vld [vmem:[#allocation4 + $0x58] sm:$0xff]
          %v2806 = vld [vmem:[#allocation4 + $0x60] sm:$0xff]
          %v2807 = vld [vmem:[#allocation4 + $0x68] sm:$0xff]
          %v2808 = vld [vmem:[#allocation4 + $0x70] sm:$0xff]
          %v2809 = vld [vmem:[#allocation4 + $0x78] sm:$0xff]
          %v2811 = vsel %vm571, %v2778, 0
          %v2814 = vsel %vm571, %v2779, 0
          %v2817 = vsel %vm571, %v2780, 0
          %v2820 = vsel %vm571, %v2781, 0
          %v2823 = vsel %vm571, %v2782, 0
          %v2826 = vsel %vm571, %v2783, 0
          %v2829 = vsel %vm571, %v2784, 0
          %v2832 = vsel %vm571, %v2785, 0
          %v2835 = vsel %vm571, %v2786, 0
          %v2838 = vsel %vm571, %v2787, 0
          %v2841 = vsel %vm571, %v2788, 0
          %v2844 = vsel %vm571, %v2789, 0
          %v2847 = vsel %vm571, %v2790, 0
          %v2850 = vsel %vm571, %v2791, 0
          %v2853 = vsel %vm571, %v2792, 0
          %v2856 = vsel %vm571, %v2793, 0
          %v2859 = vsel %vm1555, %v1466, 0
          %2861 = vmatprep.subr.mxu0 0.0
          %2862 = vmatpush1.msra.mxu0 0.0
          %2863 = vmatprep.subr.mxu0 0.0
          %2864 = vmatpush1.msra.mxu0 0.0
          %2865 = vmatprep.subr.mxu0 0.0
          %2866 = vmatpush1.msra.mxu0 0.0
          %2867 = vmatprep.subr.mxu0 0.0
          %2868 = vmatpush1.msra.mxu0 0.0
          %2869 = vmatprep.subr.mxu0 0.0
          %2870 = vmatpush1.msra.mxu0 0.0
          %2871 = vmatprep.subr.mxu0 0.0
          %2872 = vmatpush1.msra.mxu0 0.0
          %2873 = vmatprep.subr.mxu0 0.0
          %2874 = vmatpush1.msra.mxu0 0.0
          %2875 = vmatprep.subr.mxu0 0.0
          %2876 = vmatpush1.msra.mxu0 0.0
          %2877 = vmatprep.subr.mxu0 0.0
          %2878 = vmatpush1.msra.mxu0 0.0
          %2879 = vmatprep.subr.mxu0 0.0
          %2880 = vmatpush1.msra.mxu0 0.0
          %2881 = vmatprep.subr.mxu0 0.0
          %2882 = vmatpush1.msra.mxu0 0.0
          %2883 = vmatprep.subr.mxu0 0.0
          %2884 = vmatpush1.msra.mxu0 0.0
          %2885 = vmatprep.subr.mxu0 0.0
          %2886 = vmatpush1.msra.mxu0 0.0
          %2887 = vmatprep.subr.mxu0 0.0
          %2888 = vmatpush1.msra.mxu0 0.0
          %2889 = vmatprep.subr.mxu0 0.0
          %2890 = vmatpush1.msra.mxu0 %v2859
          %2891 = vmatprep.subr.mxu0 0.0
          %2892 = vmatpush1.msra.mxu0 %v1465
          %2893 = vmatprep.subr.mxu0 0.0
          %2894 = vmatpush2.msra.mxu0 0.0
          %2895 = vmatprep.subr.mxu0 0.0
          %2896 = vmatpush2.msra.mxu0 0.0
          %2897 = vmatprep.subr.mxu0 0.0
          %2898 = vmatpush2.msra.mxu0 0.0
          %2899 = vmatprep.subr.mxu0 0.0
          %2900 = vmatpush2.msra.mxu0 0.0
          %2901 = vmatprep.subr.mxu0 0.0
          %2902 = vmatpush2.msra.mxu0 0.0
          %2903 = vmatprep.subr.mxu0 0.0
          %2904 = vmatpush2.msra.mxu0 0.0
          %2905 = vmatprep.subr.mxu0 0.0
          %2906 = vmatpush2.msra.mxu0 0.0
          %2907 = vmatprep.subr.mxu0 0.0
          %2908 = vmatpush2.msra.mxu0 0.0
          %2909 = vmatprep.subr.mxu0 0.0
          %2910 = vmatpush2.msra.mxu0 0.0
          %2911 = vmatprep.subr.mxu0 0.0
          %2912 = vmatpush2.msra.mxu0 0.0
          %2913 = vmatprep.subr.mxu0 0.0
          %2914 = vmatpush2.msra.mxu0 0.0
          %2915 = vmatprep.subr.mxu0 0.0
          %2916 = vmatpush2.msra.mxu0 0.0
          %2917 = vmatprep.subr.mxu0 0.0
          %2918 = vmatpush2.msra.mxu0 0.0
          %2919 = vmatprep.subr.mxu0 0.0
          %2920 = vmatpush2.msra.mxu0 0.0
          %2921 = vmatprep.subr.mxu0 0.0
          %2922 = vmatpush2.msra.mxu0 0.0
          %2923 = vmatprep.subr.mxu0 0.0
          %2924 = vmatpush2.msra.mxu0 0.0
          %2925 = vmatprep.mubr.f32.mxu0 0.0
          %2926 = vmatmul.mubr.f32.gmra.mxu0 %v2811
          %v2927 = vpop.f32.mrf.mxu0
          %v2928 = vadd.f32 0.0, %v2927
          %v2929 = vpop.f32.mrf.mxu0
          %2930 = vmatprep.mubr.f32.mxu0 0.0
          %2931 = vmatmul.mubr.f32.gmra.mxu0 %v2814
          %v2932 = vpop.f32.mrf.mxu0
          %v2933 = vadd.f32 0.0, %v2932
          %v2934 = vpop.f32.mrf.mxu0
          %2935 = vmatprep.mubr.f32.mxu0 0.0
          %2936 = vmatmul.mubr.f32.gmra.mxu0 %v2817
          %v2937 = vpop.f32.mrf.mxu0
          %v2938 = vadd.f32 0.0, %v2937
          %v2939 = vpop.f32.mrf.mxu0
          %2940 = vmatprep.mubr.f32.mxu0 0.0
          %2941 = vmatmul.mubr.f32.gmra.mxu0 %v2820
          %v2942 = vpop.f32.mrf.mxu0
          %v2943 = vadd.f32 0.0, %v2942
          %v2944 = vpop.f32.mrf.mxu0
          %2945 = vmatprep.mubr.f32.mxu0 0.0
          %2946 = vmatmul.mubr.f32.gmra.mxu0 %v2823
          %v2947 = vpop.f32.mrf.mxu0
          %v2948 = vadd.f32 0.0, %v2947
          %v2949 = vpop.f32.mrf.mxu0
          %2950 = vmatprep.mubr.f32.mxu0 0.0
          %2951 = vmatmul.mubr.f32.gmra.mxu0 %v2826
          %v2952 = vpop.f32.mrf.mxu0
          %v2953 = vadd.f32 0.0, %v2952
          %v2954 = vpop.f32.mrf.mxu0
          %2955 = vmatprep.mubr.f32.mxu0 0.0
          %2956 = vmatmul.mubr.f32.gmra.mxu0 %v2829
          %v2957 = vpop.f32.mrf.mxu0
          %v2958 = vadd.f32 0.0, %v2957
          %v2959 = vpop.f32.mrf.mxu0
          %2960 = vmatprep.mubr.f32.mxu0 0.0
          %2961 = vmatmul.mubr.f32.gmra.mxu0 %v2832
          %v2962 = vpop.f32.mrf.mxu0
          %v2963 = vadd.f32 0.0, %v2962
          %v2964 = vpop.f32.mrf.mxu0
          %2965 = vmatprep.mubr.f32.mxu0 0.0
          %2966 = vmatmul.mubr.f32.gmra.mxu0 %v2835
          %v2967 = vpop.f32.mrf.mxu0
          %v2968 = vadd.f32 0.0, %v2967
          %v2969 = vpop.f32.mrf.mxu0
          %2970 = vmatprep.mubr.f32.mxu0 0.0
          %2971 = vmatmul.mubr.f32.gmra.mxu0 %v2838
          %v2972 = vpop.f32.mrf.mxu0
          %v2973 = vadd.f32 0.0, %v2972
          %v2974 = vpop.f32.mrf.mxu0
          %2975 = vmatprep.mubr.f32.mxu0 0.0
          %2976 = vmatmul.mubr.f32.gmra.mxu0 %v2841
          %v2977 = vpop.f32.mrf.mxu0
          %v2978 = vadd.f32 0.0, %v2977
          %v2979 = vpop.f32.mrf.mxu0
          %2980 = vmatprep.mubr.f32.mxu0 0.0
          %2981 = vmatmul.mubr.f32.gmra.mxu0 %v2844
          %v2982 = vpop.f32.mrf.mxu0
          %v2983 = vadd.f32 0.0, %v2982
          %v2984 = vpop.f32.mrf.mxu0
          %2985 = vmatprep.mubr.f32.mxu0 0.0
          %2986 = vmatmul.mubr.f32.gmra.mxu0 %v2847
          %v2987 = vpop.f32.mrf.mxu0
          %v2988 = vadd.f32 0.0, %v2987
          %v2989 = vpop.f32.mrf.mxu0
          %2990 = vmatprep.mubr.f32.mxu0 0.0
          %2991 = vmatmul.mubr.f32.gmra.mxu0 %v2850
          %v2992 = vpop.f32.mrf.mxu0
          %v2993 = vadd.f32 0.0, %v2992
          %v2994 = vpop.f32.mrf.mxu0
          %2995 = vmatprep.mubr.f32.mxu0 0.0
          %2996 = vmatmul.mubr.f32.gmra.mxu0 %v2853
          %v2997 = vpop.f32.mrf.mxu0
          %v2998 = vadd.f32 0.0, %v2997
          %v2999 = vpop.f32.mrf.mxu0
          %3000 = vmatprep.mubr.f32.mxu0 0.0
          %3001 = vmatmul.mubr.f32.gmra.mxu0 %v2856
          %v3002 = vpop.f32.mrf.mxu0
          %v3003 = vadd.f32 0.0, %v3002
          %v3004 = vpop.f32.mrf.mxu0
          %3005 = vdwg.mxu0
          %v3006 = vadd.f32 %v2794, %v2928
          %v3007 = vadd.f32 %v2795, %v2933
          %v3008 = vadd.f32 %v2796, %v2938
          %v3009 = vadd.f32 %v2797, %v2943
          %v3010 = vadd.f32 %v2798, %v2948
          %v3011 = vadd.f32 %v2799, %v2953
          %v3012 = vadd.f32 %v2800, %v2958
          %v3013 = vadd.f32 %v2801, %v2963
          %v3014 = vadd.f32 %v2802, %v2968
          %v3015 = vadd.f32 %v2803, %v2973
          %v3016 = vadd.f32 %v2804, %v2978
          %v3017 = vadd.f32 %v2805, %v2983
          %v3018 = vadd.f32 %v2806, %v2988
          %v3019 = vadd.f32 %v2807, %v2993
          %v3020 = vadd.f32 %v2808, %v2998
          %v3021 = vadd.f32 %v2809, %v3003
          %3022 = vst.msk [vmem:[#allocation4] sm:$0xff] %vm653, %v3006
          %3023 = vst.msk [vmem:[#allocation4 + $0x8] sm:$0xff] %vm653, %v3007
          %3024 = vst.msk [vmem:[#allocation4 + $0x10] sm:$0xff] %vm653, %v3008
          %3025 = vst.msk [vmem:[#allocation4 + $0x18] sm:$0xff] %vm653, %v3009
          %3026 = vst.msk [vmem:[#allocation4 + $0x20] sm:$0xff] %vm653, %v3010
          %3027 = vst.msk [vmem:[#allocation4 + $0x28] sm:$0xff] %vm653, %v3011
          %3028 = vst.msk [vmem:[#allocation4 + $0x30] sm:$0xff] %vm653, %v3012
          %3029 = vst.msk [vmem:[#allocation4 + $0x38] sm:$0xff] %vm653, %v3013
          %3030 = vst.msk [vmem:[#allocation4 + $0x40] sm:$0xff] %vm653, %v3014
          %3031 = vst.msk [vmem:[#allocation4 + $0x48] sm:$0xff] %vm653, %v3015
          %3032 = vst.msk [vmem:[#allocation4 + $0x50] sm:$0xff] %vm653, %v3016
          %3033 = vst.msk [vmem:[#allocation4 + $0x58] sm:$0xff] %vm653, %v3017
          %3034 = vst.msk [vmem:[#allocation4 + $0x60] sm:$0xff] %vm653, %v3018
          %3035 = vst.msk [vmem:[#allocation4 + $0x68] sm:$0xff] %vm653, %v3019
          %3036 = vst.msk [vmem:[#allocation4 + $0x70] sm:$0xff] %vm653, %v3020
          %3037 = vst.msk [vmem:[#allocation4 + $0x78] sm:$0xff] %vm653, %v3021
          %s3038 = sadd.s32 32, %s1473
          %s3039 = scalar_lea.vmem [#allocation3], %s3038
          %v3040 = vld [vmem:[%s3039] sm:$0xff]
          %v3041 = vld [vmem:[%s3039 + $0x10] sm:$0xff]
          %v3042 = vld [vmem:[%s3039 + $0x20] sm:$0xff]
          %v3043 = vld [vmem:[%s3039 + $0x30] sm:$0xff]
          %v3044 = vld [vmem:[%s3039 + $0x40] sm:$0xff]
          %v3045 = vld [vmem:[%s3039 + $0x50] sm:$0xff]
          %v3046 = vld [vmem:[%s3039 + $0x60] sm:$0xff]
          %v3047 = vld [vmem:[%s3039 + $0x70] sm:$0xff]
          %v3048 = vld [vmem:[%s3039 + $0xa0] sm:$0xff]
          %v3049 = vld [vmem:[%s3039 + $0xb0] sm:$0xff]
          %v3050 = vld [vmem:[%s3039 + $0xc0] sm:$0xff]
          %v3051 = vld [vmem:[%s3039 + $0xd0] sm:$0xff]
          %v3052 = vld [vmem:[%s3039 + $0xe0] sm:$0xff]
          %v3053 = vld [vmem:[%s3039 + $0xf0] sm:$0xff]
          %v3054 = vld [vmem:[%s3039 + $0x100] sm:$0xff]
          %v3055 = vld [vmem:[%s3039 + $0x110] sm:$0xff]
          %v3056 = vld [vmem:[#allocation4] sm:$0xff]
          %v3057 = vld [vmem:[#allocation4 + $0x8] sm:$0xff]
          %v3058 = vld [vmem:[#allocation4 + $0x10] sm:$0xff]
          %v3059 = vld [vmem:[#allocation4 + $0x18] sm:$0xff]
          %v3060 = vld [vmem:[#allocation4 + $0x20] sm:$0xff]
          %v3061 = vld [vmem:[#allocation4 + $0x28] sm:$0xff]
          %v3062 = vld [vmem:[#allocation4 + $0x30] sm:$0xff]
          %v3063 = vld [vmem:[#allocation4 + $0x38] sm:$0xff]
          %v3064 = vld [vmem:[#allocation4 + $0x40] sm:$0xff]
          %v3065 = vld [vmem:[#allocation4 + $0x48] sm:$0xff]
          %v3066 = vld [vmem:[#allocation4 + $0x50] sm:$0xff]
          %v3067 = vld [vmem:[#allocation4 + $0x58] sm:$0xff]
          %v3068 = vld [vmem:[#allocation4 + $0x60] sm:$0xff]
          %v3069 = vld [vmem:[#allocation4 + $0x68] sm:$0xff]
          %v3070 = vld [vmem:[#allocation4 + $0x70] sm:$0xff]
          %v3071 = vld [vmem:[#allocation4 + $0x78] sm:$0xff]
          %v3073 = vsel %vm571, %v3040, 0
          %v3076 = vsel %vm571, %v3041, 0
          %v3079 = vsel %vm571, %v3042, 0
          %v3082 = vsel %vm571, %v3043, 0
          %v3085 = vsel %vm571, %v3044, 0
          %v3088 = vsel %vm571, %v3045, 0
          %v3091 = vsel %vm571, %v3046, 0
          %v3094 = vsel %vm571, %v3047, 0
          %v3097 = vsel %vm571, %v3048, 0
          %v3100 = vsel %vm571, %v3049, 0
          %v3103 = vsel %vm571, %v3050, 0
          %v3106 = vsel %vm571, %v3051, 0
          %v3109 = vsel %vm571, %v3052, 0
          %v3112 = vsel %vm571, %v3053, 0
          %v3115 = vsel %vm571, %v3054, 0
          %v3118 = vsel %vm571, %v3055, 0
          %v3121 = vsel %vm1555, %v1468, 0
          %3123 = vmatprep.subr.mxu0 0.0
          %3124 = vmatpush1.msra.mxu0 0.0
          %3125 = vmatprep.subr.mxu0 0.0
          %3126 = vmatpush1.msra.mxu0 0.0
          %3127 = vmatprep.subr.mxu0 0.0
          %3128 = vmatpush1.msra.mxu0 0.0
          %3129 = vmatprep.subr.mxu0 0.0
          %3130 = vmatpush1.msra.mxu0 0.0
          %3131 = vmatprep.subr.mxu0 0.0
          %3132 = vmatpush1.msra.mxu0 0.0
          %3133 = vmatprep.subr.mxu0 0.0
          %3134 = vmatpush1.msra.mxu0 0.0
          %3135 = vmatprep.subr.mxu0 0.0
          %3136 = vmatpush1.msra.mxu0 0.0
          %3137 = vmatprep.subr.mxu0 0.0
          %3138 = vmatpush1.msra.mxu0 0.0
          %3139 = vmatprep.subr.mxu0 0.0
          %3140 = vmatpush1.msra.mxu0 0.0
          %3141 = vmatprep.subr.mxu0 0.0
          %3142 = vmatpush1.msra.mxu0 0.0
          %3143 = vmatprep.subr.mxu0 0.0
          %3144 = vmatpush1.msra.mxu0 0.0
          %3145 = vmatprep.subr.mxu0 0.0
          %3146 = vmatpush1.msra.mxu0 0.0
          %3147 = vmatprep.subr.mxu0 0.0
          %3148 = vmatpush1.msra.mxu0 0.0
          %3149 = vmatprep.subr.mxu0 0.0
          %3150 = vmatpush1.msra.mxu0 0.0
          %3151 = vmatprep.subr.mxu0 0.0
          %3152 = vmatpush1.msra.mxu0 %v3121
          %3153 = vmatprep.subr.mxu0 0.0
          %3154 = vmatpush1.msra.mxu0 %v1467
          %3155 = vmatprep.subr.mxu0 0.0
          %3156 = vmatpush2.msra.mxu0 0.0
          %3157 = vmatprep.subr.mxu0 0.0
          %3158 = vmatpush2.msra.mxu0 0.0
          %3159 = vmatprep.subr.mxu0 0.0
          %3160 = vmatpush2.msra.mxu0 0.0
          %3161 = vmatprep.subr.mxu0 0.0
          %3162 = vmatpush2.msra.mxu0 0.0
          %3163 = vmatprep.subr.mxu0 0.0
          %3164 = vmatpush2.msra.mxu0 0.0
          %3165 = vmatprep.subr.mxu0 0.0
          %3166 = vmatpush2.msra.mxu0 0.0
          %3167 = vmatprep.subr.mxu0 0.0
          %3168 = vmatpush2.msra.mxu0 0.0
          %3169 = vmatprep.subr.mxu0 0.0
          %3170 = vmatpush2.msra.mxu0 0.0
          %3171 = vmatprep.subr.mxu0 0.0
          %3172 = vmatpush2.msra.mxu0 0.0
          %3173 = vmatprep.subr.mxu0 0.0
          %3174 = vmatpush2.msra.mxu0 0.0
          %3175 = vmatprep.subr.mxu0 0.0
          %3176 = vmatpush2.msra.mxu0 0.0
          %3177 = vmatprep.subr.mxu0 0.0
          %3178 = vmatpush2.msra.mxu0 0.0
          %3179 = vmatprep.subr.mxu0 0.0
          %3180 = vmatpush2.msra.mxu0 0.0
          %3181 = vmatprep.subr.mxu0 0.0
          %3182 = vmatpush2.msra.mxu0 0.0
          %3183 = vmatprep.subr.mxu0 0.0
          %3184 = vmatpush2.msra.mxu0 0.0
          %3185 = vmatprep.subr.mxu0 0.0
          %3186 = vmatpush2.msra.mxu0 0.0
          %3187 = vmatprep.mubr.f32.mxu0 0.0
          %3188 = vmatmul.mubr.f32.gmra.mxu0 %v3073
          %v3189 = vpop.f32.mrf.mxu0
          %v3190 = vadd.f32 0.0, %v3189
          %v3191 = vpop.f32.mrf.mxu0
          %3192 = vmatprep.mubr.f32.mxu0 0.0
          %3193 = vmatmul.mubr.f32.gmra.mxu0 %v3076
          %v3194 = vpop.f32.mrf.mxu0
          %v3195 = vadd.f32 0.0, %v3194
          %v3196 = vpop.f32.mrf.mxu0
          %3197 = vmatprep.mubr.f32.mxu0 0.0
          %3198 = vmatmul.mubr.f32.gmra.mxu0 %v3079
          %v3199 = vpop.f32.mrf.mxu0
          %v3200 = vadd.f32 0.0, %v3199
          %v3201 = vpop.f32.mrf.mxu0
          %3202 = vmatprep.mubr.f32.mxu0 0.0
          %3203 = vmatmul.mubr.f32.gmra.mxu0 %v3082
          %v3204 = vpop.f32.mrf.mxu0
          %v3205 = vadd.f32 0.0, %v3204
          %v3206 = vpop.f32.mrf.mxu0
          %3207 = vmatprep.mubr.f32.mxu0 0.0
          %3208 = vmatmul.mubr.f32.gmra.mxu0 %v3085
          %v3209 = vpop.f32.mrf.mxu0
          %v3210 = vadd.f32 0.0, %v3209
          %v3211 = vpop.f32.mrf.mxu0
          %3212 = vmatprep.mubr.f32.mxu0 0.0
          %3213 = vmatmul.mubr.f32.gmra.mxu0 %v3088
          %v3214 = vpop.f32.mrf.mxu0
          %v3215 = vadd.f32 0.0, %v3214
          %v3216 = vpop.f32.mrf.mxu0
          %3217 = vmatprep.mubr.f32.mxu0 0.0
          %3218 = vmatmul.mubr.f32.gmra.mxu0 %v3091
          %v3219 = vpop.f32.mrf.mxu0
          %v3220 = vadd.f32 0.0, %v3219
          %v3221 = vpop.f32.mrf.mxu0
          %3222 = vmatprep.mubr.f32.mxu0 0.0
          %3223 = vmatmul.mubr.f32.gmra.mxu0 %v3094
          %v3224 = vpop.f32.mrf.mxu0
          %v3225 = vadd.f32 0.0, %v3224
          %v3226 = vpop.f32.mrf.mxu0
          %3227 = vmatprep.mubr.f32.mxu0 0.0
          %3228 = vmatmul.mubr.f32.gmra.mxu0 %v3097
          %v3229 = vpop.f32.mrf.mxu0
          %v3230 = vadd.f32 0.0, %v3229
          %v3231 = vpop.f32.mrf.mxu0
          %3232 = vmatprep.mubr.f32.mxu0 0.0
          %3233 = vmatmul.mubr.f32.gmra.mxu0 %v3100
          %v3234 = vpop.f32.mrf.mxu0
          %v3235 = vadd.f32 0.0, %v3234
          %v3236 = vpop.f32.mrf.mxu0
          %3237 = vmatprep.mubr.f32.mxu0 0.0
          %3238 = vmatmul.mubr.f32.gmra.mxu0 %v3103
          %v3239 = vpop.f32.mrf.mxu0
          %v3240 = vadd.f32 0.0, %v3239
          %v3241 = vpop.f32.mrf.mxu0
          %3242 = vmatprep.mubr.f32.mxu0 0.0
          %3243 = vmatmul.mubr.f32.gmra.mxu0 %v3106
          %v3244 = vpop.f32.mrf.mxu0
          %v3245 = vadd.f32 0.0, %v3244
          %v3246 = vpop.f32.mrf.mxu0
          %3247 = vmatprep.mubr.f32.mxu0 0.0
          %3248 = vmatmul.mubr.f32.gmra.mxu0 %v3109
          %v3249 = vpop.f32.mrf.mxu0
          %v3250 = vadd.f32 0.0, %v3249
          %v3251 = vpop.f32.mrf.mxu0
          %3252 = vmatprep.mubr.f32.mxu0 0.0
          %3253 = vmatmul.mubr.f32.gmra.mxu0 %v3112
          %v3254 = vpop.f32.mrf.mxu0
          %v3255 = vadd.f32 0.0, %v3254
          %v3256 = vpop.f32.mrf.mxu0
          %3257 = vmatprep.mubr.f32.mxu0 0.0
          %3258 = vmatmul.mubr.f32.gmra.mxu0 %v3115
          %v3259 = vpop.f32.mrf.mxu0
          %v3260 = vadd.f32 0.0, %v3259
          %v3261 = vpop.f32.mrf.mxu0
          %3262 = vmatprep.mubr.f32.mxu0 0.0
          %3263 = vmatmul.mubr.f32.gmra.mxu0 %v3118
          %v3264 = vpop.f32.mrf.mxu0
          %v3265 = vadd.f32 0.0, %v3264
          %v3266 = vpop.f32.mrf.mxu0
          %3267 = vdwg.mxu0
          %v3268 = vadd.f32 %v3056, %v3190
          %v3269 = vadd.f32 %v3057, %v3195
          %v3270 = vadd.f32 %v3058, %v3200
          %v3271 = vadd.f32 %v3059, %v3205
          %v3272 = vadd.f32 %v3060, %v3210
          %v3273 = vadd.f32 %v3061, %v3215
          %v3274 = vadd.f32 %v3062, %v3220
          %v3275 = vadd.f32 %v3063, %v3225
          %v3276 = vadd.f32 %v3064, %v3230
          %v3277 = vadd.f32 %v3065, %v3235
          %v3278 = vadd.f32 %v3066, %v3240
          %v3279 = vadd.f32 %v3067, %v3245
          %v3280 = vadd.f32 %v3068, %v3250
          %v3281 = vadd.f32 %v3069, %v3255
          %v3282 = vadd.f32 %v3070, %v3260
          %v3283 = vadd.f32 %v3071, %v3265
          %3284 = vst.msk [vmem:[#allocation4] sm:$0xff] %vm653, %v3268
          %3285 = vst.msk [vmem:[#allocation4 + $0x8] sm:$0xff] %vm653, %v3269
          %3286 = vst.msk [vmem:[#allocation4 + $0x10] sm:$0xff] %vm653, %v3270
          %3287 = vst.msk [vmem:[#allocation4 + $0x18] sm:$0xff] %vm653, %v3271
          %3288 = vst.msk [vmem:[#allocation4 + $0x20] sm:$0xff] %vm653, %v3272
          %3289 = vst.msk [vmem:[#allocation4 + $0x28] sm:$0xff] %vm653, %v3273
          %3290 = vst.msk [vmem:[#allocation4 + $0x30] sm:$0xff] %vm653, %v3274
          %3291 = vst.msk [vmem:[#allocation4 + $0x38] sm:$0xff] %vm653, %v3275
          %3292 = vst.msk [vmem:[#allocation4 + $0x40] sm:$0xff] %vm653, %v3276
          %3293 = vst.msk [vmem:[#allocation4 + $0x48] sm:$0xff] %vm653, %v3277
          %3294 = vst.msk [vmem:[#allocation4 + $0x50] sm:$0xff] %vm653, %v3278
          %3295 = vst.msk [vmem:[#allocation4 + $0x58] sm:$0xff] %vm653, %v3279
          %3296 = vst.msk [vmem:[#allocation4 + $0x60] sm:$0xff] %vm653, %v3280
          %3297 = vst.msk [vmem:[#allocation4 + $0x68] sm:$0xff] %vm653, %v3281
          %3298 = vst.msk [vmem:[#allocation4 + $0x70] sm:$0xff] %vm653, %v3282
          %3299 = vst.msk [vmem:[#allocation4 + $0x78] sm:$0xff] %vm653, %v3283
          %v3300 = vld [vmem:[%s3039 + $0x1] sm:$0xff]
          %v3301 = vld [vmem:[%s3039 + $0x11] sm:$0xff]
          %v3302 = vld [vmem:[%s3039 + $0x21] sm:$0xff]
          %v3303 = vld [vmem:[%s3039 + $0x31] sm:$0xff]
          %v3304 = vld [vmem:[%s3039 + $0x41] sm:$0xff]
          %v3305 = vld [vmem:[%s3039 + $0x51] sm:$0xff]
          %v3306 = vld [vmem:[%s3039 + $0x61] sm:$0xff]
          %v3307 = vld [vmem:[%s3039 + $0x71] sm:$0xff]
          %v3308 = vld [vmem:[%s3039 + $0xa1] sm:$0xff]
          %v3309 = vld [vmem:[%s3039 + $0xb1] sm:$0xff]
          %v3310 = vld [vmem:[%s3039 + $0xc1] sm:$0xff]
          %v3311 = vld [vmem:[%s3039 + $0xd1] sm:$0xff]
          %v3312 = vld [vmem:[%s3039 + $0xe1] sm:$0xff]
          %v3313 = vld [vmem:[%s3039 + $0xf1] sm:$0xff]
          %v3314 = vld [vmem:[%s3039 + $0x101] sm:$0xff]
          %v3315 = vld [vmem:[%s3039 + $0x111] sm:$0xff]
          %v3316 = vld [vmem:[#allocation4] sm:$0xff]
          %v3317 = vld [vmem:[#allocation4 + $0x8] sm:$0xff]
          %v3318 = vld [vmem:[#allocation4 + $0x10] sm:$0xff]
          %v3319 = vld [vmem:[#allocation4 + $0x18] sm:$0xff]
          %v3320 = vld [vmem:[#allocation4 + $0x20] sm:$0xff]
          %v3321 = vld [vmem:[#allocation4 + $0x28] sm:$0xff]
          %v3322 = vld [vmem:[#allocation4 + $0x30] sm:$0xff]
          %v3323 = vld [vmem:[#allocation4 + $0x38] sm:$0xff]
          %v3324 = vld [vmem:[#allocation4 + $0x40] sm:$0xff]
          %v3325 = vld [vmem:[#allocation4 + $0x48] sm:$0xff]
          %v3326 = vld [vmem:[#allocation4 + $0x50] sm:$0xff]
          %v3327 = vld [vmem:[#allocation4 + $0x58] sm:$0xff]
          %v3328 = vld [vmem:[#allocation4 + $0x60] sm:$0xff]
          %v3329 = vld [vmem:[#allocation4 + $0x68] sm:$0xff]
          %v3330 = vld [vmem:[#allocation4 + $0x70] sm:$0xff]
          %v3331 = vld [vmem:[#allocation4 + $0x78] sm:$0xff]
          %v3333 = vsel %vm571, %v3300, 0
          %v3336 = vsel %vm571, %v3301, 0
          %v3339 = vsel %vm571, %v3302, 0
          %v3342 = vsel %vm571, %v3303, 0
          %v3345 = vsel %vm571, %v3304, 0
          %v3348 = vsel %vm571, %v3305, 0
          %v3351 = vsel %vm571, %v3306, 0
          %v3354 = vsel %vm571, %v3307, 0
          %v3357 = vsel %vm571, %v3308, 0
          %v3360 = vsel %vm571, %v3309, 0
          %v3363 = vsel %vm571, %v3310, 0
          %v3366 = vsel %vm571, %v3311, 0
          %v3369 = vsel %vm571, %v3312, 0
          %v3372 = vsel %vm571, %v3313, 0
          %v3375 = vsel %vm571, %v3314, 0
          %v3378 = vsel %vm571, %v3315, 0
          %v3381 = vsel %vm1555, %v1470, 0
          %3383 = vmatprep.subr.mxu0 0.0
          %3384 = vmatpush1.msra.mxu0 0.0
          %3385 = vmatprep.subr.mxu0 0.0
          %3386 = vmatpush1.msra.mxu0 0.0
          %3387 = vmatprep.subr.mxu0 0.0
          %3388 = vmatpush1.msra.mxu0 0.0
          %3389 = vmatprep.subr.mxu0 0.0
          %3390 = vmatpush1.msra.mxu0 0.0
          %3391 = vmatprep.subr.mxu0 0.0
          %3392 = vmatpush1.msra.mxu0 0.0
          %3393 = vmatprep.subr.mxu0 0.0
          %3394 = vmatpush1.msra.mxu0 0.0
          %3395 = vmatprep.subr.mxu0 0.0
          %3396 = vmatpush1.msra.mxu0 0.0
          %3397 = vmatprep.subr.mxu0 0.0
          %3398 = vmatpush1.msra.mxu0 0.0
          %3399 = vmatprep.subr.mxu0 0.0
          %3400 = vmatpush1.msra.mxu0 0.0
          %3401 = vmatprep.subr.mxu0 0.0
          %3402 = vmatpush1.msra.mxu0 0.0
          %3403 = vmatprep.subr.mxu0 0.0
          %3404 = vmatpush1.msra.mxu0 0.0
          %3405 = vmatprep.subr.mxu0 0.0
          %3406 = vmatpush1.msra.mxu0 0.0
          %3407 = vmatprep.subr.mxu0 0.0
          %3408 = vmatpush1.msra.mxu0 0.0
          %3409 = vmatprep.subr.mxu0 0.0
          %3410 = vmatpush1.msra.mxu0 0.0
          %3411 = vmatprep.subr.mxu0 0.0
          %3412 = vmatpush1.msra.mxu0 %v3381
          %3413 = vmatprep.subr.mxu0 0.0
          %3414 = vmatpush1.msra.mxu0 %v1469
          %3415 = vmatprep.subr.mxu0 0.0
          %3416 = vmatpush2.msra.mxu0 0.0
          %3417 = vmatprep.subr.mxu0 0.0
          %3418 = vmatpush2.msra.mxu0 0.0
          %3419 = vmatprep.subr.mxu0 0.0
          %3420 = vmatpush2.msra.mxu0 0.0
          %3421 = vmatprep.subr.mxu0 0.0
          %3422 = vmatpush2.msra.mxu0 0.0
          %3423 = vmatprep.subr.mxu0 0.0
          %3424 = vmatpush2.msra.mxu0 0.0
          %3425 = vmatprep.subr.mxu0 0.0
          %3426 = vmatpush2.msra.mxu0 0.0
          %3427 = vmatprep.subr.mxu0 0.0
          %3428 = vmatpush2.msra.mxu0 0.0
          %3429 = vmatprep.subr.mxu0 0.0
          %3430 = vmatpush2.msra.mxu0 0.0
          %3431 = vmatprep.subr.mxu0 0.0
          %3432 = vmatpush2.msra.mxu0 0.0
          %3433 = vmatprep.subr.mxu0 0.0
          %3434 = vmatpush2.msra.mxu0 0.0
          %3435 = vmatprep.subr.mxu0 0.0
          %3436 = vmatpush2.msra.mxu0 0.0
          %3437 = vmatprep.subr.mxu0 0.0
          %3438 = vmatpush2.msra.mxu0 0.0
          %3439 = vmatprep.subr.mxu0 0.0
          %3440 = vmatpush2.msra.mxu0 0.0
          %3441 = vmatprep.subr.mxu0 0.0
          %3442 = vmatpush2.msra.mxu0 0.0
          %3443 = vmatprep.subr.mxu0 0.0
          %3444 = vmatpush2.msra.mxu0 0.0
          %3445 = vmatprep.subr.mxu0 0.0
          %3446 = vmatpush2.msra.mxu0 0.0
          %3447 = vmatprep.mubr.f32.mxu0 0.0
          %3448 = vmatmul.mubr.f32.gmra.mxu0 %v3333
          %v3449 = vpop.f32.mrf.mxu0
          %v3450 = vadd.f32 0.0, %v3449
          %v3451 = vpop.f32.mrf.mxu0
          %3452 = vmatprep.mubr.f32.mxu0 0.0
          %3453 = vmatmul.mubr.f32.gmra.mxu0 %v3336
          %v3454 = vpop.f32.mrf.mxu0
          %v3455 = vadd.f32 0.0, %v3454
          %v3456 = vpop.f32.mrf.mxu0
          %3457 = vmatprep.mubr.f32.mxu0 0.0
          %3458 = vmatmul.mubr.f32.gmra.mxu0 %v3339
          %v3459 = vpop.f32.mrf.mxu0
          %v3460 = vadd.f32 0.0, %v3459
          %v3461 = vpop.f32.mrf.mxu0
          %3462 = vmatprep.mubr.f32.mxu0 0.0
          %3463 = vmatmul.mubr.f32.gmra.mxu0 %v3342
          %v3464 = vpop.f32.mrf.mxu0
          %v3465 = vadd.f32 0.0, %v3464
          %v3466 = vpop.f32.mrf.mxu0
          %3467 = vmatprep.mubr.f32.mxu0 0.0
          %3468 = vmatmul.mubr.f32.gmra.mxu0 %v3345
          %v3469 = vpop.f32.mrf.mxu0
          %v3470 = vadd.f32 0.0, %v3469
          %v3471 = vpop.f32.mrf.mxu0
          %3472 = vmatprep.mubr.f32.mxu0 0.0
          %3473 = vmatmul.mubr.f32.gmra.mxu0 %v3348
          %v3474 = vpop.f32.mrf.mxu0
          %v3475 = vadd.f32 0.0, %v3474
          %v3476 = vpop.f32.mrf.mxu0
          %3477 = vmatprep.mubr.f32.mxu0 0.0
          %3478 = vmatmul.mubr.f32.gmra.mxu0 %v3351
          %v3479 = vpop.f32.mrf.mxu0
          %v3480 = vadd.f32 0.0, %v3479
          %v3481 = vpop.f32.mrf.mxu0
          %3482 = vmatprep.mubr.f32.mxu0 0.0
          %3483 = vmatmul.mubr.f32.gmra.mxu0 %v3354
          %v3484 = vpop.f32.mrf.mxu0
          %v3485 = vadd.f32 0.0, %v3484
          %v3486 = vpop.f32.mrf.mxu0
          %3487 = vmatprep.mubr.f32.mxu0 0.0
          %3488 = vmatmul.mubr.f32.gmra.mxu0 %v3357
          %v3489 = vpop.f32.mrf.mxu0
          %v3490 = vadd.f32 0.0, %v3489
          %v3491 = vpop.f32.mrf.mxu0
          %3492 = vmatprep.mubr.f32.mxu0 0.0
          %3493 = vmatmul.mubr.f32.gmra.mxu0 %v3360
          %v3494 = vpop.f32.mrf.mxu0
          %v3495 = vadd.f32 0.0, %v3494
          %v3496 = vpop.f32.mrf.mxu0
          %3497 = vmatprep.mubr.f32.mxu0 0.0
          %3498 = vmatmul.mubr.f32.gmra.mxu0 %v3363
          %v3499 = vpop.f32.mrf.mxu0
          %v3500 = vadd.f32 0.0, %v3499
          %v3501 = vpop.f32.mrf.mxu0
          %3502 = vmatprep.mubr.f32.mxu0 0.0
          %3503 = vmatmul.mubr.f32.gmra.mxu0 %v3366
          %v3504 = vpop.f32.mrf.mxu0
          %v3505 = vadd.f32 0.0, %v3504
          %v3506 = vpop.f32.mrf.mxu0
          %3507 = vmatprep.mubr.f32.mxu0 0.0
          %3508 = vmatmul.mubr.f32.gmra.mxu0 %v3369
          %v3509 = vpop.f32.mrf.mxu0
          %v3510 = vadd.f32 0.0, %v3509
          %v3511 = vpop.f32.mrf.mxu0
          %3512 = vmatprep.mubr.f32.mxu0 0.0
          %3513 = vmatmul.mubr.f32.gmra.mxu0 %v3372
          %v3514 = vpop.f32.mrf.mxu0
          %v3515 = vadd.f32 0.0, %v3514
          %v3516 = vpop.f32.mrf.mxu0
          %3517 = vmatprep.mubr.f32.mxu0 0.0
          %3518 = vmatmul.mubr.f32.gmra.mxu0 %v3375
          %v3519 = vpop.f32.mrf.mxu0
          %v3520 = vadd.f32 0.0, %v3519
          %v3521 = vpop.f32.mrf.mxu0
          %3522 = vmatprep.mubr.f32.mxu0 0.0
          %3523 = vmatmul.mubr.f32.gmra.mxu0 %v3378
          %v3524 = vpop.f32.mrf.mxu0
          %v3525 = vadd.f32 0.0, %v3524
          %v3526 = vpop.f32.mrf.mxu0
          %3527 = vdwg.mxu0
          %v3528 = vadd.f32 %v3316, %v3450
          %v3529 = vadd.f32 %v3317, %v3455
          %v3530 = vadd.f32 %v3318, %v3460
          %v3531 = vadd.f32 %v3319, %v3465
          %v3532 = vadd.f32 %v3320, %v3470
          %v3533 = vadd.f32 %v3321, %v3475
          %v3534 = vadd.f32 %v3322, %v3480
          %v3535 = vadd.f32 %v3323, %v3485
          %v3536 = vadd.f32 %v3324, %v3490
          %v3537 = vadd.f32 %v3325, %v3495
          %v3538 = vadd.f32 %v3326, %v3500
          %v3539 = vadd.f32 %v3327, %v3505
          %v3540 = vadd.f32 %v3328, %v3510
          %v3541 = vadd.f32 %v3329, %v3515
          %v3542 = vadd.f32 %v3330, %v3520
          %v3543 = vadd.f32 %v3331, %v3525
          %3544 = vst.msk [vmem:[#allocation4] sm:$0xff] %vm653, %v3528
          %3545 = vst.msk [vmem:[#allocation4 + $0x8] sm:$0xff] %vm653, %v3529
          %3546 = vst.msk [vmem:[#allocation4 + $0x10] sm:$0xff] %vm653, %v3530
          %3547 = vst.msk [vmem:[#allocation4 + $0x18] sm:$0xff] %vm653, %v3531
          %3548 = vst.msk [vmem:[#allocation4 + $0x20] sm:$0xff] %vm653, %v3532
          %3549 = vst.msk [vmem:[#allocation4 + $0x28] sm:$0xff] %vm653, %v3533
          %3550 = vst.msk [vmem:[#allocation4 + $0x30] sm:$0xff] %vm653, %v3534
          %3551 = vst.msk [vmem:[#allocation4 + $0x38] sm:$0xff] %vm653, %v3535
          %3552 = vst.msk [vmem:[#allocation4 + $0x40] sm:$0xff] %vm653, %v3536
          %3553 = vst.msk [vmem:[#allocation4 + $0x48] sm:$0xff] %vm653, %v3537
          %3554 = vst.msk [vmem:[#allocation4 + $0x50] sm:$0xff] %vm653, %v3538
          %3555 = vst.msk [vmem:[#allocation4 + $0x58] sm:$0xff] %vm653, %v3539
          %3556 = vst.msk [vmem:[#allocation4 + $0x60] sm:$0xff] %vm653, %v3540
          %3557 = vst.msk [vmem:[#allocation4 + $0x68] sm:$0xff] %vm653, %v3541
          %3558 = vst.msk [vmem:[#allocation4 + $0x70] sm:$0xff] %vm653, %v3542
          %3559 = vst.msk [vmem:[#allocation4 + $0x78] sm:$0xff] %vm653, %v3543
          %v3560 = vld [vmem:[%s3039 + $0x2] sm:$0xff]
          %v3561 = vld [vmem:[%s3039 + $0x12] sm:$0xff]
          %v3562 = vld [vmem:[%s3039 + $0x22] sm:$0xff]
          %v3563 = vld [vmem:[%s3039 + $0x32] sm:$0xff]
          %v3564 = vld [vmem:[%s3039 + $0x42] sm:$0xff]
          %v3565 = vld [vmem:[%s3039 + $0x52] sm:$0xff]
          %v3566 = vld [vmem:[%s3039 + $0x62] sm:$0xff]
          %v3567 = vld [vmem:[%s3039 + $0x72] sm:$0xff]
          %v3568 = vld [vmem:[%s3039 + $0xa2] sm:$0xff]
          %v3569 = vld [vmem:[%s3039 + $0xb2] sm:$0xff]
          %v3570 = vld [vmem:[%s3039 + $0xc2] sm:$0xff]
          %v3571 = vld [vmem:[%s3039 + $0xd2] sm:$0xff]
          %v3572 = vld [vmem:[%s3039 + $0xe2] sm:$0xff]
          %v3573 = vld [vmem:[%s3039 + $0xf2] sm:$0xff]
          %v3574 = vld [vmem:[%s3039 + $0x102] sm:$0xff]
          %v3575 = vld [vmem:[%s3039 + $0x112] sm:$0xff]
          %v3576 = vld [vmem:[#allocation4] sm:$0xff]
          %v3577 = vld [vmem:[#allocation4 + $0x8] sm:$0xff]
          %v3578 = vld [vmem:[#allocation4 + $0x10] sm:$0xff]
          %v3579 = vld [vmem:[#allocation4 + $0x18] sm:$0xff]
          %v3580 = vld [vmem:[#allocation4 + $0x20] sm:$0xff]
          %v3581 = vld [vmem:[#allocation4 + $0x28] sm:$0xff]
          %v3582 = vld [vmem:[#allocation4 + $0x30] sm:$0xff]
          %v3583 = vld [vmem:[#allocation4 + $0x38] sm:$0xff]
          %v3584 = vld [vmem:[#allocation4 + $0x40] sm:$0xff]
          %v3585 = vld [vmem:[#allocation4 + $0x48] sm:$0xff]
          %v3586 = vld [vmem:[#allocation4 + $0x50] sm:$0xff]
          %v3587 = vld [vmem:[#allocation4 + $0x58] sm:$0xff]
          %v3588 = vld [vmem:[#allocation4 + $0x60] sm:$0xff]
          %v3589 = vld [vmem:[#allocation4 + $0x68] sm:$0xff]
          %v3590 = vld [vmem:[#allocation4 + $0x70] sm:$0xff]
          %v3591 = vld [vmem:[#allocation4 + $0x78] sm:$0xff]
          %v3593 = vsel %vm571, %v3560, 0
          %v3596 = vsel %vm571, %v3561, 0
          %v3599 = vsel %vm571, %v3562, 0
          %v3602 = vsel %vm571, %v3563, 0
          %v3605 = vsel %vm571, %v3564, 0
          %v3608 = vsel %vm571, %v3565, 0
          %v3611 = vsel %vm571, %v3566, 0
          %v3614 = vsel %vm571, %v3567, 0
          %v3617 = vsel %vm571, %v3568, 0
          %v3620 = vsel %vm571, %v3569, 0
          %v3623 = vsel %vm571, %v3570, 0
          %v3626 = vsel %vm571, %v3571, 0
          %v3629 = vsel %vm571, %v3572, 0
          %v3632 = vsel %vm571, %v3573, 0
          %v3635 = vsel %vm571, %v3574, 0
          %v3638 = vsel %vm571, %v3575, 0
          %v3641 = vsel %vm1555, %v1472, 0
          %3643 = vmatprep.subr.mxu0 0.0
          %3644 = vmatpush1.msra.mxu0 0.0
          %3645 = vmatprep.subr.mxu0 0.0
          %3646 = vmatpush1.msra.mxu0 0.0
          %3647 = vmatprep.subr.mxu0 0.0
          %3648 = vmatpush1.msra.mxu0 0.0
          %3649 = vmatprep.subr.mxu0 0.0
          %3650 = vmatpush1.msra.mxu0 0.0
          %3651 = vmatprep.subr.mxu0 0.0
          %3652 = vmatpush1.msra.mxu0 0.0
          %3653 = vmatprep.subr.mxu0 0.0
          %3654 = vmatpush1.msra.mxu0 0.0
          %3655 = vmatprep.subr.mxu0 0.0
          %3656 = vmatpush1.msra.mxu0 0.0
          %3657 = vmatprep.subr.mxu0 0.0
          %3658 = vmatpush1.msra.mxu0 0.0
          %3659 = vmatprep.subr.mxu0 0.0
          %3660 = vmatpush1.msra.mxu0 0.0
          %3661 = vmatprep.subr.mxu0 0.0
          %3662 = vmatpush1.msra.mxu0 0.0
          %3663 = vmatprep.subr.mxu0 0.0
          %3664 = vmatpush1.msra.mxu0 0.0
          %3665 = vmatprep.subr.mxu0 0.0
          %3666 = vmatpush1.msra.mxu0 0.0
          %3667 = vmatprep.subr.mxu0 0.0
          %3668 = vmatpush1.msra.mxu0 0.0
          %3669 = vmatprep.subr.mxu0 0.0
          %3670 = vmatpush1.msra.mxu0 0.0
          %3671 = vmatprep.subr.mxu0 0.0
          %3672 = vmatpush1.msra.mxu0 %v3641
          %3673 = vmatprep.subr.mxu0 0.0
          %3674 = vmatpush1.msra.mxu0 %v1471
          %3675 = vmatprep.subr.mxu0 0.0
          %3676 = vmatpush2.msra.mxu0 0.0
          %3677 = vmatprep.subr.mxu0 0.0
          %3678 = vmatpush2.msra.mxu0 0.0
          %3679 = vmatprep.subr.mxu0 0.0
          %3680 = vmatpush2.msra.mxu0 0.0
          %3681 = vmatprep.subr.mxu0 0.0
          %3682 = vmatpush2.msra.mxu0 0.0
          %3683 = vmatprep.subr.mxu0 0.0
          %3684 = vmatpush2.msra.mxu0 0.0
          %3685 = vmatprep.subr.mxu0 0.0
          %3686 = vmatpush2.msra.mxu0 0.0
          %3687 = vmatprep.subr.mxu0 0.0
          %3688 = vmatpush2.msra.mxu0 0.0
          %3689 = vmatprep.subr.mxu0 0.0
          %3690 = vmatpush2.msra.mxu0 0.0
          %3691 = vmatprep.subr.mxu0 0.0
          %3692 = vmatpush2.msra.mxu0 0.0
          %3693 = vmatprep.subr.mxu0 0.0
          %3694 = vmatpush2.msra.mxu0 0.0
          %3695 = vmatprep.subr.mxu0 0.0
          %3696 = vmatpush2.msra.mxu0 0.0
          %3697 = vmatprep.subr.mxu0 0.0
          %3698 = vmatpush2.msra.mxu0 0.0
          %3699 = vmatprep.subr.mxu0 0.0
          %3700 = vmatpush2.msra.mxu0 0.0
          %3701 = vmatprep.subr.mxu0 0.0
          %3702 = vmatpush2.msra.mxu0 0.0
          %3703 = vmatprep.subr.mxu0 0.0
          %3704 = vmatpush2.msra.mxu0 0.0
          %3705 = vmatprep.subr.mxu0 0.0
          %3706 = vmatpush2.msra.mxu0 0.0
          %3707 = vmatprep.mubr.f32.mxu0 0.0
          %3708 = vmatmul.mubr.f32.gmra.mxu0 %v3593
          %v3709 = vpop.f32.mrf.mxu0
          %v3710 = vadd.f32 0.0, %v3709
          %v3711 = vpop.f32.mrf.mxu0
          %3712 = vmatprep.mubr.f32.mxu0 0.0
          %3713 = vmatmul.mubr.f32.gmra.mxu0 %v3596
          %v3714 = vpop.f32.mrf.mxu0
          %v3715 = vadd.f32 0.0, %v3714
          %v3716 = vpop.f32.mrf.mxu0
          %3717 = vmatprep.mubr.f32.mxu0 0.0
          %3718 = vmatmul.mubr.f32.gmra.mxu0 %v3599
          %v3719 = vpop.f32.mrf.mxu0
          %v3720 = vadd.f32 0.0, %v3719
          %v3721 = vpop.f32.mrf.mxu0
          %3722 = vmatprep.mubr.f32.mxu0 0.0
          %3723 = vmatmul.mubr.f32.gmra.mxu0 %v3602
          %v3724 = vpop.f32.mrf.mxu0
          %v3725 = vadd.f32 0.0, %v3724
          %v3726 = vpop.f32.mrf.mxu0
          %3727 = vmatprep.mubr.f32.mxu0 0.0
          %3728 = vmatmul.mubr.f32.gmra.mxu0 %v3605
          %v3729 = vpop.f32.mrf.mxu0
          %v3730 = vadd.f32 0.0, %v3729
          %v3731 = vpop.f32.mrf.mxu0
          %3732 = vmatprep.mubr.f32.mxu0 0.0
          %3733 = vmatmul.mubr.f32.gmra.mxu0 %v3608
          %v3734 = vpop.f32.mrf.mxu0
          %v3735 = vadd.f32 0.0, %v3734
          %v3736 = vpop.f32.mrf.mxu0
          %3737 = vmatprep.mubr.f32.mxu0 0.0
          %3738 = vmatmul.mubr.f32.gmra.mxu0 %v3611
          %v3739 = vpop.f32.mrf.mxu0
          %v3740 = vadd.f32 0.0, %v3739
          %v3741 = vpop.f32.mrf.mxu0
          %3742 = vmatprep.mubr.f32.mxu0 0.0
          %3743 = vmatmul.mubr.f32.gmra.mxu0 %v3614
          %v3744 = vpop.f32.mrf.mxu0
          %v3745 = vadd.f32 0.0, %v3744
          %v3746 = vpop.f32.mrf.mxu0
          %3747 = vmatprep.mubr.f32.mxu0 0.0
          %3748 = vmatmul.mubr.f32.gmra.mxu0 %v3617
          %v3749 = vpop.f32.mrf.mxu0
          %v3750 = vadd.f32 0.0, %v3749
          %v3751 = vpop.f32.mrf.mxu0
          %3752 = vmatprep.mubr.f32.mxu0 0.0
          %3753 = vmatmul.mubr.f32.gmra.mxu0 %v3620
          %v3754 = vpop.f32.mrf.mxu0
          %v3755 = vadd.f32 0.0, %v3754
          %v3756 = vpop.f32.mrf.mxu0
          %3757 = vmatprep.mubr.f32.mxu0 0.0
          %3758 = vmatmul.mubr.f32.gmra.mxu0 %v3623
          %v3759 = vpop.f32.mrf.mxu0
          %v3760 = vadd.f32 0.0, %v3759
          %v3761 = vpop.f32.mrf.mxu0
          %3762 = vmatprep.mubr.f32.mxu0 0.0
          %3763 = vmatmul.mubr.f32.gmra.mxu0 %v3626
          %v3764 = vpop.f32.mrf.mxu0
          %v3765 = vadd.f32 0.0, %v3764
          %v3766 = vpop.f32.mrf.mxu0
          %3767 = vmatprep.mubr.f32.mxu0 0.0
          %3768 = vmatmul.mubr.f32.gmra.mxu0 %v3629
          %v3769 = vpop.f32.mrf.mxu0
          %v3770 = vadd.f32 0.0, %v3769
          %v3771 = vpop.f32.mrf.mxu0
          %3772 = vmatprep.mubr.f32.mxu0 0.0
          %3773 = vmatmul.mubr.f32.gmra.mxu0 %v3632
          %v3774 = vpop.f32.mrf.mxu0
          %v3775 = vadd.f32 0.0, %v3774
          %v3776 = vpop.f32.mrf.mxu0
          %3777 = vmatprep.mubr.f32.mxu0 0.0
          %3778 = vmatmul.mubr.f32.gmra.mxu0 %v3635
          %v3779 = vpop.f32.mrf.mxu0
          %v3780 = vadd.f32 0.0, %v3779
          %v3781 = vpop.f32.mrf.mxu0
          %3782 = vmatprep.mubr.f32.mxu0 0.0
          %3783 = vmatmul.mubr.f32.gmra.mxu0 %v3638
          %v3784 = vpop.f32.mrf.mxu0
          %v3785 = vadd.f32 0.0, %v3784
          %v3786 = vpop.f32.mrf.mxu0
          %3787 = vdwg.mxu0
          %v3788 = vadd.f32 %v3576, %v3710
          %v3789 = vadd.f32 %v3577, %v3715
          %v3790 = vadd.f32 %v3578, %v3720
          %v3791 = vadd.f32 %v3579, %v3725
          %v3792 = vadd.f32 %v3580, %v3730
          %v3793 = vadd.f32 %v3581, %v3735
          %v3794 = vadd.f32 %v3582, %v3740
          %v3795 = vadd.f32 %v3583, %v3745
          %v3796 = vadd.f32 %v3584, %v3750
          %v3797 = vadd.f32 %v3585, %v3755
          %v3798 = vadd.f32 %v3586, %v3760
          %v3799 = vadd.f32 %v3587, %v3765
          %v3800 = vadd.f32 %v3588, %v3770
          %v3801 = vadd.f32 %v3589, %v3775
          %v3802 = vadd.f32 %v3590, %v3780
          %v3803 = vadd.f32 %v3591, %v3785
          %3804 = vst.msk [vmem:[#allocation4] sm:$0xff] %vm653, %v3788
          %3805 = vst.msk [vmem:[#allocation4 + $0x8] sm:$0xff] %vm653, %v3789
          %3806 = vst.msk [vmem:[#allocation4 + $0x10] sm:$0xff] %vm653, %v3790
          %3807 = vst.msk [vmem:[#allocation4 + $0x18] sm:$0xff] %vm653, %v3791
          %3808 = vst.msk [vmem:[#allocation4 + $0x20] sm:$0xff] %vm653, %v3792
          %3809 = vst.msk [vmem:[#allocation4 + $0x28] sm:$0xff] %vm653, %v3793
          %3810 = vst.msk [vmem:[#allocation4 + $0x30] sm:$0xff] %vm653, %v3794
          %3811 = vst.msk [vmem:[#allocation4 + $0x38] sm:$0xff] %vm653, %v3795
          %3812 = vst.msk [vmem:[#allocation4 + $0x40] sm:$0xff] %vm653, %v3796
          %3813 = vst.msk [vmem:[#allocation4 + $0x48] sm:$0xff] %vm653, %v3797
          %3814 = vst.msk [vmem:[#allocation4 + $0x50] sm:$0xff] %vm653, %v3798
          %3815 = vst.msk [vmem:[#allocation4 + $0x58] sm:$0xff] %vm653, %v3799
          %3816 = vst.msk [vmem:[#allocation4 + $0x60] sm:$0xff] %vm653, %v3800
          %3817 = vst.msk [vmem:[#allocation4 + $0x68] sm:$0xff] %vm653, %v3801
          %3818 = vst.msk [vmem:[#allocation4 + $0x70] sm:$0xff] %vm653, %v3802
          %3819 = vst.msk [vmem:[#allocation4 + $0x78] sm:$0xff] %vm653, %v3803
        $region69: #{inception_forward.1} parent=55 // loop_footer
          %s1452 = sadd.s32 1, %s1448
        $region70: #{inception_forward.1} parent=55 // loop_footer_branch
          %1447 = sbr.rel target = $region66
        $region71: #{inception_forward.1} parent=55 // loop_exit
          _
        %v3820 = vld [vmem:[#allocation2] sm:$0xff]
        %v3821 = vld [vmem:[#allocation2 + $0x8] sm:$0x3]
        %v3822 = vld [vmem:[#allocation2 + $0x10] sm:$0xff]
        %v3823 = vld [vmem:[#allocation2 + $0x18] sm:$0x3]
        %v3824 = vld [vmem:[#allocation2 + $0x20] sm:$0xff]
        %v3825 = vld [vmem:[#allocation2 + $0x28] sm:$0x3]
        %v3826 = vld [vmem:[#allocation2 + $0x30] sm:$0xff]
        %v3827 = vld [vmem:[#allocation2 + $0x38] sm:$0x3]
        %v3828 = vld [vmem:[#allocation2 + $0x40] sm:$0xff]
        %v3829 = vld [vmem:[#allocation2 + $0x48] sm:$0x3]
        %v3830 = vld [vmem:[#allocation2 + $0x50] sm:$0xff]
        %v3831 = vld [vmem:[#allocation2 + $0x58] sm:$0x3]
        %v3832 = vld [vmem:[#allocation2 + $0x60] sm:$0xff]
        %v3833 = vld [vmem:[#allocation2 + $0x68] sm:$0x3]
        %v3834 = vld [vmem:[#allocation2 + $0x70] sm:$0xff]
        %v3835 = vld [vmem:[#allocation2 + $0x78] sm:$0x3]
        %v3836 = vld [vmem:[#allocation2 + $0x80] sm:$0xff]
        %v3837 = vld [vmem:[#allocation2 + $0x88] sm:$0x3]
        %v3838 = vld [vmem:[#allocation2 + $0x90] sm:$0xff]
        %v3839 = vld [vmem:[#allocation2 + $0x98] sm:$0x3]
        %v3840 = vld [vmem:[#allocation2 + $0xa0] sm:$0xff]
        %v3841 = vld [vmem:[#allocation2 + $0xa8] sm:$0x3]
        %v3842 = vld [vmem:[#allocation2 + $0xb0] sm:$0xff]
        %v3843 = vld [vmem:[#allocation2 + $0xb8] sm:$0x3]
        %v3844 = vld [vmem:[#allocation2 + $0xc0] sm:$0xff]
        %v3845 = vld [vmem:[#allocation2 + $0xc8] sm:$0x3]
        %v3846 = vld [vmem:[#allocation2 + $0xd0] sm:$0xff]
        %v3847 = vld [vmem:[#allocation2 + $0xd8] sm:$0x3]
        %v3848 = vld [vmem:[#allocation2 + $0xe0] sm:$0xff]
        %v3849 = vld [vmem:[#allocation2 + $0xe8] sm:$0x3]
        %v3850 = vld [vmem:[#allocation2 + $0xf0] sm:$0xff]
        %v3851 = vld [vmem:[#allocation2 + $0xf8] sm:$0x3]
        %v3852 = vld [vmem:[#allocation2 + $0x100] sm:$0xff]
        %v3853 = vld [vmem:[#allocation2 + $0x108] sm:$0x3]
        %v3854 = vld [vmem:[#allocation2 + $0x110] sm:$0xff]
        %v3855 = vld [vmem:[#allocation2 + $0x118] sm:$0x3]
        %v3856 = vld [vmem:[#allocation2 + $0x120] sm:$0xff]
        %v3857 = vld [vmem:[#allocation2 + $0x128] sm:$0x3]
        %v3858 = vld [vmem:[#allocation2 + $0x130] sm:$0xff]
        %v3859 = vld [vmem:[#allocation2 + $0x138] sm:$0x3]
        %v3860 = vld [vmem:[#allocation2 + $0x140] sm:$0xff]
        %v3861 = vld [vmem:[#allocation2 + $0x148] sm:$0x3]
        %v3862 = vld [vmem:[#allocation2 + $0x150] sm:$0xff]
        %v3863 = vld [vmem:[#allocation2 + $0x158] sm:$0x3]
        %v3864 = vld [vmem:[#allocation2 + $0x160] sm:$0xff]
        %v3865 = vld [vmem:[#allocation2 + $0x168] sm:$0x3]
        %v3866 = vld [vmem:[#allocation2 + $0x170] sm:$0xff]
        %v3867 = vld [vmem:[#allocation2 + $0x178] sm:$0x3]
        %v3868 = vld [vmem:[#allocation2 + $0x180] sm:$0xff]
        %v3869 = vld [vmem:[#allocation2 + $0x188] sm:$0x3]
        %v3870 = vld [vmem:[#allocation2 + $0x190] sm:$0xff]
        %v3871 = vld [vmem:[#allocation2 + $0x198] sm:$0x3]
        %v3872 = vld [vmem:[#allocation2 + $0x1a0] sm:$0xff]
        %v3873 = vld [vmem:[#allocation2 + $0x1a8] sm:$0x3]
        %v3874 = vld [vmem:[#allocation2 + $0x1b0] sm:$0xff]
        %v3875 = vld [vmem:[#allocation2 + $0x1b8] sm:$0x3]
        %v3876 = vld [vmem:[#allocation2 + $0x1c0] sm:$0xff]
        %v3877 = vld [vmem:[#allocation2 + $0x1c8] sm:$0x3]
        %v3878 = vld [vmem:[#allocation2 + $0x1d0] sm:$0xff]
        %v3879 = vld [vmem:[#allocation2 + $0x1d8] sm:$0x3]
        %v3880 = vld [vmem:[#allocation2 + $0x1e0] sm:$0xff]
        %v3881 = vld [vmem:[#allocation2 + $0x1e8] sm:$0x3]
        %v3882 = vld [vmem:[#allocation2 + $0x1f0] sm:$0xff]
        %v3883 = vld [vmem:[#allocation2 + $0x1f8] sm:$0x3]
        %v3884 = vld [vmem:[#allocation2 + $0x200] sm:$0xff]
        %v3885 = vld [vmem:[#allocation2 + $0x208] sm:$0x3]
        %v3886 = vld [vmem:[#allocation2 + $0x210] sm:$0xff]
        %v3887 = vld [vmem:[#allocation2 + $0x218] sm:$0x3]
        %v3888 = vld [vmem:[#allocation2 + $0x220] sm:$0xff]
        %v3889 = vld [vmem:[#allocation2 + $0x228] sm:$0x3]
        %v3890 = vld [vmem:[#allocation2 + $0x230] sm:$0xff]
        %v3891 = vld [vmem:[#allocation2 + $0x238] sm:$0x3]
        %v3892 = vld [vmem:[#allocation2 + $0x240] sm:$0xff]
        %v3893 = vld [vmem:[#allocation2 + $0x248] sm:$0x3]
        %v3894 = vld [vmem:[#allocation2 + $0x250] sm:$0xff]
        %v3895 = vld [vmem:[#allocation2 + $0x258] sm:$0x3]
        %v3896 = vld [vmem:[#allocation2 + $0x260] sm:$0xff]
        %v3897 = vld [vmem:[#allocation2 + $0x268] sm:$0x3]
        %v3898 = vld [vmem:[#allocation2 + $0x270] sm:$0xff]
        %v3899 = vld [vmem:[#allocation2 + $0x278] sm:$0x3]
        %vm3980 = vcmask 1046528
        %v3981 = vrot.slane %v3820, 1
        %v3982 = vrot.slane %v3821, 1
        %v3983 = vsel %vm3980, %v3981, %v3982
        %v3984 = vrot.slane %v3822, 1
        %v3985 = vrot.slane %v3823, 1
        %v3986 = vsel %vm3980, %v3984, %v3985
        %v3987 = vrot.slane %v3824, 1
        %v3988 = vrot.slane %v3825, 1
        %v3989 = vsel %vm3980, %v3987, %v3988
        %v3990 = vrot.slane %v3826, 1
        %v3991 = vrot.slane %v3827, 1
        %v3992 = vsel %vm3980, %v3990, %v3991
        %v3993 = vrot.slane %v3828, 1
        %v3994 = vrot.slane %v3829, 1
        %v3995 = vsel %vm3980, %v3993, %v3994
        %v3996 = vrot.slane %v3830, 1
        %v3997 = vrot.slane %v3831, 1
        %v3998 = vsel %vm3980, %v3996, %v3997
        %v3999 = vrot.slane %v3832, 1
        %v4000 = vrot.slane %v3833, 1
        %v4001 = vsel %vm3980, %v3999, %v4000
        %v4002 = vrot.slane %v3834, 1
        %v4003 = vrot.slane %v3835, 1
        %v4004 = vsel %vm3980, %v4002, %v4003
        %v4005 = vrot.slane %v3836, 1
        %v4006 = vrot.slane %v3837, 1
        %v4007 = vsel %vm3980, %v4005, %v4006
        %v4008 = vrot.slane %v3838, 1
        %v4009 = vrot.slane %v3839, 1
        %v4010 = vsel %vm3980, %v4008, %v4009
        %v4011 = vrot.slane %v3840, 1
        %v4012 = vrot.slane %v3841, 1
        %v4013 = vsel %vm3980, %v4011, %v4012
        %v4014 = vrot.slane %v3842, 1
        %v4015 = vrot.slane %v3843, 1
        %v4016 = vsel %vm3980, %v4014, %v4015
        %v4017 = vrot.slane %v3844, 1
        %v4018 = vrot.slane %v3845, 1
        %v4019 = vsel %vm3980, %v4017, %v4018
        %v4020 = vrot.slane %v3846, 1
        %v4021 = vrot.slane %v3847, 1
        %v4022 = vsel %vm3980, %v4020, %v4021
        %v4023 = vrot.slane %v3848, 1
        %v4024 = vrot.slane %v3849, 1
        %v4025 = vsel %vm3980, %v4023, %v4024
        %v4026 = vrot.slane %v3850, 1
        %v4027 = vrot.slane %v3851, 1
        %v4028 = vsel %vm3980, %v4026, %v4027
        %v4029 = vrot.slane %v3852, 1
        %v4030 = vrot.slane %v3853, 1
        %v4031 = vsel %vm3980, %v4029, %v4030
        %v4032 = vrot.slane %v3854, 1
        %v4033 = vrot.slane %v3855, 1
        %v4034 = vsel %vm3980, %v4032, %v4033
        %v4035 = vrot.slane %v3856, 1
        %v4036 = vrot.slane %v3857, 1
        %v4037 = vsel %vm3980, %v4035, %v4036
        %v4038 = vrot.slane %v3858, 1
        %v4039 = vrot.slane %v3859, 1
        %v4040 = vsel %vm3980, %v4038, %v4039
        %v4041 = vrot.slane %v3860, 1
        %v4042 = vrot.slane %v3861, 1
        %v4043 = vsel %vm3980, %v4041, %v4042
        %v4044 = vrot.slane %v3862, 1
        %v4045 = vrot.slane %v3863, 1
        %v4046 = vsel %vm3980, %v4044, %v4045
        %v4047 = vrot.slane %v3864, 1
        %v4048 = vrot.slane %v3865, 1
        %v4049 = vsel %vm3980, %v4047, %v4048
        %v4050 = vrot.slane %v3866, 1
        %v4051 = vrot.slane %v3867, 1
        %v4052 = vsel %vm3980, %v4050, %v4051
        %v4053 = vrot.slane %v3868, 1
        %v4054 = vrot.slane %v3869, 1
        %v4055 = vsel %vm3980, %v4053, %v4054
        %v4056 = vrot.slane %v3870, 1
        %v4057 = vrot.slane %v3871, 1
        %v4058 = vsel %vm3980, %v4056, %v4057
        %v4059 = vrot.slane %v3872, 1
        %v4060 = vrot.slane %v3873, 1
        %v4061 = vsel %vm3980, %v4059, %v4060
        %v4062 = vrot.slane %v3874, 1
        %v4063 = vrot.slane %v3875, 1
        %v4064 = vsel %vm3980, %v4062, %v4063
        %v4065 = vrot.slane %v3876, 1
        %v4066 = vrot.slane %v3877, 1
        %v4067 = vsel %vm3980, %v4065, %v4066
        %v4068 = vrot.slane %v3878, 1
        %v4069 = vrot.slane %v3879, 1
        %v4070 = vsel %vm3980, %v4068, %v4069
        %v4071 = vrot.slane %v3880, 1
        %v4072 = vrot.slane %v3881, 1
        %v4073 = vsel %vm3980, %v4071, %v4072
        %v4074 = vrot.slane %v3882, 1
        %v4075 = vrot.slane %v3883, 1
        %v4076 = vsel %vm3980, %v4074, %v4075
        %v4077 = vrot.slane %v3884, 1
        %v4078 = vrot.slane %v3885, 1
        %v4079 = vsel %vm3980, %v4077, %v4078
        %v4080 = vrot.slane %v3886, 1
        %v4081 = vrot.slane %v3887, 1
        %v4082 = vsel %vm3980, %v4080, %v4081
        %v4083 = vrot.slane %v3888, 1
        %v4084 = vrot.slane %v3889, 1
        %v4085 = vsel %vm3980, %v4083, %v4084
        %v4086 = vrot.slane %v3890, 1
        %v4087 = vrot.slane %v3891, 1
        %v4088 = vsel %vm3980, %v4086, %v4087
        %v4089 = vrot.slane %v3892, 1
        %v4090 = vrot.slane %v3893, 1
        %v4091 = vsel %vm3980, %v4089, %v4090
        %v4092 = vrot.slane %v3894, 1
        %v4093 = vrot.slane %v3895, 1
        %v4094 = vsel %vm3980, %v4092, %v4093
        %v4095 = vrot.slane %v3896, 1
        %v4096 = vrot.slane %v3897, 1
        %v4097 = vsel %vm3980, %v4095, %v4096
        %v4098 = vrot.slane %v3898, 1
        %v4099 = vrot.slane %v3899, 1
        %v4100 = vsel %vm3980, %v4098, %v4099
        %v4141 = vmax.f32 %v3820, %v3983
        %v4142 = vmax.f32 %v3822, %v3986
        %v4143 = vmax.f32 %v3824, %v3989
        %v4144 = vmax.f32 %v3826, %v3992
        %v4145 = vmax.f32 %v3828, %v3995
        %v4146 = vmax.f32 %v3830, %v3998
        %v4147 = vmax.f32 %v3832, %v4001
        %v4148 = vmax.f32 %v3834, %v4004
        %v4149 = vmax.f32 %v3836, %v4007
        %v4150 = vmax.f32 %v3838, %v4010
        %v4151 = vmax.f32 %v3840, %v4013
        %v4152 = vmax.f32 %v3842, %v4016
        %v4153 = vmax.f32 %v3844, %v4019
        %v4154 = vmax.f32 %v3846, %v4022
        %v4155 = vmax.f32 %v3848, %v4025
        %v4156 = vmax.f32 %v3850, %v4028
        %v4157 = vmax.f32 %v3852, %v4031
        %v4158 = vmax.f32 %v3854, %v4034
        %v4159 = vmax.f32 %v3856, %v4037
        %v4160 = vmax.f32 %v3858, %v4040
        %v4161 = vmax.f32 %v3860, %v4043
        %v4162 = vmax.f32 %v3862, %v4046
        %v4163 = vmax.f32 %v3864, %v4049
        %v4164 = vmax.f32 %v3866, %v4052
        %v4165 = vmax.f32 %v3868, %v4055
        %v4166 = vmax.f32 %v3870, %v4058
        %v4167 = vmax.f32 %v3872, %v4061
        %v4168 = vmax.f32 %v3874, %v4064
        %v4169 = vmax.f32 %v3876, %v4067
        %v4170 = vmax.f32 %v3878, %v4070
        %v4171 = vmax.f32 %v3880, %v4073
        %v4172 = vmax.f32 %v3882, %v4076
        %v4173 = vmax.f32 %v3884, %v4079
        %v4174 = vmax.f32 %v3886, %v4082
        %v4175 = vmax.f32 %v3888, %v4085
        %v4176 = vmax.f32 %v3890, %v4088
        %v4177 = vmax.f32 %v3892, %v4091
        %v4178 = vmax.f32 %v3894, %v4094
        %v4179 = vmax.f32 %v3896, %v4097
        %v4180 = vmax.f32 %v3898, %v4100
        %vm4181 = vcmask 1045504
        %v4182 = vrot.slane %v3820, 2
        %v4183 = vrot.slane %v3821, 2
        %v4184 = vsel %vm4181, %v4182, %v4183
        %v4185 = vrot.slane %v3822, 2
        %v4186 = vrot.slane %v3823, 2
        %v4187 = vsel %vm4181, %v4185, %v4186
        %v4188 = vrot.slane %v3824, 2
        %v4189 = vrot.slane %v3825, 2
        %v4190 = vsel %vm4181, %v4188, %v4189
        %v4191 = vrot.slane %v3826, 2
        %v4192 = vrot.slane %v3827, 2
        %v4193 = vsel %vm4181, %v4191, %v4192
        %v4194 = vrot.slane %v3828, 2
        %v4195 = vrot.slane %v3829, 2
        %v4196 = vsel %vm4181, %v4194, %v4195
        %v4197 = vrot.slane %v3830, 2
        %v4198 = vrot.slane %v3831, 2
        %v4199 = vsel %vm4181, %v4197, %v4198
        %v4200 = vrot.slane %v3832, 2
        %v4201 = vrot.slane %v3833, 2
        %v4202 = vsel %vm4181, %v4200, %v4201
        %v4203 = vrot.slane %v3834, 2
        %v4204 = vrot.slane %v3835, 2
        %v4205 = vsel %vm4181, %v4203, %v4204
        %v4206 = vrot.slane %v3836, 2
        %v4207 = vrot.slane %v3837, 2
        %v4208 = vsel %vm4181, %v4206, %v4207
        %v4209 = vrot.slane %v3838, 2
        %v4210 = vrot.slane %v3839, 2
        %v4211 = vsel %vm4181, %v4209, %v4210
        %v4212 = vrot.slane %v3840, 2
        %v4213 = vrot.slane %v3841, 2
        %v4214 = vsel %vm4181, %v4212, %v4213
        %v4215 = vrot.slane %v3842, 2
        %v4216 = vrot.slane %v3843, 2
        %v4217 = vsel %vm4181, %v4215, %v4216
        %v4218 = vrot.slane %v3844, 2
        %v4219 = vrot.slane %v3845, 2
        %v4220 = vsel %vm4181, %v4218, %v4219
        %v4221 = vrot.slane %v3846, 2
        %v4222 = vrot.slane %v3847, 2
        %v4223 = vsel %vm4181, %v4221, %v4222
        %v4224 = vrot.slane %v3848, 2
        %v4225 = vrot.slane %v3849, 2
        %v4226 = vsel %vm4181, %v4224, %v4225
        %v4227 = vrot.slane %v3850, 2
        %v4228 = vrot.slane %v3851, 2
        %v4229 = vsel %vm4181, %v4227, %v4228
        %v4230 = vrot.slane %v3852, 2
        %v4231 = vrot.slane %v3853, 2
        %v4232 = vsel %vm4181, %v4230, %v4231
        %v4233 = vrot.slane %v3854, 2
        %v4234 = vrot.slane %v3855, 2
        %v4235 = vsel %vm4181, %v4233, %v4234
        %v4236 = vrot.slane %v3856, 2
        %v4237 = vrot.slane %v3857, 2
        %v4238 = vsel %vm4181, %v4236, %v4237
        %v4239 = vrot.slane %v3858, 2
        %v4240 = vrot.slane %v3859, 2
        %v4241 = vsel %vm4181, %v4239, %v4240
        %v4242 = vrot.slane %v3860, 2
        %v4243 = vrot.slane %v3861, 2
        %v4244 = vsel %vm4181, %v4242, %v4243
        %v4245 = vrot.slane %v3862, 2
        %v4246 = vrot.slane %v3863, 2
        %v4247 = vsel %vm4181, %v4245, %v4246
        %v4248 = vrot.slane %v3864, 2
        %v4249 = vrot.slane %v3865, 2
        %v4250 = vsel %vm4181, %v4248, %v4249
        %v4251 = vrot.slane %v3866, 2
        %v4252 = vrot.slane %v3867, 2
        %v4253 = vsel %vm4181, %v4251, %v4252
        %v4254 = vrot.slane %v3868, 2
        %v4255 = vrot.slane %v3869, 2
        %v4256 = vsel %vm4181, %v4254, %v4255
        %v4257 = vrot.slane %v3870, 2
        %v4258 = vrot.slane %v3871, 2
        %v4259 = vsel %vm4181, %v4257, %v4258
        %v4260 = vrot.slane %v3872, 2
        %v4261 = vrot.slane %v3873, 2
        %v4262 = vsel %vm4181, %v4260, %v4261
        %v4263 = vrot.slane %v3874, 2
        %v4264 = vrot.slane %v3875, 2
        %v4265 = vsel %vm4181, %v4263, %v4264
        %v4266 = vrot.slane %v3876, 2
        %v4267 = vrot.slane %v3877, 2
        %v4268 = vsel %vm4181, %v4266, %v4267
        %v4269 = vrot.slane %v3878, 2
        %v4270 = vrot.slane %v3879, 2
        %v4271 = vsel %vm4181, %v4269, %v4270
        %v4272 = vrot.slane %v3880, 2
        %v4273 = vrot.slane %v3881, 2
        %v4274 = vsel %vm4181, %v4272, %v4273
        %v4275 = vrot.slane %v3882, 2
        %v4276 = vrot.slane %v3883, 2
        %v4277 = vsel %vm4181, %v4275, %v4276
        %v4278 = vrot.slane %v3884, 2
        %v4279 = vrot.slane %v3885, 2
        %v4280 = vsel %vm4181, %v4278, %v4279
        %v4281 = vrot.slane %v3886, 2
        %v4282 = vrot.slane %v3887, 2
        %v4283 = vsel %vm4181, %v4281, %v4282
        %v4284 = vrot.slane %v3888, 2
        %v4285 = vrot.slane %v3889, 2
        %v4286 = vsel %vm4181, %v4284, %v4285
        %v4287 = vrot.slane %v3890, 2
        %v4288 = vrot.slane %v3891, 2
        %v4289 = vsel %vm4181, %v4287, %v4288
        %v4290 = vrot.slane %v3892, 2
        %v4291 = vrot.slane %v3893, 2
        %v4292 = vsel %vm4181, %v4290, %v4291
        %v4293 = vrot.slane %v3894, 2
        %v4294 = vrot.slane %v3895, 2
        %v4295 = vsel %vm4181, %v4293, %v4294
        %v4296 = vrot.slane %v3896, 2
        %v4297 = vrot.slane %v3897, 2
        %v4298 = vsel %vm4181, %v4296, %v4297
        %v4299 = vrot.slane %v3898, 2
        %v4300 = vrot.slane %v3899, 2
        %v4301 = vsel %vm4181, %v4299, %v4300
        %v4342 = vmax.f32 %v4141, %v4184
        %v4343 = vmax.f32 %v4142, %v4187
        %v4344 = vmax.f32 %v4143, %v4190
        %v4345 = vmax.f32 %v4144, %v4193
        %v4346 = vmax.f32 %v4145, %v4196
        %v4347 = vmax.f32 %v4146, %v4199
        %v4348 = vmax.f32 %v4147, %v4202
        %v4349 = vmax.f32 %v4148, %v4205
        %v4350 = vmax.f32 %v4149, %v4208
        %v4351 = vmax.f32 %v4150, %v4211
        %v4352 = vmax.f32 %v4151, %v4214
        %v4353 = vmax.f32 %v4152, %v4217
        %v4354 = vmax.f32 %v4153, %v4220
        %v4355 = vmax.f32 %v4154, %v4223
        %v4356 = vmax.f32 %v4155, %v4226
        %v4357 = vmax.f32 %v4156, %v4229
        %v4358 = vmax.f32 %v4157, %v4232
        %v4359 = vmax.f32 %v4158, %v4235
        %v4360 = vmax.f32 %v4159, %v4238
        %v4361 = vmax.f32 %v4160, %v4241
        %v4362 = vmax.f32 %v4161, %v4244
        %v4363 = vmax.f32 %v4162, %v4247
        %v4364 = vmax.f32 %v4163, %v4250
        %v4365 = vmax.f32 %v4164, %v4253
        %v4366 = vmax.f32 %v4165, %v4256
        %v4367 = vmax.f32 %v4166, %v4259
        %v4368 = vmax.f32 %v4167, %v4262
        %v4369 = vmax.f32 %v4168, %v4265
        %v4370 = vmax.f32 %v4169, %v4268
        %v4371 = vmax.f32 %v4170, %v4271
        %v4372 = vmax.f32 %v4171, %v4274
        %v4373 = vmax.f32 %v4172, %v4277
        %v4374 = vmax.f32 %v4173, %v4280
        %v4375 = vmax.f32 %v4174, %v4283
        %v4376 = vmax.f32 %v4175, %v4286
        %v4377 = vmax.f32 %v4176, %v4289
        %v4378 = vmax.f32 %v4177, %v4292
        %v4379 = vmax.f32 %v4178, %v4295
        %v4380 = vmax.f32 %v4179, %v4298
        %v4381 = vmax.f32 %v4180, %v4301
        %v4382 = vmax.f32 %v4342, %v4343
        %v4383 = vmax.f32 %v4343, %v4344
        %v4384 = vmax.f32 %v4344, %v4345
        %v4385 = vmax.f32 %v4345, %v4346
        %v4386 = vmax.f32 %v4346, %v4347
        %v4387 = vmax.f32 %v4347, %v4348
        %v4388 = vmax.f32 %v4348, %v4349
        %v4389 = vmax.f32 %v4349, %v4350
        %v4390 = vmax.f32 %v4352, %v4353
        %v4391 = vmax.f32 %v4353, %v4354
        %v4392 = vmax.f32 %v4354, %v4355
        %v4393 = vmax.f32 %v4355, %v4356
        %v4394 = vmax.f32 %v4356, %v4357
        %v4395 = vmax.f32 %v4357, %v4358
        %v4396 = vmax.f32 %v4358, %v4359
        %v4397 = vmax.f32 %v4359, %v4360
        %v4398 = vmax.f32 %v4362, %v4363
        %v4399 = vmax.f32 %v4363, %v4364
        %v4400 = vmax.f32 %v4364, %v4365
        %v4401 = vmax.f32 %v4365, %v4366
        %v4402 = vmax.f32 %v4366, %v4367
        %v4403 = vmax.f32 %v4367, %v4368
        %v4404 = vmax.f32 %v4368, %v4369
        %v4405 = vmax.f32 %v4369, %v4370
        %v4406 = vmax.f32 %v4372, %v4373
        %v4407 = vmax.f32 %v4373, %v4374
        %v4408 = vmax.f32 %v4374, %v4375
        %v4409 = vmax.f32 %v4375, %v4376
        %v4410 = vmax.f32 %v4376, %v4377
        %v4411 = vmax.f32 %v4377, %v4378
        %v4412 = vmax.f32 %v4378, %v4379
        %v4413 = vmax.f32 %v4379, %v4380
        %v4414 = vmax.f32 %v4382, %v4344
        %v4415 = vmax.f32 %v4383, %v4345
        %v4416 = vmax.f32 %v4384, %v4346
        %v4417 = vmax.f32 %v4385, %v4347
        %v4418 = vmax.f32 %v4386, %v4348
        %v4419 = vmax.f32 %v4387, %v4349
        %v4420 = vmax.f32 %v4388, %v4350
        %v4421 = vmax.f32 %v4389, %v4351
        %v4422 = vmax.f32 %v4390, %v4354
        %v4423 = vmax.f32 %v4391, %v4355
        %v4424 = vmax.f32 %v4392, %v4356
        %v4425 = vmax.f32 %v4393, %v4357
        %v4426 = vmax.f32 %v4394, %v4358
        %v4427 = vmax.f32 %v4395, %v4359
        %v4428 = vmax.f32 %v4396, %v4360
        %v4429 = vmax.f32 %v4397, %v4361
        %v4430 = vmax.f32 %v4398, %v4364
        %v4431 = vmax.f32 %v4399, %v4365
        %v4432 = vmax.f32 %v4400, %v4366
        %v4433 = vmax.f32 %v4401, %v4367
        %v4434 = vmax.f32 %v4402, %v4368
        %v4435 = vmax.f32 %v4403, %v4369
        %v4436 = vmax.f32 %v4404, %v4370
        %v4437 = vmax.f32 %v4405, %v4371
        %v4438 = vmax.f32 %v4406, %v4374
        %v4439 = vmax.f32 %v4407, %v4375
        %v4440 = vmax.f32 %v4408, %v4376
        %v4441 = vmax.f32 %v4409, %v4377
        %v4442 = vmax.f32 %v4410, %v4378
        %v4443 = vmax.f32 %v4411, %v4379
        %v4444 = vmax.f32 %v4412, %v4380
        %v4445 = vmax.f32 %v4413, %v4381
        %v4446 = vmax.f32 %v4414, %v4422
        %v4447 = vmax.f32 %v4415, %v4423
        %v4448 = vmax.f32 %v4416, %v4424
        %v4449 = vmax.f32 %v4417, %v4425
        %v4450 = vmax.f32 %v4418, %v4426
        %v4451 = vmax.f32 %v4419, %v4427
        %v4452 = vmax.f32 %v4420, %v4428
        %v4453 = vmax.f32 %v4421, %v4429
        %v4454 = vmax.f32 %v4422, %v4430
        %v4455 = vmax.f32 %v4423, %v4431
        %v4456 = vmax.f32 %v4424, %v4432
        %v4457 = vmax.f32 %v4425, %v4433
        %v4458 = vmax.f32 %v4426, %v4434
        %v4459 = vmax.f32 %v4427, %v4435
        %v4460 = vmax.f32 %v4428, %v4436
        %v4461 = vmax.f32 %v4429, %v4437
        %v4462 = vmax.f32 %v4446, %v4430
        %v4463 = vmax.f32 %v4447, %v4431
        %v4464 = vmax.f32 %v4448, %v4432
        %v4465 = vmax.f32 %v4449, %v4433
        %v4466 = vmax.f32 %v4450, %v4434
        %v4467 = vmax.f32 %v4451, %v4435
        %v4468 = vmax.f32 %v4452, %v4436
        %v4469 = vmax.f32 %v4453, %v4437
        %v4470 = vmax.f32 %v4454, %v4438
        %v4471 = vmax.f32 %v4455, %v4439
        %v4472 = vmax.f32 %v4456, %v4440
        %v4473 = vmax.f32 %v4457, %v4441
        %v4474 = vmax.f32 %v4458, %v4442
        %v4475 = vmax.f32 %v4459, %v4443
        %v4476 = vmax.f32 %v4460, %v4444
        %v4477 = vmax.f32 %v4461, %v4445
        %v4478 = vld [vmem:[%s7] sm:$0xf]
        %v4480 = vsel %vm489, %v4462, 0
        %v4483 = vsel %vm489, %v4463, 0
        %v4486 = vsel %vm489, %v4464, 0
        %v4489 = vsel %vm489, %v4465, 0
        %v4492 = vsel %vm489, %v4466, 0
        %v4495 = vsel %vm489, %v4467, 0
        %v4498 = vsel %vm489, %v4468, 0
        %v4501 = vsel %vm489, %v4469, 0
        %v4504 = vsel %vm489, %v4470, 0
        %v4507 = vsel %vm489, %v4471, 0
        %v4510 = vsel %vm489, %v4472, 0
        %v4513 = vsel %vm489, %v4473, 0
        %v4516 = vsel %vm489, %v4474, 0
        %v4519 = vsel %vm489, %v4475, 0
        %v4522 = vsel %vm489, %v4476, 0
        %v4525 = vsel %vm489, %v4477, 0
        %v4528 = vsel %vm759, %v4478, 0
        %4530 = vmatprep.subr.mxu0 0.0
        %4531 = vmatpush1.msra.mxu0 0.0
        %4532 = vmatprep.subr.mxu0 0.0
        %4533 = vmatpush1.msra.mxu0 0.0
        %4534 = vmatprep.subr.mxu0 0.0
        %4535 = vmatpush1.msra.mxu0 0.0
        %4536 = vmatprep.subr.mxu0 0.0
        %4537 = vmatpush1.msra.mxu0 0.0
        %4538 = vmatprep.subr.mxu0 0.0
        %4539 = vmatpush1.msra.mxu0 0.0
        %4540 = vmatprep.subr.mxu0 0.0
        %4541 = vmatpush1.msra.mxu0 0.0
        %4542 = vmatprep.subr.mxu0 0.0
        %4543 = vmatpush1.msra.mxu0 0.0
        %4544 = vmatprep.subr.mxu0 0.0
        %4545 = vmatpush1.msra.mxu0 0.0
        %4546 = vmatprep.subr.mxu0 0.0
        %4547 = vmatpush1.msra.mxu0 0.0
        %4548 = vmatprep.subr.mxu0 0.0
        %4549 = vmatpush1.msra.mxu0 0.0
        %4550 = vmatprep.subr.mxu0 0.0
        %4551 = vmatpush1.msra.mxu0 0.0
        %4552 = vmatprep.subr.mxu0 0.0
        %4553 = vmatpush1.msra.mxu0 0.0
        %4554 = vmatprep.subr.mxu0 0.0
        %4555 = vmatpush1.msra.mxu0 0.0
        %4556 = vmatprep.subr.mxu0 0.0
        %4557 = vmatpush1.msra.mxu0 0.0
        %4558 = vmatprep.subr.mxu0 0.0
        %4559 = vmatpush1.msra.mxu0 0.0
        %4560 = vmatprep.subr.mxu0 0.0
        %4561 = vmatpush1.msra.mxu0 %v4528
        %4562 = vmatprep.subr.mxu0 0.0
        %4563 = vmatpush2.msra.mxu0 0.0
        %4564 = vmatprep.subr.mxu0 0.0
        %4565 = vmatpush2.msra.mxu0 0.0
        %4566 = vmatprep.subr.mxu0 0.0
        %4567 = vmatpush2.msra.mxu0 0.0
        %4568 = vmatprep.subr.mxu0 0.0
        %4569 = vmatpush2.msra.mxu0 0.0
        %4570 = vmatprep.subr.mxu0 0.0
        %4571 = vmatpush2.msra.mxu0 0.0
        %4572 = vmatprep.subr.mxu0 0.0
        %4573 = vmatpush2.msra.mxu0 0.0
        %4574 = vmatprep.subr.mxu0 0.0
        %4575 = vmatpush2.msra.mxu0 0.0
        %4576 = vmatprep.subr.mxu0 0.0
        %4577 = vmatpush2.msra.mxu0 0.0
        %4578 = vmatprep.subr.mxu0 0.0
        %4579 = vmatpush2.msra.mxu0 0.0
        %4580 = vmatprep.subr.mxu0 0.0
        %4581 = vmatpush2.msra.mxu0 0.0
        %4582 = vmatprep.subr.mxu0 0.0
        %4583 = vmatpush2.msra.mxu0 0.0
        %4584 = vmatprep.subr.mxu0 0.0
        %4585 = vmatpush2.msra.mxu0 0.0
        %4586 = vmatprep.subr.mxu0 0.0
        %4587 = vmatpush2.msra.mxu0 0.0
        %4588 = vmatprep.subr.mxu0 0.0
        %4589 = vmatpush2.msra.mxu0 0.0
        %4590 = vmatprep.subr.mxu0 0.0
        %4591 = vmatpush2.msra.mxu0 0.0
        %4592 = vmatprep.subr.mxu0 0.0
        %4593 = vmatpush2.msra.mxu0 0.0
        %4594 = vmatprep.mubr.f32.mxu0 0.0
        %4595 = vmatmul.mubr.f32.gmra.mxu0 %v4480
        %v4596 = vpop.f32.mrf.mxu0
        %v4597 = vadd.f32 0.0, %v4596
        %v4598 = vpop.f32.mrf.mxu0
        %4599 = vmatprep.mubr.f32.mxu0 0.0
        %4600 = vmatmul.mubr.f32.gmra.mxu0 %v4483
        %v4601 = vpop.f32.mrf.mxu0
        %v4602 = vadd.f32 0.0, %v4601
        %v4603 = vpop.f32.mrf.mxu0
        %4604 = vmatprep.mubr.f32.mxu0 0.0
        %4605 = vmatmul.mubr.f32.gmra.mxu0 %v4486
        %v4606 = vpop.f32.mrf.mxu0
        %v4607 = vadd.f32 0.0, %v4606
        %v4608 = vpop.f32.mrf.mxu0
        %4609 = vmatprep.mubr.f32.mxu0 0.0
        %4610 = vmatmul.mubr.f32.gmra.mxu0 %v4489
        %v4611 = vpop.f32.mrf.mxu0
        %v4612 = vadd.f32 0.0, %v4611
        %v4613 = vpop.f32.mrf.mxu0
        %4614 = vmatprep.mubr.f32.mxu0 0.0
        %4615 = vmatmul.mubr.f32.gmra.mxu0 %v4492
        %v4616 = vpop.f32.mrf.mxu0
        %v4617 = vadd.f32 0.0, %v4616
        %v4618 = vpop.f32.mrf.mxu0
        %4619 = vmatprep.mubr.f32.mxu0 0.0
        %4620 = vmatmul.mubr.f32.gmra.mxu0 %v4495
        %v4621 = vpop.f32.mrf.mxu0
        %v4622 = vadd.f32 0.0, %v4621
        %v4623 = vpop.f32.mrf.mxu0
        %4624 = vmatprep.mubr.f32.mxu0 0.0
        %4625 = vmatmul.mubr.f32.gmra.mxu0 %v4498
        %v4626 = vpop.f32.mrf.mxu0
        %v4627 = vadd.f32 0.0, %v4626
        %v4628 = vpop.f32.mrf.mxu0
        %4629 = vmatprep.mubr.f32.mxu0 0.0
        %4630 = vmatmul.mubr.f32.gmra.mxu0 %v4501
        %v4631 = vpop.f32.mrf.mxu0
        %v4632 = vadd.f32 0.0, %v4631
        %v4633 = vpop.f32.mrf.mxu0
        %4634 = vmatprep.mubr.f32.mxu0 0.0
        %4635 = vmatmul.mubr.f32.gmra.mxu0 %v4504
        %v4636 = vpop.f32.mrf.mxu0
        %v4637 = vadd.f32 0.0, %v4636
        %v4638 = vpop.f32.mrf.mxu0
        %4639 = vmatprep.mubr.f32.mxu0 0.0
        %4640 = vmatmul.mubr.f32.gmra.mxu0 %v4507
        %v4641 = vpop.f32.mrf.mxu0
        %v4642 = vadd.f32 0.0, %v4641
        %v4643 = vpop.f32.mrf.mxu0
        %4644 = vmatprep.mubr.f32.mxu0 0.0
        %4645 = vmatmul.mubr.f32.gmra.mxu0 %v4510
        %v4646 = vpop.f32.mrf.mxu0
        %v4647 = vadd.f32 0.0, %v4646
        %v4648 = vpop.f32.mrf.mxu0
        %4649 = vmatprep.mubr.f32.mxu0 0.0
        %4650 = vmatmul.mubr.f32.gmra.mxu0 %v4513
        %v4651 = vpop.f32.mrf.mxu0
        %v4652 = vadd.f32 0.0, %v4651
        %v4653 = vpop.f32.mrf.mxu0
        %4654 = vmatprep.mubr.f32.mxu0 0.0
        %4655 = vmatmul.mubr.f32.gmra.mxu0 %v4516
        %v4656 = vpop.f32.mrf.mxu0
        %v4657 = vadd.f32 0.0, %v4656
        %v4658 = vpop.f32.mrf.mxu0
        %4659 = vmatprep.mubr.f32.mxu0 0.0
        %4660 = vmatmul.mubr.f32.gmra.mxu0 %v4519
        %v4661 = vpop.f32.mrf.mxu0
        %v4662 = vadd.f32 0.0, %v4661
        %v4663 = vpop.f32.mrf.mxu0
        %4664 = vmatprep.mubr.f32.mxu0 0.0
        %4665 = vmatmul.mubr.f32.gmra.mxu0 %v4522
        %v4666 = vpop.f32.mrf.mxu0
        %v4667 = vadd.f32 0.0, %v4666
        %v4668 = vpop.f32.mrf.mxu0
        %4669 = vmatprep.mubr.f32.mxu0 0.0
        %4670 = vmatmul.mubr.f32.gmra.mxu0 %v4525
        %v4671 = vpop.f32.mrf.mxu0
        %v4672 = vadd.f32 0.0, %v4671
        %v4673 = vpop.f32.mrf.mxu0
        %4674 = vdwg.mxu0
        %v4675 = vld [vmem:[#allocation4] sm:$0xff]
        %v4676 = vld [vmem:[#allocation4 + $0x8] sm:$0xff]
        %v4677 = vld [vmem:[#allocation4 + $0x10] sm:$0xff]
        %v4678 = vld [vmem:[#allocation4 + $0x18] sm:$0xff]
        %v4679 = vld [vmem:[#allocation4 + $0x20] sm:$0xff]
        %v4680 = vld [vmem:[#allocation4 + $0x28] sm:$0xff]
        %v4681 = vld [vmem:[#allocation4 + $0x30] sm:$0xff]
        %v4682 = vld [vmem:[#allocation4 + $0x38] sm:$0xff]
        %v4683 = vld [vmem:[#allocation4 + $0x40] sm:$0xff]
        %v4684 = vld [vmem:[#allocation4 + $0x48] sm:$0xff]
        %v4685 = vld [vmem:[#allocation4 + $0x50] sm:$0xff]
        %v4686 = vld [vmem:[#allocation4 + $0x58] sm:$0xff]
        %v4687 = vld [vmem:[#allocation4 + $0x60] sm:$0xff]
        %v4688 = vld [vmem:[#allocation4 + $0x68] sm:$0xff]
        %v4689 = vld [vmem:[#allocation4 + $0x70] sm:$0xff]
        %v4690 = vld [vmem:[#allocation4 + $0x78] sm:$0xff]
        %4707 = vrot.lane.b32.xlu0 %v4675, 8
        %v4708 = vpop.permute.xlu0 %4707
        %4709 = vrot.lane.b32.xlu0 %v4676, 8
        %v4710 = vpop.permute.xlu0 %4709
        %4711 = vrot.lane.b32.xlu0 %v4677, 8
        %v4712 = vpop.permute.xlu0 %4711
        %4713 = vrot.lane.b32.xlu0 %v4678, 8
        %v4714 = vpop.permute.xlu0 %4713
        %4715 = vrot.lane.b32.xlu0 %v4679, 8
        %v4716 = vpop.permute.xlu0 %4715
        %4717 = vrot.lane.b32.xlu0 %v4680, 8
        %v4718 = vpop.permute.xlu0 %4717
        %4719 = vrot.lane.b32.xlu0 %v4681, 8
        %v4720 = vpop.permute.xlu0 %4719
        %4721 = vrot.lane.b32.xlu0 %v4682, 8
        %v4722 = vpop.permute.xlu0 %4721
        %4723 = vrot.lane.b32.xlu0 %v4683, 8
        %v4724 = vpop.permute.xlu0 %4723
        %4725 = vrot.lane.b32.xlu0 %v4684, 8
        %v4726 = vpop.permute.xlu0 %4725
        %4727 = vrot.lane.b32.xlu0 %v4685, 8
        %v4728 = vpop.permute.xlu0 %4727
        %4729 = vrot.lane.b32.xlu0 %v4686, 8
        %v4730 = vpop.permute.xlu0 %4729
        %4731 = vrot.lane.b32.xlu0 %v4687, 8
        %v4732 = vpop.permute.xlu0 %4731
        %4733 = vrot.lane.b32.xlu0 %v4688, 8
        %v4734 = vpop.permute.xlu0 %4733
        %4735 = vrot.lane.b32.xlu0 %v4689, 8
        %v4736 = vpop.permute.xlu0 %4735
        %4737 = vrot.lane.b32.xlu0 %v4690, 8
        %v4738 = vpop.permute.xlu0 %4737
        %4771 = vrot.lane.b32.xlu0 %v4597, 24
        %v4772 = vpop.permute.xlu0 %4771
        %4773 = vrot.lane.b32.xlu0 %v4602, 24
        %v4774 = vpop.permute.xlu0 %4773
        %4775 = vrot.lane.b32.xlu0 %v4607, 24
        %v4776 = vpop.permute.xlu0 %4775
        %4777 = vrot.lane.b32.xlu0 %v4612, 24
        %v4778 = vpop.permute.xlu0 %4777
        %4779 = vrot.lane.b32.xlu0 %v4617, 24
        %v4780 = vpop.permute.xlu0 %4779
        %4781 = vrot.lane.b32.xlu0 %v4622, 24
        %v4782 = vpop.permute.xlu0 %4781
        %4783 = vrot.lane.b32.xlu0 %v4627, 24
        %v4784 = vpop.permute.xlu0 %4783
        %4785 = vrot.lane.b32.xlu0 %v4632, 24
        %v4786 = vpop.permute.xlu0 %4785
        %4787 = vrot.lane.b32.xlu0 %v4637, 24
        %v4788 = vpop.permute.xlu0 %4787
        %4789 = vrot.lane.b32.xlu0 %v4642, 24
        %v4790 = vpop.permute.xlu0 %4789
        %4791 = vrot.lane.b32.xlu0 %v4647, 24
        %v4792 = vpop.permute.xlu0 %4791
        %4793 = vrot.lane.b32.xlu0 %v4652, 24
        %v4794 = vpop.permute.xlu0 %4793
        %4795 = vrot.lane.b32.xlu0 %v4657, 24
        %v4796 = vpop.permute.xlu0 %4795
        %4797 = vrot.lane.b32.xlu0 %v4662, 24
        %v4798 = vpop.permute.xlu0 %4797
        %4799 = vrot.lane.b32.xlu0 %v4667, 24
        %v4800 = vpop.permute.xlu0 %4799
        %4801 = vrot.lane.b32.xlu0 %v4672, 24
        %v4802 = vpop.permute.xlu0 %4801
        %vm4819 = vcmask 64512
        %v4820 = vsel %vm4819, %v1369, %v4708
        %v4821 = vsel %vm4819, %v1374, %v4710
        %v4822 = vsel %vm4819, %v1379, %v4712
        %v4823 = vsel %vm4819, %v1384, %v4714
        %v4824 = vsel %vm4819, %v1389, %v4716
        %v4825 = vsel %vm4819, %v1394, %v4718
        %v4826 = vsel %vm4819, %v1399, %v4720
        %v4827 = vsel %vm4819, %v1404, %v4722
        %v4828 = vsel %vm4819, %v1409, %v4724
        %v4829 = vsel %vm4819, %v1414, %v4726
        %v4830 = vsel %vm4819, %v1419, %v4728
        %v4831 = vsel %vm4819, %v1424, %v4730
        %v4832 = vsel %vm4819, %v1429, %v4732
        %v4833 = vsel %vm4819, %v1434, %v4734
        %v4834 = vsel %vm4819, %v1439, %v4736
        %v4835 = vsel %vm4819, %v1444, %v4738
        %vm4836 = vcmask 195584
        %v4837 = vsel %vm4836, %v4820, %v4772
        %v4838 = vsel %vm4836, %v4821, %v4774
        %v4839 = vsel %vm4836, %v4822, %v4776
        %v4840 = vsel %vm4836, %v4823, %v4778
        %v4841 = vsel %vm4836, %v4824, %v4780
        %v4842 = vsel %vm4836, %v4825, %v4782
        %v4843 = vsel %vm4836, %v4826, %v4784
        %v4844 = vsel %vm4836, %v4827, %v4786
        %v4845 = vsel %vm4836, %v4828, %v4788
        %v4846 = vsel %vm4836, %v4829, %v4790
        %v4847 = vsel %vm4836, %v4830, %v4792
        %v4848 = vsel %vm4836, %v4831, %v4794
        %v4849 = vsel %vm4836, %v4832, %v4796
        %v4850 = vsel %vm4836, %v4833, %v4798
        %v4851 = vsel %vm4836, %v4834, %v4800
        %v4852 = vsel %vm4836, %v4835, %v4802
        %v4853 = vld [vmem:[%s8] sm:$0x1]
        %v4855 = vlaneseq
        %v4856 = vshrl.u32 %v4855, 7
        %v4857 = vsub.s32 0, %v4856
        %v4858 = vrot.slane %v4853, %v4857
        %v4860 = vadd.f32 %v4837, %v4858
        %v4861 = vadd.f32 %v4838, %v4858
        %v4862 = vadd.f32 %v4839, %v4858
        %v4863 = vadd.f32 %v4840, %v4858
        %v4864 = vadd.f32 %v4841, %v4858
        %v4865 = vadd.f32 %v4842, %v4858
        %v4866 = vadd.f32 %v4843, %v4858
        %v4867 = vadd.f32 %v4844, %v4858
        %v4868 = vadd.f32 %v4845, %v4858
        %v4869 = vadd.f32 %v4846, %v4858
        %v4870 = vadd.f32 %v4847, %v4858
        %v4871 = vadd.f32 %v4848, %v4858
        %v4872 = vadd.f32 %v4849, %v4858
        %v4873 = vadd.f32 %v4850, %v4858
        %v4874 = vadd.f32 %v4851, %v4858
        %v4875 = vadd.f32 %v4852, %v4858
        %v4876 = vmax.f32 %v4860, 0.0
        %v4877 = vmax.f32 %v4861, 0.0
        %v4878 = vmax.f32 %v4862, 0.0
        %v4879 = vmax.f32 %v4863, 0.0
        %v4880 = vmax.f32 %v4864, 0.0
        %v4881 = vmax.f32 %v4865, 0.0
        %v4882 = vmax.f32 %v4866, 0.0
        %v4883 = vmax.f32 %v4867, 0.0
        %v4884 = vmax.f32 %v4868, 0.0
        %v4885 = vmax.f32 %v4869, 0.0
        %v4886 = vmax.f32 %v4870, 0.0
        %v4887 = vmax.f32 %v4871, 0.0
        %v4888 = vmax.f32 %v4872, 0.0
        %v4889 = vmax.f32 %v4873, 0.0
        %v4890 = vmax.f32 %v4874, 0.0
        %v4891 = vmax.f32 %v4875, 0.0
        %4892 = vst [vmem:[%s440] sm:$0xff] %v4876
        %4893 = vst [vmem:[%s440 + $0x8] sm:$0xff] %v4877
        %4894 = vst [vmem:[%s440 + $0x10] sm:$0xff] %v4878
        %4895 = vst [vmem:[%s440 + $0x18] sm:$0xff] %v4879
        %4896 = vst [vmem:[%s440 + $0x20] sm:$0xff] %v4880
        %4897 = vst [vmem:[%s440 + $0x28] sm:$0xff] %v4881
        %4898 = vst [vmem:[%s440 + $0x30] sm:$0xff] %v4882
        %4899 = vst [vmem:[%s440 + $0x38] sm:$0xff] %v4883
        %4900 = vst [vmem:[%s440 + $0x40] sm:$0xff] %v4884
        %4901 = vst [vmem:[%s440 + $0x48] sm:$0xff] %v4885
        %4902 = vst [vmem:[%s440 + $0x50] sm:$0xff] %v4886
        %4903 = vst [vmem:[%s440 + $0x58] sm:$0xff] %v4887
        %4904 = vst [vmem:[%s440 + $0x60] sm:$0xff] %v4888
        %4905 = vst [vmem:[%s440 + $0x68] sm:$0xff] %v4889
        %4906 = vst [vmem:[%s440 + $0x70] sm:$0xff] %v4890
        %4907 = vst [vmem:[%s440 + $0x78] sm:$0xff] %v4891
        %s4908 = sand.u32 %s269, 1
        %s4909 = scalar_lea.sflag [#allocation6], %s4908
        %s4910 = sand.u32 %s269, 1
        %s4911 = smul.addr %s4910, 128
        %s4912 = scalar_lea.vmem [#allocation5], %s4911
        // Predicated region
        $region72: #{inception_forward.1} parent=55 // pred_check
          %p4913 = pneg %p279
        $region73: #{inception_forward.1} parent=55 // pred_check_branch
          %4915 = sbr.rel (%p4913) target = $region75
        $region74: #{inception_forward.1} parent=55 // pred_region
          %s4916 = smul.u32 %s27, 2
          %s4917 = sadd.s32 %s4916, %s28
          %s4918 = smul.u32 16, %s4917
          %s4920 = ssub.s32 2048, 2048
          %4921 = vsyncadd %s4909, %s4920
          %s4922 = smul.addr %s4918, 128
          %s4923 = scalar_lea.hbm %s9, %s4922
          %s4924 = sshll.u32 %s4912, 4
          %s4925 = int_to_ptr.vmem [resolvable:$true] %s4924
          %4930 = dma.vmem_to_hbm [thread:$0]  %s4925, 2048, %s4923, %s4909, 128, 128, 8
        $region75: #{inception_forward.1} parent=55 // pred_fallthru
          _
      $region56: #{inception_forward.1} parent=5 // pred_fallthru
        _
      %p4931 = scmp.le.s32.totalorder 2, %s18
      // Predicated region
      $region76: #{inception_forward.1} parent=5 // pred_check
        %p4932 = pneg %p4931
      $region77: #{inception_forward.1} parent=5 // pred_check_branch
        %4934 = sbr.rel (%p4932) target = $region79
      $region78: #{inception_forward.1} parent=5 // pred_region
        %s4935 = ssub.s32 %s18, 2
        // Predicated region
        $region80: #{inception_forward.1} parent=78 // pred_check
          %p4936 = pneg %p285
        $region81: #{inception_forward.1} parent=78 // pred_check_branch
          %4938 = sbr.rel (%p4936) target = $region83
        $region82: #{inception_forward.1} parent=78 // pred_region
          %s4939 = sand.u32 %s270, 1
          %s4940 = scalar_lea.sflag [#allocation6], %s4939
          %s4941 = sand.u32 %s270, 1
          %s4942 = smul.addr %s4941, 128
          %s4943 = scalar_lea.vmem [#allocation5], %s4942
          %4944 = dma.done %s4940, 2048
        $region83: #{inception_forward.1} parent=78 // pred_fallthru
          _
      $region79: #{inception_forward.1} parent=5 // pred_fallthru
        _
    $region6: #{inception_forward.1} parent=1 // loop_footer
      %s22 = sadd.s32 1, %s18
    $region7: #{inception_forward.1} parent=1 // loop_footer_branch
      %17 = sbr.rel target = $region3
    $region8: #{inception_forward.1} parent=1 // loop_exit
      _
    %4945 = vsyncpa [#allocation6], 1
    %s4946 = scalar_lea.sflag [#allocation6], 1
    %4947 = vsyncpa %s4946, 1

</llo_original>
